<compile_context>
chip_gen: v5e
topology: v5e:2x2
jax: 0.10.0
libtpu: 0.0.40
codegen_flags: <defaults>
</compile_context>

<pallas_src>
import jax
import jax.numpy as jnp
from jax.experimental import pallas as pl
from jax.experimental.pallas import tpu as pltpu

LN_EPS = 1e-5                      # nn.LayerNorm default
_SQRT_2_OVER_PI = 0.7978845608028654
_INV_SQRT2 = 0.7071067811865476


def _gelu(h, approx):
    if approx:
        # tanh approximation -> transcendental runs on the EUP (separate slot).
        return 0.5 * h * (1.0 + jnp.tanh(
            _SQRT_2_OVER_PI * (h + 0.044715 * h * h * h)))
    # exact erf (nn.GELU default): long polynomial on the VPU, slower.
    return 0.5 * h * (1.0 + jax.lax.erf(h * _INV_SQRT2))


def _make_kernel(n_chunks, hc, approx_gelu):
    """Kernel factory; n_chunks/hc/approx_gelu are compile-time constants."""

    def kernel(x_ref, gamma_ref, beta_ref, w1_ref, b1_ref, w2_ref, b2_ref,
               o_ref, acc_ref):
        # ---- LayerNorm over the feature (last) axis, f32 stats ----
        # var = E[x^2] - E[x]^2: two independent lane reductions over one pass.
        x = x_ref[...].astype(jnp.float32)
        mean = jnp.mean(x, axis=-1, keepdims=True)
        mean_sq = jnp.mean(x * x, axis=-1, keepdims=True)
        var = mean_sq - mean * mean
        xn = (x - mean) * jax.lax.rsqrt(var + LN_EPS)
        xn = (xn * gamma_ref[...].astype(jnp.float32)
              + beta_ref[...].astype(jnp.float32))
        xn_m = xn.astype(w1_ref.dtype)          # bf16 feed for the MXU

        # ---- Linear(D->H) -> GELU -> Linear(H->D), chunked over H ----
        acc_ref[...] = jnp.zeros_like(acc_ref)
        for c in range(n_chunks):               # static, small (<= ~6)
            lo = c * hc
            hi = lo + hc
            h = jnp.dot(xn_m, w1_ref[:, lo:hi],
                        preferred_element_type=jnp.float32)
            h = h + b1_ref[:, lo:hi].astype(jnp.float32)
            h = _gelu(h, approx_gelu)
            # Dropout(p): identity in eval mode.
            acc_ref[...] += jnp.dot(h.astype(w2_ref.dtype), w2_ref[lo:hi, :],
                                    preferred_element_type=jnp.float32)

        y = acc_ref[...] + b2_ref[...].astype(jnp.float32)
        # Dropout(p): identity in eval mode.
        o_ref[...] = y.astype(o_ref.dtype)

    return kernel


def _build_call(kernel, T, D, H, tm, out_dtype, *, single_buffer_consts,
                vmem_limit_bytes):
    def const_spec(shape):
        # Constant index_map -> block never changes across the grid; request a
        # single VMEM buffer so it is not double-allocated.
        idx_map = lambda i: (0,) * len(shape)
        if single_buffer_consts:
            return pl.BlockSpec(shape, idx_map, pipeline_mode=pl.Buffered(1))
        return pl.BlockSpec(shape, idx_map)

    return pl.pallas_call(
        kernel,
        out_shape=jax.ShapeDtypeStruct((T, D), out_dtype),
        grid_spec=pltpu.PrefetchScalarGridSpec(
            num_scalar_prefetch=0,
            grid=(T // tm,),
            in_specs=[
                pl.BlockSpec((tm, D), lambda i: (i, 0)),   # x tile (double-buffered)
                const_spec((1, D)),    # gamma
                const_spec((1, D)),    # beta
                const_spec((D, H)),    # w1 (resident, bf16)
                const_spec((1, H)),    # b1
                const_spec((H, D)),    # w2 (resident, bf16)
                const_spec((1, D)),    # b2
            ],
            out_specs=pl.BlockSpec((tm, D), lambda i: (i, 0)),
            scratch_shapes=[pltpu.VMEM((tm, D), jnp.float32)],  # H-chunk accum
        ),
        compiler_params=pltpu.CompilerParams(
            dimension_semantics=("parallel",),
            vmem_limit_bytes=vmem_limit_bytes,
        ),
    )


def _round_up(a, b):
    return -(-a // b) * b


def _default_vmem_limit():
    # ~80% of physical per-core VMEM, capped at 100 MiB:
    # v5e/v6e (128 MiB) -> 100 MiB ; v7x (64 MiB) -> ~51 MiB (headroom for
    # Mosaic internal scratch / spills).
    try:
        cap = pltpu.get_tpu_info().vmem_capacity_bytes
        return int(min(0.8 * cap, 100 * 1024 * 1024))
    except Exception:  # query unavailable -> safe-on-every-generation default
        return 48 * 1024 * 1024


def mlp_block(x, gamma, beta, w1, b1, w2, b2, *, tm=512,
              mxu_dtype=jnp.bfloat16, approx_gelu=True,
              hidden_chunk=1024, vmem_limit_bytes=None):
    """x: (..., D) -> (..., D).

    w1: (D, H), w2: (H, D) (transposed vs nn.Linear's (out, in) storage).
    gamma/beta/b1/b2 may be 1-D (PyTorch layout) or (1, N).
    """
    orig_shape = x.shape
    D = orig_shape[-1]
    H = w1.shape[-1]

    # Normalize parameter shapes (PyTorch stores LN weight/bias as (N,)).
    gamma = jnp.reshape(gamma, (1, D))
    beta = jnp.reshape(beta, (1, D))
    b1 = jnp.reshape(b1, (1, H))
    b2 = jnp.reshape(b2, (1, D))

    # Feed the MXU bf16 (f32 matmul is emulated at a fraction of bf16 rate on
    # every generation); accumulation stays f32 inside the kernel.  Also halves
    # resident-weight VMEM, which matters most on v7x (64 MiB/TC, and each TC
    # holds its own copy of the resident weights).
    if mxu_dtype is not None:
        w1 = w1.astype(mxu_dtype)
        w2 = w2.astype(mxu_dtype)

    xf = x.reshape(-1, D)
    T = xf.shape[0]

    # Token tile: multiple of 8 sublanes, no bigger than the (padded) problem,
    # and >= 2 grid steps when possible so both v7x TensorCores get work.
    tm = max(8, min(int(tm), _round_up(T, 8)))
    if _round_up(T, tm) // tm < 2 and T > 8:
        tm = max(8, _round_up(-(-T // 2), 8))
    T_pad = _round_up(T, tm)
    if T_pad != T:
        xf = jnp.pad(xf, ((0, T_pad - T), (0, 0)))

    # Hidden-dim chunk size: largest of (hidden_chunk, 512, 256) dividing H,
    # else a single chunk.  Keeps chunk boundaries lane-aligned (mult. of 128).
    hc = H
    for cand in (hidden_chunk, 512, 256):
        if cand and cand <= H and H % cand == 0:
            hc = int(cand)
            break
    n_chunks = H // hc

    if vmem_limit_bytes is None:
        vmem_limit_bytes = _default_vmem_limit()

    kernel = _make_kernel(n_chunks, hc, approx_gelu)
    args = (xf, gamma, beta, w1, b1, w2, b2)
    try:
        out = _build_call(kernel, T_pad, D, H, tm, x.dtype,
                          single_buffer_consts=True,
                          vmem_limit_bytes=vmem_limit_bytes)(*args)
    except (TypeError, ValueError, NotImplementedError,
            pltpu.LoweringException):
        # Narrow fallback: only for "pipeline_mode=pl.Buffered(1) unsupported"
        # style failures on older JAX/Mosaic.  Semantics identical; constants
        # become double-buffered (2x weight VMEM) but weights are bf16 so this
        # stays well inside budget at the module's default sizes.
        out = _build_call(kernel, T_pad, D, H, tm, x.dtype,
                          single_buffer_consts=False,
                          vmem_limit_bytes=vmem_limit_bytes)(*args)

    if T_pad != T:
        out = out[:T]
    return out.reshape(orig_shape)


def _reference(x, gamma, beta, w1, b1, w2, b2):
    """Pure-JAX f32 reference with nn.GELU's exact erf."""
    xf = x.astype(jnp.float32)
    mean = jnp.mean(xf, axis=-1, keepdims=True)
    var = jnp.mean((xf - mean) ** 2, axis=-1, keepdims=True)
    xn = ((xf - mean) / jnp.sqrt(var + LN_EPS) * gamma.reshape(1, -1)
          + beta.reshape(1, -1))
    h = xn @ w1 + b1.reshape(1, -1)
    h = 0.5 * h * (1.0 + jax.lax.erf(h * _INV_SQRT2))
    y = h @ w2 + b2.reshape(1, -1)
    return y.astype(x.dtype)


if __name__ == "__main__":
    # Small shapes consistent with the module (in_features=D, hidden=H).
    # T = B*S = 400 exercises the tile-clamp path and a >=2-step grid
    # (megacore + weight residency across iterations); H = 768 exercises the
    # in-kernel hidden-dim chunk loop (3 chunks of 256).
    B, S, D, H = 2, 200, 256, 768

    key = jax.random.PRNGKey(0)
    kx, kg, kb, kw1, kb1, kw2, kb2 = jax.random.split(key, 7)

    x = jax.random.normal(kx, (B, S, D), dtype=jnp.float32)
    gamma = 1.0 + 0.01 * jax.random.normal(kg, (D,), dtype=jnp.float32)
    beta = 0.01 * jax.random.normal(kb, (D,), dtype=jnp.float32)
    w1 = jax.random.normal(kw1, (D, H), dtype=jnp.float32) / jnp.sqrt(D * 1.0)
    b1 = 0.01 * jax.random.normal(kb1, (H,), dtype=jnp.float32)
    w2 = jax.random.normal(kw2, (H, D), dtype=jnp.float32) / jnp.sqrt(H * 1.0)
    b2 = 0.01 * jax.random.normal(kb2, (D,), dtype=jnp.float32)

    out = mlp_block(x, gamma, beta, w1, b1, w2, b2)
    out = jax.block_until_ready(out)

    ref = _reference(x, gamma, beta, w1, b1, w2, b2)
    assert out.shape == x.shape
    max_err = float(jnp.max(jnp.abs(out - ref)))
    # Tolerance covers the deliberate bf16 MXU feed + tanh-approx GELU vs the
    # exact-erf f32 reference.
    assert jnp.allclose(out, ref, atol=3e-2, rtol=3e-2), (
        f"mismatch vs reference (max |err| = {max_err})")

    print("KERNEL_OK")
</pallas_src>

<mosaic_0001>
module attributes {stable_mosaic.version = 11 : i64} {
  func.func @kernel(%arg0: i32, %arg1: memref<200x256xf32, #tpu.memory_space<vmem>>, %arg2: memref<1x256xf32, #tpu.memory_space<vmem>>, %arg3: memref<1x256xf32, #tpu.memory_space<vmem>>, %arg4: memref<256x768xbf16, #tpu.memory_space<vmem>>, %arg5: memref<1x768xf32, #tpu.memory_space<vmem>>, %arg6: memref<768x256xbf16, #tpu.memory_space<vmem>>, %arg7: memref<1x256xf32, #tpu.memory_space<vmem>>, %arg8: memref<200x256xf32, #tpu.memory_space<vmem>>, %arg9: memref<200x256xf32, #tpu.memory_space<vmem>>) attributes {dimension_semantics = [#tpu.dimension_semantics<parallel>], iteration_bounds = array<i64: 2>, scalar_prefetch = 0 : i64, scratch_operands = 1 : i64, tpu.core_type = #tpu.core_type<tc>, window_params = [{transform_indices = @transform_0, window_bounds = array<i64: 200, 256>}, {pipeline_mode = #tpu.pipeline_mode<synchronous>, transform_indices = @transform_1, window_bounds = array<i64: 1, 256>}, {pipeline_mode = #tpu.pipeline_mode<synchronous>, transform_indices = @transform_2, window_bounds = array<i64: 1, 256>}, {pipeline_mode = #tpu.pipeline_mode<synchronous>, transform_indices = @transform_3, window_bounds = array<i64: 256, 768>}, {pipeline_mode = #tpu.pipeline_mode<synchronous>, transform_indices = @transform_4, window_bounds = array<i64: 1, 768>}, {pipeline_mode = #tpu.pipeline_mode<synchronous>, transform_indices = @transform_5, window_bounds = array<i64: 768, 256>}, {pipeline_mode = #tpu.pipeline_mode<synchronous>, transform_indices = @transform_6, window_bounds = array<i64: 1, 256>}, {transform_indices = @transform_7, window_bounds = array<i64: 200, 256>}]} {
    %c0 = arith.constant 0 : index
    %c0_0 = arith.constant 0 : index
    %0 = vector.load %arg1[%c0, %c0_0] : memref<200x256xf32, #tpu.memory_space<vmem>>, vector<200x256xf32>
    %cst = arith.constant dense<0.000000e+00> : vector<200xf32>
    %1 = vector.multi_reduction <add>, %0, %cst [1] : vector<200x256xf32> to vector<200xf32>
    %2 = vector.shape_cast %1 : vector<200xf32> to vector<200x1xf32>
    %cst_1 = arith.constant 2.560000e+02 : f32
    %3 = vector.broadcast %cst_1 : f32 to vector<200x1xf32>
    %4 = arith.divf %2, %3 : vector<200x1xf32>
    %5 = arith.mulf %0, %0 : vector<200x256xf32>
    %cst_2 = arith.constant dense<0.000000e+00> : vector<200xf32>
    %6 = vector.multi_reduction <add>, %5, %cst_2 [1] : vector<200x256xf32> to vector<200xf32>
    %7 = vector.shape_cast %6 : vector<200xf32> to vector<200x1xf32>
    %cst_3 = arith.constant 2.560000e+02 : f32
    %8 = vector.broadcast %cst_3 : f32 to vector<200x1xf32>
    %9 = arith.divf %7, %8 : vector<200x1xf32>
    %10 = arith.mulf %4, %4 : vector<200x1xf32>
    %11 = arith.subf %9, %10 : vector<200x1xf32>
    %12 = vector.broadcast %4 : vector<200x1xf32> to vector<200x256xf32>
    %13 = arith.subf %0, %12 : vector<200x256xf32>
    %cst_4 = arith.constant 9.99999974E-6 : f32
    %14 = vector.broadcast %cst_4 : f32 to vector<200x1xf32>
    %15 = arith.addf %11, %14 : vector<200x1xf32>
    %16 = math.rsqrt %15 : vector<200x1xf32>
    %17 = vector.broadcast %16 : vector<200x1xf32> to vector<200x256xf32>
    %18 = arith.mulf %13, %17 : vector<200x256xf32>
    %c0_5 = arith.constant 0 : index
    %c0_6 = arith.constant 0 : index
    %19 = vector.load %arg2[%c0_5, %c0_6] : memref<1x256xf32, #tpu.memory_space<vmem>>, vector<1x256xf32>
    %20 = vector.broadcast %19 : vector<1x256xf32> to vector<200x256xf32>
    %21 = arith.mulf %18, %20 : vector<200x256xf32>
    %c0_7 = arith.constant 0 : index
    %c0_8 = arith.constant 0 : index
    %22 = vector.load %arg3[%c0_7, %c0_8] : memref<1x256xf32, #tpu.memory_space<vmem>>, vector<1x256xf32>
    %23 = vector.broadcast %22 : vector<1x256xf32> to vector<200x256xf32>
    %24 = arith.addf %21, %23 : vector<200x256xf32>
    %25 = arith.truncf %24 : vector<200x256xf32> to vector<200x256xbf16>
    %cst_9 = arith.constant 0.000000e+00 : f32
    %26 = vector.broadcast %cst_9 : f32 to vector<200x256xf32>
    %c0_10 = arith.constant 0 : index
    %c0_11 = arith.constant 0 : index
    %27 = vector.load %arg9[%c0_10, %c0_11] : memref<200x256xf32, #tpu.memory_space<vmem>>, vector<200x256xf32>
    tpu.vector_store %arg9[%c0_10, %c0_11], %26 {strides = array<i32>} : memref<200x256xf32, #tpu.memory_space<vmem>>, vector<200x256xf32>,
    %c0_12 = arith.constant 0 : index
    %c0_13 = arith.constant 0 : index
    %28 = vector.load %arg4[%c0_12, %c0_13] : memref<256x768xbf16, #tpu.memory_space<vmem>>, vector<256x256xbf16>
    %cst_14 = arith.constant dense<0.000000e+00> : vector<200x256xf32>
    %29 = tpu.matmul %25, %28, %cst_14 {dimension_numbers = #tpu.dot_dimension_numbers<[1], [0], [0], [1], [0, 0, 1, 1], [], []>} : vector<200x256xbf16>, vector<256x256xbf16>, vector<200x256xf32> -> vector<200x256xf32>
    %c0_15 = arith.constant 0 : index
    %c0_16 = arith.constant 0 : index
    %30 = vector.load %arg5[%c0_15, %c0_16] : memref<1x768xf32, #tpu.memory_space<vmem>>, vector<1x256xf32>
    %31 = vector.broadcast %30 : vector<1x256xf32> to vector<200x256xf32>
    %32 = arith.addf %29, %31 : vector<200x256xf32>
    %cst_17 = arith.constant 5.000000e-01 : f32
    %33 = vector.broadcast %cst_17 : f32 to vector<200x256xf32>
    %34 = arith.mulf %33, %32 : vector<200x256xf32>
    %cst_18 = arith.constant 4.471500e-02 : f32
    %35 = vector.broadcast %cst_18 : f32 to vector<200x256xf32>
    %36 = arith.mulf %35, %32 : vector<200x256xf32>
    %37 = arith.mulf %36, %32 : vector<200x256xf32>
    %38 = arith.mulf %37, %32 : vector<200x256xf32>
    %39 = arith.addf %32, %38 : vector<200x256xf32>
    %cst_19 = arith.constant 0.797884583 : f32
    %40 = vector.broadcast %cst_19 : f32 to vector<200x256xf32>
    %41 = arith.mulf %40, %39 : vector<200x256xf32>
    %42 = math.tanh %41 : vector<200x256xf32>
    %cst_20 = arith.constant 1.000000e+00 : f32
    %43 = vector.broadcast %cst_20 : f32 to vector<200x256xf32>
    %44 = arith.addf %43, %42 : vector<200x256xf32>
    %45 = arith.mulf %34, %44 : vector<200x256xf32>
    %c0_21 = arith.constant 0 : index
    %c0_22 = arith.constant 0 : index
    %46 = vector.load %arg9[%c0_21, %c0_22] : memref<200x256xf32, #tpu.memory_space<vmem>>, vector<200x256xf32>
    %47 = arith.truncf %45 : vector<200x256xf32> to vector<200x256xbf16>
    %c0_23 = arith.constant 0 : index
    %c0_24 = arith.constant 0 : index
    %48 = vector.load %arg6[%c0_23, %c0_24] : memref<768x256xbf16, #tpu.memory_space<vmem>>, vector<256x256xbf16>
    %cst_25 = arith.constant dense<0.000000e+00> : vector<200x256xf32>
    %49 = tpu.matmul %47, %48, %cst_25 {dimension_numbers = #tpu.dot_dimension_numbers<[1], [0], [0], [1], [0, 0, 1, 1], [], []>} : vector<200x256xbf16>, vector<256x256xbf16>, vector<200x256xf32> -> vector<200x256xf32>
    %50 = arith.addf %46, %49 : vector<200x256xf32>
    %c0_26 = arith.constant 0 : index
    %c0_27 = arith.constant 0 : index
    %51 = vector.load %arg9[%c0_26, %c0_27] : memref<200x256xf32, #tpu.memory_space<vmem>>, vector<200x256xf32>
    tpu.vector_store %arg9[%c0_26, %c0_27], %50 {strides = array<i32>} : memref<200x256xf32, #tpu.memory_space<vmem>>, vector<200x256xf32>,
    %c0_28 = arith.constant 0 : index
    %c256 = arith.constant 256 : index
    %52 = vector.load %arg4[%c0_28, %c256] : memref<256x768xbf16, #tpu.memory_space<vmem>>, vector<256x256xbf16>
    %cst_29 = arith.constant dense<0.000000e+00> : vector<200x256xf32>
    %53 = tpu.matmul %25, %52, %cst_29 {dimension_numbers = #tpu.dot_dimension_numbers<[1], [0], [0], [1], [0, 0, 1, 1], [], []>} : vector<200x256xbf16>, vector<256x256xbf16>, vector<200x256xf32> -> vector<200x256xf32>
    %c0_30 = arith.constant 0 : index
    %c256_31 = arith.constant 256 : index
    %54 = vector.load %arg5[%c0_30, %c256_31] : memref<1x768xf32, #tpu.memory_space<vmem>>, vector<1x256xf32>
    %55 = vector.broadcast %54 : vector<1x256xf32> to vector<200x256xf32>
    %56 = arith.addf %53, %55 : vector<200x256xf32>
    %cst_32 = arith.constant 5.000000e-01 : f32
    %57 = vector.broadcast %cst_32 : f32 to vector<200x256xf32>
    %58 = arith.mulf %57, %56 : vector<200x256xf32>
    %cst_33 = arith.constant 4.471500e-02 : f32
    %59 = vector.broadcast %cst_33 : f32 to vector<200x256xf32>
    %60 = arith.mulf %59, %56 : vector<200x256xf32>
    %61 = arith.mulf %60, %56 : vector<200x256xf32>
    %62 = arith.mulf %61, %56 : vector<200x256xf32>
    %63 = arith.addf %56, %62 : vector<200x256xf32>
    %cst_34 = arith.constant 0.797884583 : f32
    %64 = vector.broadcast %cst_34 : f32 to vector<200x256xf32>
    %65 = arith.mulf %64, %63 : vector<200x256xf32>
    %66 = math.tanh %65 : vector<200x256xf32>
    %cst_35 = arith.constant 1.000000e+00 : f32
    %67 = vector.broadcast %cst_35 : f32 to vector<200x256xf32>
    %68 = arith.addf %67, %66 : vector<200x256xf32>
    %69 = arith.mulf %58, %68 : vector<200x256xf32>
    %c0_36 = arith.constant 0 : index
    %c0_37 = arith.constant 0 : index
    %70 = vector.load %arg9[%c0_36, %c0_37] : memref<200x256xf32, #tpu.memory_space<vmem>>, vector<200x256xf32>
    %71 = arith.truncf %69 : vector<200x256xf32> to vector<200x256xbf16>
    %c256_38 = arith.constant 256 : index
    %c0_39 = arith.constant 0 : index
    %72 = vector.load %arg6[%c256_38, %c0_39] : memref<768x256xbf16, #tpu.memory_space<vmem>>, vector<256x256xbf16>
    %cst_40 = arith.constant dense<0.000000e+00> : vector<200x256xf32>
    %73 = tpu.matmul %71, %72, %cst_40 {dimension_numbers = #tpu.dot_dimension_numbers<[1], [0], [0], [1], [0, 0, 1, 1], [], []>} : vector<200x256xbf16>, vector<256x256xbf16>, vector<200x256xf32> -> vector<200x256xf32>
    %74 = arith.addf %70, %73 : vector<200x256xf32>
    %c0_41 = arith.constant 0 : index
    %c0_42 = arith.constant 0 : index
    %75 = vector.load %arg9[%c0_41, %c0_42] : memref<200x256xf32, #tpu.memory_space<vmem>>, vector<200x256xf32>
    tpu.vector_store %arg9[%c0_41, %c0_42], %74 {strides = array<i32>} : memref<200x256xf32, #tpu.memory_space<vmem>>, vector<200x256xf32>,
    %c0_43 = arith.constant 0 : index
    %c512 = arith.constant 512 : index
    %76 = vector.load %arg4[%c0_43, %c512] : memref<256x768xbf16, #tpu.memory_space<vmem>>, vector<256x256xbf16>
    %cst_44 = arith.constant dense<0.000000e+00> : vector<200x256xf32>
    %77 = tpu.matmul %25, %76, %cst_44 {dimension_numbers = #tpu.dot_dimension_numbers<[1], [0], [0], [1], [0, 0, 1, 1], [], []>} : vector<200x256xbf16>, vector<256x256xbf16>, vector<200x256xf32> -> vector<200x256xf32>
    %c0_45 = arith.constant 0 : index
    %c512_46 = arith.constant 512 : index
    %78 = vector.load %arg5[%c0_45, %c512_46] : memref<1x768xf32, #tpu.memory_space<vmem>>, vector<1x256xf32>
    %79 = vector.broadcast %78 : vector<1x256xf32> to vector<200x256xf32>
    %80 = arith.addf %77, %79 : vector<200x256xf32>
    %cst_47 = arith.constant 5.000000e-01 : f32
    %81 = vector.broadcast %cst_47 : f32 to vector<200x256xf32>
    %82 = arith.mulf %81, %80 : vector<200x256xf32>
    %cst_48 = arith.constant 4.471500e-02 : f32
    %83 = vector.broadcast %cst_48 : f32 to vector<200x256xf32>
    %84 = arith.mulf %83, %80 : vector<200x256xf32>
    %85 = arith.mulf %84, %80 : vector<200x256xf32>
    %86 = arith.mulf %85, %80 : vector<200x256xf32>
    %87 = arith.addf %80, %86 : vector<200x256xf32>
    %cst_49 = arith.constant 0.797884583 : f32
    %88 = vector.broadcast %cst_49 : f32 to vector<200x256xf32>
    %89 = arith.mulf %88, %87 : vector<200x256xf32>
    %90 = math.tanh %89 : vector<200x256xf32>
    %cst_50 = arith.constant 1.000000e+00 : f32
    %91 = vector.broadcast %cst_50 : f32 to vector<200x256xf32>
    %92 = arith.addf %91, %90 : vector<200x256xf32>
    %93 = arith.mulf %82, %92 : vector<200x256xf32>
    %c0_51 = arith.constant 0 : index
    %c0_52 = arith.constant 0 : index
    %94 = vector.load %arg9[%c0_51, %c0_52] : memref<200x256xf32, #tpu.memory_space<vmem>>, vector<200x256xf32>
    %95 = arith.truncf %93 : vector<200x256xf32> to vector<200x256xbf16>
    %c512_53 = arith.constant 512 : index
    %c0_54 = arith.constant 0 : index
    %96 = vector.load %arg6[%c512_53, %c0_54] : memref<768x256xbf16, #tpu.memory_space<vmem>>, vector<256x256xbf16>
    %cst_55 = arith.constant dense<0.000000e+00> : vector<200x256xf32>
    %97 = tpu.matmul %95, %96, %cst_55 {dimension_numbers = #tpu.dot_dimension_numbers<[1], [0], [0], [1], [0, 0, 1, 1], [], []>} : vector<200x256xbf16>, vector<256x256xbf16>, vector<200x256xf32> -> vector<200x256xf32>
    %98 = arith.addf %94, %97 : vector<200x256xf32>
    %c0_56 = arith.constant 0 : index
    %c0_57 = arith.constant 0 : index
    %99 = vector.load %arg9[%c0_56, %c0_57] : memref<200x256xf32, #tpu.memory_space<vmem>>, vector<200x256xf32>
    tpu.vector_store %arg9[%c0_56, %c0_57], %98 {strides = array<i32>} : memref<200x256xf32, #tpu.memory_space<vmem>>, vector<200x256xf32>,
    %c0_58 = arith.constant 0 : index
    %c0_59 = arith.constant 0 : index
    %100 = vector.load %arg9[%c0_58, %c0_59] : memref<200x256xf32, #tpu.memory_space<vmem>>, vector<200x256xf32>
    %c0_60 = arith.constant 0 : index
    %c0_61 = arith.constant 0 : index
    %101 = vector.load %arg7[%c0_60, %c0_61] : memref<1x256xf32, #tpu.memory_space<vmem>>, vector<1x256xf32>
    %102 = vector.broadcast %101 : vector<1x256xf32> to vector<200x256xf32>
    %103 = arith.addf %100, %102 : vector<200x256xf32>
    %c0_62 = arith.constant 0 : index
    %c0_63 = arith.constant 0 : index
    %104 = vector.load %arg8[%c0_62, %c0_63] : memref<200x256xf32, #tpu.memory_space<vmem>>, vector<200x256xf32>
    tpu.vector_store %arg8[%c0_62, %c0_63], %103 {strides = array<i32>} : memref<200x256xf32, #tpu.memory_space<vmem>>, vector<200x256xf32>,
    return
  }
  func.func @transform_0(%arg0: i32) -> (i32, i32) {
    %c0_i32 = arith.constant 0 : i32
    %c0_i32_0 = arith.constant 0 : i32
    return %arg0, %c0_i32 : i32, i32
  }
  func.func @transform_1(%arg0: i32) -> (i32, i32) {
    %c0_i32 = arith.constant 0 : i32
    %c0_i32_0 = arith.constant 0 : i32
    %c0_i32_1 = arith.constant 0 : i32
    return %c0_i32, %c0_i32_0 : i32, i32
  }
  func.func @transform_2(%arg0: i32) -> (i32, i32) {
    %c0_i32 = arith.constant 0 : i32
    %c0_i32_0 = arith.constant 0 : i32
    %c0_i32_1 = arith.constant 0 : i32
    return %c0_i32, %c0_i32_0 : i32, i32
  }
  func.func @transform_3(%arg0: i32) -> (i32, i32) {
    %c0_i32 = arith.constant 0 : i32
    %c0_i32_0 = arith.constant 0 : i32
    %c0_i32_1 = arith.constant 0 : i32
    return %c0_i32, %c0_i32_0 : i32, i32
  }
  func.func @transform_4(%arg0: i32) -> (i32, i32) {
    %c0_i32 = arith.constant 0 : i32
    %c0_i32_0 = arith.constant 0 : i32
    %c0_i32_1 = arith.constant 0 : i32
    return %c0_i32, %c0_i32_0 : i32, i32
  }
  func.func @transform_5(%arg0: i32) -> (i32, i32) {
    %c0_i32 = arith.constant 0 : i32
    %c0_i32_0 = arith.constant 0 : i32
    %c0_i32_1 = arith.constant 0 : i32
    return %c0_i32, %c0_i32_0 : i32, i32
  }
  func.func @transform_6(%arg0: i32) -> (i32, i32) {
    %c0_i32 = arith.constant 0 : i32
    %c0_i32_0 = arith.constant 0 : i32
    %c0_i32_1 = arith.constant 0 : i32
    return %c0_i32, %c0_i32_0 : i32, i32
  }
  func.func @transform_7(%arg0: i32) -> (i32, i32) {
    %c0_i32 = arith.constant 0 : i32
    %c0_i32_0 = arith.constant 0 : i32
    return %arg0, %c0_i32 : i32, i32
  }
}

</mosaic_0001>

<llo_original>
// kernel: tpu_custom_call.1
$region0: #{tpu_custom_call.1}
  #allocation0 [shape = 'u32[]', space=smem, size = 0x4, offset = 0x4, fixed_abs, tag = 'smem constant byte address 0x4 - core index']
  #allocation1 [shape = 'u32[72,128]{1,0:T(1,128)}', space=vmem, size = 0x9000, scoped, tag = 'internal scratch']
  #allocation2 [shape = 'f32[200,256]{1,0:T(8,128)}', space=vmem, size = 0x32000, scoped, tag = 'scratch operand']
  %s0 = inlined_call_operand.hbm [shape: f32[400,256], index: 0, kind: input, shape index: {}]
  %s1 = inlined_call_operand.hbm [shape: f32[1,256], index: 1, kind: input, shape index: {}]
  %s2 = inlined_call_operand.hbm [shape: f32[1,256], index: 2, kind: input, shape index: {}]
  %s3 = inlined_call_operand.hbm [shape: bf16[256,768], index: 3, kind: input, shape index: {}]
  %s4 = inlined_call_operand.hbm [shape: f32[1,768], index: 4, kind: input, shape index: {}]
  %s5 = inlined_call_operand.hbm [shape: bf16[768,256], index: 5, kind: input, shape index: {}]
  %s6 = inlined_call_operand.vmem [shape: f32[1,256], index: 6, kind: input, shape index: {}]
  %s7 = inlined_call_operand.hbm [shape: f32[400,256], index: 7, kind: output, shape index: {}]
  %s8 = sld [smem:[#allocation0]]
  $region85: #{tpu_custom_call.1} parent=0
    _
  %s10 = ssub.s32 1, %s8
  %s11 = scalar_select 0, %s10, %s8
  $region1: #{tpu_custom_call.1} parent=0
    #allocation3 [shape = 'u8[409600]{0}', space=vmem, size = 0x64000, scoped, tag = 'input window, operand 0']
    #allocation4 [shape = 's32[2]{0}', space=sflag, size = 0x8, scoped, tag = 'scoped memory for tpu_custom_call.1']
    #allocation5 [shape = 's32[2]{0}', space=sflag, size = 0x8, scoped, tag = 'scoped memory for tpu_custom_call.1']
    #allocation6 [shape = 'u8[1024]{0}', space=vmem, size = 0x400, scoped, tag = 'input window, operand 1, single buffered']
    #allocation7 [shape = 's32[1]{0}', space=sflag, size = 0x4, scoped, tag = 'scoped memory for tpu_custom_call.1']
    #allocation8 [shape = 'u8[1024]{0}', space=vmem, size = 0x400, scoped, tag = 'input window, operand 2, single buffered']
    #allocation9 [shape = 'u8[393216]{0}', space=vmem, size = 0x60000, scoped, tag = 'input window, operand 3, single buffered']
    #allocation10 [shape = 's32[1]{0}', space=sflag, size = 0x4, scoped, tag = 'scoped memory for tpu_custom_call.1']
    #allocation11 [shape = 'u8[3072]{0}', space=vmem, size = 0xc00, scoped, tag = 'input window, operand 4, single buffered']
    #allocation12 [shape = 'u8[393216]{0}', space=vmem, size = 0x60000, scoped, tag = 'input window, operand 5, single buffered']
    #allocation13 [shape = 's32[1]{0}', space=sflag, size = 0x4, scoped, tag = 'scoped memory for tpu_custom_call.1']
    #allocation14 [shape = 'u8[409600]{0}', space=vmem, size = 0x64000, scoped, tag = 'output window, operand 0']
    %12 = vsyncpa [#allocation4], 0
    %s13 = scalar_lea.sflag [#allocation4], 1
    %14 = vsyncpa %s13, 0
    %15 = vsyncpa [#allocation7], 0
    %16 = vsyncpa [#allocation10], 0
    %17 = vsyncpa [#allocation13], 0
    %18 = vsyncpa [#allocation5], 0
    %s19 = scalar_lea.sflag [#allocation5], 1
    %20 = vsyncpa %s19, 0
    loop: start=0, step=1, limit=4
    $region2: #{tpu_custom_call.1} parent=1 // loop_pre_header
      _
    $region3: #{tpu_custom_call.1} parent=1 // loop_header
      %s22 = sphi 0, %s26
      %p23 = scmp.ge.s32.totalorder %s22, 4
      %s32 = sphi 0, %s34
      %s35 = sphi 0, %s32
      %s36 = sphi 0, %s35
      %s52 = sphi 0, %s36
      %s56 = sphi 0, %s56
      %s58 = sphi 0, %s56
      %s59 = sphi 0, %s58
      %s73 = sphi 0, %s59
      %s77 = sphi 0, %s77
      %s79 = sphi 0, %s77
      %s80 = sphi 0, %s79
      %s94 = sphi 0, %s80
      %s98 = sphi 0, %s98
      %s100 = sphi 0, %s98
      %s101 = sphi 0, %s100
      %s115 = sphi 0, %s101
      %s119 = sphi 0, %s119
      %s121 = sphi 0, %s119
      %s122 = sphi 0, %s121
      %s136 = sphi 0, %s122
      %s140 = sphi 0, %s140
      %s142 = sphi 0, %s140
      %s143 = sphi 0, %s142
      %s157 = sphi 0, %s143
      %s161 = sphi 0, %s161
      %s163 = sphi 0, %s161
      %s164 = sphi 0, %s163
      %s178 = sphi 0, %s164
      %s184 = sphi 0, %s186
      %s187 = sphi 0, %s184
      %s188 = sphi 0, %s187
      %s204 = sphi 0, %s188
    $region4: #{tpu_custom_call.1} parent=1 // loop_header_branch
      %25 = sbr.rel (%p23) target = $region8
    $region5: #{tpu_custom_call.1} parent=1 // loop_body
      %s27 = ssub.s32 %s22, 1
      %s28 = ssub.s32 %s22, 2
      %s29 = sadd.s32 %s22, 1
      %s30 = ssub.s32 %s22, %s29
      %p31 = scmp.eq.s32.totalorder %s30, 0
      %s33 = sadd.s32 %s32, 1
      %s34 = scalar_select %p31, %s32, %s33
      %p37 = pneg %p31
      %p38 = scmp.eq.s32.totalorder %s22, 1
      %p39 = por %p37, %p38
      %p40 = scmp.ne.s32.totalorder %s32, %s35
      %p41 = scmp.eq.s32.totalorder %s22, 0
      %p42 = por %p40, %p41
      %p43 = scmp.ne.s32.totalorder %s32, %s35
      %p44 = scmp.eq.s32.totalorder %s27, 1
      %p45 = por %p43, %p44
      %p46 = scmp.ne.s32.totalorder %s35, %s36
      %p47 = scmp.eq.s32.totalorder %s27, 0
      %p48 = por %p46, %p47
      %p49 = scmp.ne.s32.totalorder %s35, %s36
      %p50 = scmp.eq.s32.totalorder %s28, 1
      %p51 = por %p49, %p50
      %p53 = scmp.ne.s32.totalorder %s36, %s52
      %p54 = scmp.eq.s32.totalorder %s28, 0
      %p55 = por %p53, %p54
      %s57 = sadd.s32 %s56, 1
      %p60 = scmp.eq.s32.totalorder %s22, 1
      %p61 = scmp.ne.s32.totalorder %s56, %s58
      %p62 = scmp.eq.s32.totalorder %s22, 0
      %p63 = por %p61, %p62
      %p64 = scmp.ne.s32.totalorder %s56, %s58
      %p65 = scmp.eq.s32.totalorder %s27, 1
      %p66 = por %p64, %p65
      %p67 = scmp.ne.s32.totalorder %s58, %s59
      %p68 = scmp.eq.s32.totalorder %s27, 0
      %p69 = por %p67, %p68
      %p70 = scmp.ne.s32.totalorder %s58, %s59
      %p71 = scmp.eq.s32.totalorder %s28, 1
      %p72 = por %p70, %p71
      %p74 = scmp.ne.s32.totalorder %s59, %s73
      %p75 = scmp.eq.s32.totalorder %s28, 0
      %p76 = por %p74, %p75
      %s78 = sadd.s32 %s77, 1
      %p81 = scmp.eq.s32.totalorder %s22, 1
      %p82 = scmp.ne.s32.totalorder %s77, %s79
      %p83 = scmp.eq.s32.totalorder %s22, 0
      %p84 = por %p82, %p83
      %p85 = scmp.ne.s32.totalorder %s77, %s79
      %p86 = scmp.eq.s32.totalorder %s27, 1
      %p87 = por %p85, %p86
      %p88 = scmp.ne.s32.totalorder %s79, %s80
      %p89 = scmp.eq.s32.totalorder %s27, 0
      %p90 = por %p88, %p89
      %p91 = scmp.ne.s32.totalorder %s79, %s80
      %p92 = scmp.eq.s32.totalorder %s28, 1
      %p93 = por %p91, %p92
      %p95 = scmp.ne.s32.totalorder %s80, %s94
      %p96 = scmp.eq.s32.totalorder %s28, 0
      %p97 = por %p95, %p96
      %s99 = sadd.s32 %s98, 1
      %p102 = scmp.eq.s32.totalorder %s22, 1
      %p103 = scmp.ne.s32.totalorder %s98, %s100
      %p104 = scmp.eq.s32.totalorder %s22, 0
      %p105 = por %p103, %p104
      %p106 = scmp.ne.s32.totalorder %s98, %s100
      %p107 = scmp.eq.s32.totalorder %s27, 1
      %p108 = por %p106, %p107
      %p109 = scmp.ne.s32.totalorder %s100, %s101
      %p110 = scmp.eq.s32.totalorder %s27, 0
      %p111 = por %p109, %p110
      %p112 = scmp.ne.s32.totalorder %s100, %s101
      %p113 = scmp.eq.s32.totalorder %s28, 1
      %p114 = por %p112, %p113
      %p116 = scmp.ne.s32.totalorder %s101, %s115
      %p117 = scmp.eq.s32.totalorder %s28, 0
      %p118 = por %p116, %p117
      %s120 = sadd.s32 %s119, 1
      %p123 = scmp.eq.s32.totalorder %s22, 1
      %p124 = scmp.ne.s32.totalorder %s119, %s121
      %p125 = scmp.eq.s32.totalorder %s22, 0
      %p126 = por %p124, %p125
      %p127 = scmp.ne.s32.totalorder %s119, %s121
      %p128 = scmp.eq.s32.totalorder %s27, 1
      %p129 = por %p127, %p128
      %p130 = scmp.ne.s32.totalorder %s121, %s122
      %p131 = scmp.eq.s32.totalorder %s27, 0
      %p132 = por %p130, %p131
      %p133 = scmp.ne.s32.totalorder %s121, %s122
      %p134 = scmp.eq.s32.totalorder %s28, 1
      %p135 = por %p133, %p134
      %p137 = scmp.ne.s32.totalorder %s122, %s136
      %p138 = scmp.eq.s32.totalorder %s28, 0
      %p139 = por %p137, %p138
      %s141 = sadd.s32 %s140, 1
      %p144 = scmp.eq.s32.totalorder %s22, 1
      %p145 = scmp.ne.s32.totalorder %s140, %s142
      %p146 = scmp.eq.s32.totalorder %s22, 0
      %p147 = por %p145, %p146
      %p148 = scmp.ne.s32.totalorder %s140, %s142
      %p149 = scmp.eq.s32.totalorder %s27, 1
      %p150 = por %p148, %p149
      %p151 = scmp.ne.s32.totalorder %s142, %s143
      %p152 = scmp.eq.s32.totalorder %s27, 0
      %p153 = por %p151, %p152
      %p154 = scmp.ne.s32.totalorder %s142, %s143
      %p155 = scmp.eq.s32.totalorder %s28, 1
      %p156 = por %p154, %p155
      %p158 = scmp.ne.s32.totalorder %s143, %s157
      %p159 = scmp.eq.s32.totalorder %s28, 0
      %p160 = por %p158, %p159
      %s162 = sadd.s32 %s161, 1
      %p165 = scmp.eq.s32.totalorder %s22, 1
      %p166 = scmp.ne.s32.totalorder %s161, %s163
      %p167 = scmp.eq.s32.totalorder %s22, 0
      %p168 = por %p166, %p167
      %p169 = scmp.ne.s32.totalorder %s161, %s163
      %p170 = scmp.eq.s32.totalorder %s27, 1
      %p171 = por %p169, %p170
      %p172 = scmp.ne.s32.totalorder %s163, %s164
      %p173 = scmp.eq.s32.totalorder %s27, 0
      %p174 = por %p172, %p173
      %p175 = scmp.ne.s32.totalorder %s163, %s164
      %p176 = scmp.eq.s32.totalorder %s28, 1
      %p177 = por %p175, %p176
      %p179 = scmp.ne.s32.totalorder %s164, %s178
      %p180 = scmp.eq.s32.totalorder %s28, 0
      %p181 = por %p179, %p180
      %s182 = ssub.s32 %s22, %s29
      %p183 = scmp.eq.s32.totalorder %s182, 0
      %s185 = sadd.s32 %s184, 1
      %s186 = scalar_select %p183, %s184, %s185
      %p189 = pneg %p183
      %p190 = scmp.eq.s32.totalorder %s22, 1
      %p191 = por %p189, %p190
      %p192 = scmp.ne.s32.totalorder %s184, %s187
      %p193 = scmp.eq.s32.totalorder %s22, 0
      %p194 = por %p192, %p193
      %p195 = scmp.ne.s32.totalorder %s184, %s187
      %p196 = scmp.eq.s32.totalorder %s27, 1
      %p197 = por %p195, %p196
      %p198 = scmp.ne.s32.totalorder %s187, %s188
      %p199 = scmp.eq.s32.totalorder %s27, 0
      %p200 = por %p198, %p199
      %p201 = scmp.ne.s32.totalorder %s187, %s188
      %p202 = scmp.eq.s32.totalorder %s28, 1
      %p203 = por %p201, %p202
      %p205 = scmp.ne.s32.totalorder %s188, %s204
      %p206 = scmp.eq.s32.totalorder %s28, 0
      %p207 = por %p205, %p206
      %p208 = scmp.le.s32.totalorder 1, %s22
      %p209 = scmp.lt.s32.totalorder %s22, 3
      %p210 = pnand %p208, %p209
      %p211 = pneg %p210
      // Predicated region
      $region9: #{tpu_custom_call.1} parent=5 // pred_check
        _
      $region10: #{tpu_custom_call.1} parent=5 // pred_check_branch
        %213 = sbr.rel (%p210) target = $region12
      $region11: #{tpu_custom_call.1} parent=5 // pred_region
        %s214 = ssub.s32 %s22, 1
        // Predicated region
        $region13: #{tpu_custom_call.1} parent=11 // pred_check
          %p215 = pneg %p69
        $region14: #{tpu_custom_call.1} parent=11 // pred_check_branch
          %217 = sbr.rel (%p215) target = $region16
        $region15: #{tpu_custom_call.1} parent=11 // pred_region
          %219 = vsyncadd [#allocation7], 0
          %s221 = sshll.u32 %s1, 4
          %s222 = int_to_ptr.hbm [resolvable:$true] %s221
          %s223 = sshll.u32 [#allocation6], 4
          %s224 = int_to_ptr.vmem [resolvable:$true] %s223
          %226 = dma.hbm_to_vmem [thread:$0]  %s222, 32, %s224, [#allocation7]
        $region16: #{tpu_custom_call.1} parent=11 // pred_fallthru
          _
        // Predicated region
        $region17: #{tpu_custom_call.1} parent=11 // pred_check
          %p227 = pneg %p90
        $region18: #{tpu_custom_call.1} parent=11 // pred_check_branch
          %229 = sbr.rel (%p227) target = $region20
        $region19: #{tpu_custom_call.1} parent=11 // pred_region
          %231 = vsyncadd [#allocation7], 0
          %s233 = sshll.u32 %s2, 4
          %s234 = int_to_ptr.hbm [resolvable:$true] %s233
          %s235 = sshll.u32 [#allocation8], 4
          %s236 = int_to_ptr.vmem [resolvable:$true] %s235
          %238 = dma.hbm_to_vmem [thread:$0]  %s234, 32, %s236, [#allocation7]
        $region20: #{tpu_custom_call.1} parent=11 // pred_fallthru
          _
        // Predicated region
        $region21: #{tpu_custom_call.1} parent=11 // pred_check
          %p239 = pneg %p111
        $region22: #{tpu_custom_call.1} parent=11 // pred_check_branch
          %241 = sbr.rel (%p239) target = $region24
        $region23: #{tpu_custom_call.1} parent=11 // pred_region
          %243 = vsyncadd [#allocation10], 0
          %s244 = sshll.u32 %s3, 4
          %s245 = int_to_ptr.hbm [resolvable:$true] %s244
          %s246 = sshll.u32 [#allocation9], 4
          %s247 = int_to_ptr.vmem [resolvable:$true] %s246
          %252 = dma.hbm_to_vmem [thread:$0]  %s245, 12288, %s247, [#allocation10], 384, 384, 24
        $region24: #{tpu_custom_call.1} parent=11 // pred_fallthru
          _
        // Predicated region
        $region25: #{tpu_custom_call.1} parent=11 // pred_check
          %p253 = pneg %p132
        $region26: #{tpu_custom_call.1} parent=11 // pred_check_branch
          %255 = sbr.rel (%p253) target = $region28
        $region27: #{tpu_custom_call.1} parent=11 // pred_region
          %257 = vsyncadd [#allocation10], 0
          %s259 = sshll.u32 %s4, 4
          %s260 = int_to_ptr.hbm [resolvable:$true] %s259
          %s261 = sshll.u32 [#allocation11], 4
          %s262 = int_to_ptr.vmem [resolvable:$true] %s261
          %264 = dma.hbm_to_vmem [thread:$0]  %s260, 96, %s262, [#allocation10]
        $region28: #{tpu_custom_call.1} parent=11 // pred_fallthru
          _
        // Predicated region
        $region29: #{tpu_custom_call.1} parent=11 // pred_check
          %p265 = pneg %p153
        $region30: #{tpu_custom_call.1} parent=11 // pred_check_branch
          %267 = sbr.rel (%p265) target = $region32
        $region31: #{tpu_custom_call.1} parent=11 // pred_region
          %269 = vsyncadd [#allocation13], 0
          %s270 = sshll.u32 %s5, 4
          %s271 = int_to_ptr.hbm [resolvable:$true] %s270
          %s272 = sshll.u32 [#allocation12], 4
          %s273 = int_to_ptr.vmem [resolvable:$true] %s272
          %278 = dma.hbm_to_vmem [thread:$0]  %s271, 12288, %s273, [#allocation13], 128, 128, 8
        $region32: #{tpu_custom_call.1} parent=11 // pred_fallthru
          _
        // Predicated region
        $region33: #{tpu_custom_call.1} parent=11 // pred_check
          %p279 = pneg %p174
        $region34: #{tpu_custom_call.1} parent=11 // pred_check_branch
          %281 = sbr.rel (%p279) target = $region36
        $region35: #{tpu_custom_call.1} parent=11 // pred_region
          _
        $region36: #{tpu_custom_call.1} parent=11 // pred_fallthru
          _
      $region12: #{tpu_custom_call.1} parent=5 // pred_fallthru
        _
      %p282 = scmp.lt.s32.totalorder %s22, 2
      // Predicated region
      $region37: #{tpu_custom_call.1} parent=5 // pred_check
        %p283 = pneg %p282
      $region38: #{tpu_custom_call.1} parent=5 // pred_check_branch
        %285 = sbr.rel (%p283) target = $region40
      $region39: #{tpu_custom_call.1} parent=5 // pred_region
        // Predicated region
        $region41: #{tpu_custom_call.1} parent=39 // pred_check
          %p286 = pneg %p42
        $region42: #{tpu_custom_call.1} parent=39 // pred_check_branch
          %288 = sbr.rel (%p286) target = $region44
        $region43: #{tpu_custom_call.1} parent=39 // pred_region
          %s289 = sand.u32 %s32, 1
          %s290 = scalar_lea.sflag [#allocation4], %s289
          %s291 = sand.u32 %s32, 1
          %s292 = smul.addr %s291, 400
          %s293 = scalar_lea.vmem [#allocation3], %s292
          %s294 = smul.u32 25, %s22
          %296 = vsyncadd %s290, 0
          %s297 = smul.addr %s294, 2
          %s298 = smul.addr %s297, 8
          %s299 = scalar_lea.hbm %s0, %s298
          %s300 = sshll.u32 %s299, 4
          %s301 = int_to_ptr.hbm [resolvable:$true] %s300
          %s302 = sshll.u32 %s293, 4
          %s303 = int_to_ptr.vmem [resolvable:$true] %s302
          %308 = dma.hbm_to_vmem [thread:$0]  %s301, 6400, %s303, %s290, 256, 256, 16
        $region44: #{tpu_custom_call.1} parent=39 // pred_fallthru
          _
      $region40: #{tpu_custom_call.1} parent=5 // pred_fallthru
        _
      %p309 = scmp.le.s32.totalorder 1, %s22
      %p310 = scmp.lt.s32.totalorder %s22, 3
      %p311 = pnand %p309, %p310
      %p312 = pneg %p311
      // Predicated region
      $region45: #{tpu_custom_call.1} parent=5 // pred_check
        _
      $region46: #{tpu_custom_call.1} parent=5 // pred_check_branch
        %314 = sbr.rel (%p311) target = $region48
      $region47: #{tpu_custom_call.1} parent=5 // pred_region
        %s315 = ssub.s32 %s22, 1
        %s316 = sand.u32 %s35, 1
        %s317 = scalar_lea.sflag [#allocation4], %s316
        %s318 = sand.u32 %s35, 1
        %s319 = smul.addr %s318, 400
        %s320 = scalar_lea.vmem [#allocation3], %s319
        // Predicated region
        $region49: #{tpu_custom_call.1} parent=47 // pred_check
          %p321 = pneg %p48
        $region50: #{tpu_custom_call.1} parent=47 // pred_check_branch
          %323 = sbr.rel (%p321) target = $region52
        $region51: #{tpu_custom_call.1} parent=47 // pred_region
          %325 = dma.done %s317, 6400
        $region52: #{tpu_custom_call.1} parent=47 // pred_fallthru
          _
        // Predicated region
        $region53: #{tpu_custom_call.1} parent=47 // pred_check
          %p326 = pneg %p69
        $region54: #{tpu_custom_call.1} parent=47 // pred_check_branch
          %328 = sbr.rel (%p326) target = $region56
        $region55: #{tpu_custom_call.1} parent=47 // pred_region
          %330 = dma.done [#allocation7], 32
        $region56: #{tpu_custom_call.1} parent=47 // pred_fallthru
          _
        // Predicated region
        $region57: #{tpu_custom_call.1} parent=47 // pred_check
          %p331 = pneg %p90
        $region58: #{tpu_custom_call.1} parent=47 // pred_check_branch
          %333 = sbr.rel (%p331) target = $region60
        $region59: #{tpu_custom_call.1} parent=47 // pred_region
          %335 = dma.done [#allocation7], 32
        $region60: #{tpu_custom_call.1} parent=47 // pred_fallthru
          _
        // Predicated region
        $region61: #{tpu_custom_call.1} parent=47 // pred_check
          %p336 = pneg %p111
        $region62: #{tpu_custom_call.1} parent=47 // pred_check_branch
          %338 = sbr.rel (%p336) target = $region64
        $region63: #{tpu_custom_call.1} parent=47 // pred_region
          %340 = dma.done [#allocation10], 12288
        $region64: #{tpu_custom_call.1} parent=47 // pred_fallthru
          _
        // Predicated region
        $region65: #{tpu_custom_call.1} parent=47 // pred_check
          %p341 = pneg %p132
        $region66: #{tpu_custom_call.1} parent=47 // pred_check_branch
          %343 = sbr.rel (%p341) target = $region68
        $region67: #{tpu_custom_call.1} parent=47 // pred_region
          %345 = dma.done [#allocation10], 96
        $region68: #{tpu_custom_call.1} parent=47 // pred_fallthru
          _
        // Predicated region
        $region69: #{tpu_custom_call.1} parent=47 // pred_check
          %p346 = pneg %p153
        $region70: #{tpu_custom_call.1} parent=47 // pred_check_branch
          %348 = sbr.rel (%p346) target = $region72
        $region71: #{tpu_custom_call.1} parent=47 // pred_region
          %350 = dma.done [#allocation13], 12288
        $region72: #{tpu_custom_call.1} parent=47 // pred_fallthru
          _
        %s351 = sand.u32 %s35, 1
        %s352 = scalar_lea.sflag [#allocation4], %s351
        %s353 = sand.u32 %s35, 1
        %s354 = smul.addr %s353, 400
        %s355 = scalar_lea.vmem [#allocation3], %s354
        %p356 = pneg %p48
        %p357 = pneg %p45
        %p358 = pneg %p69
        %p359 = pneg %p66
        %p360 = pneg %p90
        %p361 = pneg %p87
        %p362 = pneg %p111
        %p363 = pneg %p108
        %p364 = pneg %p132
        %p365 = pneg %p129
        %p366 = pneg %p153
        %p367 = pneg %p150
        %p368 = pneg %p174
        %p369 = pneg %p171
        %p370 = pneg %p200
        %p371 = pneg %p197
        %s372 = sand.u32 %s187, 1
        %s373 = scalar_lea.sflag [#allocation5], %s372
        %s374 = sand.u32 %s187, 1
        %s375 = smul.addr %s374, 400
        %s376 = scalar_lea.vmem [#allocation14], %s375
        %s377 = smul.u32 25, %s27
        %s378 = smul.u32 25, %s27
        %v379 = vld [vmem:[%s320] sm:$0xff]
        %v380 = vld [vmem:[%s320 + $0x8] sm:$0xff]
        %v381 = vld [vmem:[%s320 + $0x10] sm:$0xff]
        %v382 = vld [vmem:[%s320 + $0x18] sm:$0xff]
        %v383 = vld [vmem:[%s320 + $0x20] sm:$0xff]
        %v384 = vld [vmem:[%s320 + $0x28] sm:$0xff]
        %v385 = vld [vmem:[%s320 + $0x30] sm:$0xff]
        %v386 = vld [vmem:[%s320 + $0x38] sm:$0xff]
        %v387 = vld [vmem:[%s320 + $0x40] sm:$0xff]
        %v388 = vld [vmem:[%s320 + $0x48] sm:$0xff]
        %v389 = vld [vmem:[%s320 + $0x50] sm:$0xff]
        %v390 = vld [vmem:[%s320 + $0x58] sm:$0xff]
        %v391 = vld [vmem:[%s320 + $0x60] sm:$0xff]
        %v392 = vld [vmem:[%s320 + $0x68] sm:$0xff]
        %v393 = vld [vmem:[%s320 + $0x70] sm:$0xff]
        %v394 = vld [vmem:[%s320 + $0x78] sm:$0xff]
        %v395 = vld [vmem:[%s320 + $0x80] sm:$0xff]
        %v396 = vld [vmem:[%s320 + $0x88] sm:$0xff]
        %v397 = vld [vmem:[%s320 + $0x90] sm:$0xff]
        %v398 = vld [vmem:[%s320 + $0x98] sm:$0xff]
        %v399 = vld [vmem:[%s320 + $0xa0] sm:$0xff]
        %v400 = vld [vmem:[%s320 + $0xa8] sm:$0xff]
        %v401 = vld [vmem:[%s320 + $0xb0] sm:$0xff]
        %v402 = vld [vmem:[%s320 + $0xb8] sm:$0xff]
        %v403 = vld [vmem:[%s320 + $0xc0] sm:$0xff]
        %v404 = vld [vmem:[%s320 + $0xc8] sm:$0xff]
        %v405 = vld [vmem:[%s320 + $0xd0] sm:$0xff]
        %v406 = vld [vmem:[%s320 + $0xd8] sm:$0xff]
        %v407 = vld [vmem:[%s320 + $0xe0] sm:$0xff]
        %v408 = vld [vmem:[%s320 + $0xe8] sm:$0xff]
        %v409 = vld [vmem:[%s320 + $0xf0] sm:$0xff]
        %v410 = vld [vmem:[%s320 + $0xf8] sm:$0xff]
        %v411 = vld [vmem:[%s320 + $0x100] sm:$0xff]
        %v412 = vld [vmem:[%s320 + $0x108] sm:$0xff]
        %v413 = vld [vmem:[%s320 + $0x110] sm:$0xff]
        %v414 = vld [vmem:[%s320 + $0x118] sm:$0xff]
        %v415 = vld [vmem:[%s320 + $0x120] sm:$0xff]
        %v416 = vld [vmem:[%s320 + $0x128] sm:$0xff]
        %v417 = vld [vmem:[%s320 + $0x130] sm:$0xff]
        %v418 = vld [vmem:[%s320 + $0x138] sm:$0xff]
        %v419 = vld [vmem:[%s320 + $0x140] sm:$0xff]
        %v420 = vld [vmem:[%s320 + $0x148] sm:$0xff]
        %v421 = vld [vmem:[%s320 + $0x150] sm:$0xff]
        %v422 = vld [vmem:[%s320 + $0x158] sm:$0xff]
        %v423 = vld [vmem:[%s320 + $0x160] sm:$0xff]
        %v424 = vld [vmem:[%s320 + $0x168] sm:$0xff]
        %v425 = vld [vmem:[%s320 + $0x170] sm:$0xff]
        %v426 = vld [vmem:[%s320 + $0x178] sm:$0xff]
        %v427 = vld [vmem:[%s320 + $0x180] sm:$0xff]
        %v428 = vld [vmem:[%s320 + $0x188] sm:$0xff]
        %v429 = vadd.f32 %v379, %v380
        %430 = vadd.xlane.f32.xlu0 %v429
        %v431 = vpop.xlane.xlu0 %430
        %v432 = vadd.f32 %v381, %v382
        %433 = vadd.xlane.f32.xlu0 %v432
        %v434 = vpop.xlane.xlu0 %433
        %v435 = vadd.f32 %v383, %v384
        %436 = vadd.xlane.f32.xlu0 %v435
        %v437 = vpop.xlane.xlu0 %436
        %v438 = vadd.f32 %v385, %v386
        %439 = vadd.xlane.f32.xlu0 %v438
        %v440 = vpop.xlane.xlu0 %439
        %v441 = vadd.f32 %v387, %v388
        %442 = vadd.xlane.f32.xlu0 %v441
        %v443 = vpop.xlane.xlu0 %442
        %v444 = vadd.f32 %v389, %v390
        %445 = vadd.xlane.f32.xlu0 %v444
        %v446 = vpop.xlane.xlu0 %445
        %v447 = vadd.f32 %v391, %v392
        %448 = vadd.xlane.f32.xlu0 %v447
        %v449 = vpop.xlane.xlu0 %448
        %v450 = vadd.f32 %v393, %v394
        %451 = vadd.xlane.f32.xlu0 %v450
        %v452 = vpop.xlane.xlu0 %451
        %v453 = vadd.f32 %v395, %v396
        %454 = vadd.xlane.f32.xlu0 %v453
        %v455 = vpop.xlane.xlu0 %454
        %v456 = vadd.f32 %v397, %v398
        %457 = vadd.xlane.f32.xlu0 %v456
        %v458 = vpop.xlane.xlu0 %457
        %v459 = vadd.f32 %v399, %v400
        %460 = vadd.xlane.f32.xlu0 %v459
        %v461 = vpop.xlane.xlu0 %460
        %v462 = vadd.f32 %v401, %v402
        %463 = vadd.xlane.f32.xlu0 %v462
        %v464 = vpop.xlane.xlu0 %463
        %v465 = vadd.f32 %v403, %v404
        %466 = vadd.xlane.f32.xlu0 %v465
        %v467 = vpop.xlane.xlu0 %466
        %v468 = vadd.f32 %v405, %v406
        %469 = vadd.xlane.f32.xlu0 %v468
        %v470 = vpop.xlane.xlu0 %469
        %v471 = vadd.f32 %v407, %v408
        %472 = vadd.xlane.f32.xlu0 %v471
        %v473 = vpop.xlane.xlu0 %472
        %v474 = vadd.f32 %v409, %v410
        %475 = vadd.xlane.f32.xlu0 %v474
        %v476 = vpop.xlane.xlu0 %475
        %v477 = vadd.f32 %v411, %v412
        %478 = vadd.xlane.f32.xlu0 %v477
        %v479 = vpop.xlane.xlu0 %478
        %v480 = vadd.f32 %v413, %v414
        %481 = vadd.xlane.f32.xlu0 %v480
        %v482 = vpop.xlane.xlu0 %481
        %v483 = vadd.f32 %v415, %v416
        %484 = vadd.xlane.f32.xlu0 %v483
        %v485 = vpop.xlane.xlu0 %484
        %v486 = vadd.f32 %v417, %v418
        %487 = vadd.xlane.f32.xlu0 %v486
        %v488 = vpop.xlane.xlu0 %487
        %v489 = vadd.f32 %v419, %v420
        %490 = vadd.xlane.f32.xlu0 %v489
        %v491 = vpop.xlane.xlu0 %490
        %v492 = vadd.f32 %v421, %v422
        %493 = vadd.xlane.f32.xlu0 %v492
        %v494 = vpop.xlane.xlu0 %493
        %v495 = vadd.f32 %v423, %v424
        %496 = vadd.xlane.f32.xlu0 %v495
        %v497 = vpop.xlane.xlu0 %496
        %v498 = vadd.f32 %v425, %v426
        %499 = vadd.xlane.f32.xlu0 %v498
        %v500 = vpop.xlane.xlu0 %499
        %v501 = vadd.f32 %v427, %v428
        %502 = vadd.xlane.f32.xlu0 %v501
        %v503 = vpop.xlane.xlu0 %502
        %v504 = vrcp.pop 256.0
        %v505 = vmul.f32 256.0, %v504
        %v506 = vsub.f32 1.0, %v505
        %v507 = vmul.f32 %v504, %v506
        %v508 = vadd.f32 %v504, %v507
        %vm509 = vweird.f32 %v504
        %v510 = vsel %vm509, %v504, %v508
        %v511 = vmul.f32 %v431, %v510
        %v512 = vmul.f32 %v434, %v510
        %v513 = vmul.f32 %v437, %v510
        %v514 = vmul.f32 %v440, %v510
        %v515 = vmul.f32 %v443, %v510
        %v516 = vmul.f32 %v446, %v510
        %v517 = vmul.f32 %v449, %v510
        %v518 = vmul.f32 %v452, %v510
        %v519 = vmul.f32 %v455, %v510
        %v520 = vmul.f32 %v458, %v510
        %v521 = vmul.f32 %v461, %v510
        %v522 = vmul.f32 %v464, %v510
        %v523 = vmul.f32 %v467, %v510
        %v524 = vmul.f32 %v470, %v510
        %v525 = vmul.f32 %v473, %v510
        %v526 = vmul.f32 %v476, %v510
        %v527 = vmul.f32 %v479, %v510
        %v528 = vmul.f32 %v482, %v510
        %v529 = vmul.f32 %v485, %v510
        %v530 = vmul.f32 %v488, %v510
        %v531 = vmul.f32 %v491, %v510
        %v532 = vmul.f32 %v494, %v510
        %v533 = vmul.f32 %v497, %v510
        %v534 = vmul.f32 %v500, %v510
        %v535 = vmul.f32 %v503, %v510
        %v536 = vmul.f32 %v379, %v379
        %v537 = vmul.f32 %v380, %v380
        %v538 = vmul.f32 %v381, %v381
        %v539 = vmul.f32 %v382, %v382
        %v540 = vmul.f32 %v383, %v383
        %v541 = vmul.f32 %v384, %v384
        %v542 = vmul.f32 %v385, %v385
        %v543 = vmul.f32 %v386, %v386
        %v544 = vmul.f32 %v387, %v387
        %v545 = vmul.f32 %v388, %v388
        %v546 = vmul.f32 %v389, %v389
        %v547 = vmul.f32 %v390, %v390
        %v548 = vmul.f32 %v391, %v391
        %v549 = vmul.f32 %v392, %v392
        %v550 = vmul.f32 %v393, %v393
        %v551 = vmul.f32 %v394, %v394
        %v552 = vmul.f32 %v395, %v395
        %v553 = vmul.f32 %v396, %v396
        %v554 = vmul.f32 %v397, %v397
        %v555 = vmul.f32 %v398, %v398
        %v556 = vmul.f32 %v399, %v399
        %v557 = vmul.f32 %v400, %v400
        %v558 = vmul.f32 %v401, %v401
        %v559 = vmul.f32 %v402, %v402
        %v560 = vmul.f32 %v403, %v403
        %v561 = vmul.f32 %v404, %v404
        %v562 = vmul.f32 %v405, %v405
        %v563 = vmul.f32 %v406, %v406
        %v564 = vmul.f32 %v407, %v407
        %v565 = vmul.f32 %v408, %v408
        %v566 = vmul.f32 %v409, %v409
        %v567 = vmul.f32 %v410, %v410
        %v568 = vmul.f32 %v411, %v411
        %v569 = vmul.f32 %v412, %v412
        %v570 = vmul.f32 %v413, %v413
        %v571 = vmul.f32 %v414, %v414
        %v572 = vmul.f32 %v415, %v415
        %v573 = vmul.f32 %v416, %v416
        %v574 = vmul.f32 %v417, %v417
        %v575 = vmul.f32 %v418, %v418
        %v576 = vmul.f32 %v419, %v419
        %v577 = vmul.f32 %v420, %v420
        %v578 = vmul.f32 %v421, %v421
        %v579 = vmul.f32 %v422, %v422
        %v580 = vmul.f32 %v423, %v423
        %v581 = vmul.f32 %v424, %v424
        %v582 = vmul.f32 %v425, %v425
        %v583 = vmul.f32 %v426, %v426
        %v584 = vmul.f32 %v427, %v427
        %v585 = vmul.f32 %v428, %v428
        %v586 = vadd.f32 %v536, %v537
        %587 = vadd.xlane.f32.xlu0 %v586
        %v588 = vpop.xlane.xlu0 %587
        %v589 = vadd.f32 %v538, %v539
        %590 = vadd.xlane.f32.xlu0 %v589
        %v591 = vpop.xlane.xlu0 %590
        %v592 = vadd.f32 %v540, %v541
        %593 = vadd.xlane.f32.xlu0 %v592
        %v594 = vpop.xlane.xlu0 %593
        %v595 = vadd.f32 %v542, %v543
        %596 = vadd.xlane.f32.xlu0 %v595
        %v597 = vpop.xlane.xlu0 %596
        %v598 = vadd.f32 %v544, %v545
        %599 = vadd.xlane.f32.xlu0 %v598
        %v600 = vpop.xlane.xlu0 %599
        %v601 = vadd.f32 %v546, %v547
        %602 = vadd.xlane.f32.xlu0 %v601
        %v603 = vpop.xlane.xlu0 %602
        %v604 = vadd.f32 %v548, %v549
        %605 = vadd.xlane.f32.xlu0 %v604
        %v606 = vpop.xlane.xlu0 %605
        %v607 = vadd.f32 %v550, %v551
        %608 = vadd.xlane.f32.xlu0 %v607
        %v609 = vpop.xlane.xlu0 %608
        %v610 = vadd.f32 %v552, %v553
        %611 = vadd.xlane.f32.xlu0 %v610
        %v612 = vpop.xlane.xlu0 %611
        %v613 = vadd.f32 %v554, %v555
        %614 = vadd.xlane.f32.xlu0 %v613
        %v615 = vpop.xlane.xlu0 %614
        %v616 = vadd.f32 %v556, %v557
        %617 = vadd.xlane.f32.xlu0 %v616
        %v618 = vpop.xlane.xlu0 %617
        %v619 = vadd.f32 %v558, %v559
        %620 = vadd.xlane.f32.xlu0 %v619
        %v621 = vpop.xlane.xlu0 %620
        %v622 = vadd.f32 %v560, %v561
        %623 = vadd.xlane.f32.xlu0 %v622
        %v624 = vpop.xlane.xlu0 %623
        %v625 = vadd.f32 %v562, %v563
        %626 = vadd.xlane.f32.xlu0 %v625
        %v627 = vpop.xlane.xlu0 %626
        %v628 = vadd.f32 %v564, %v565
        %629 = vadd.xlane.f32.xlu0 %v628
        %v630 = vpop.xlane.xlu0 %629
        %v631 = vadd.f32 %v566, %v567
        %632 = vadd.xlane.f32.xlu0 %v631
        %v633 = vpop.xlane.xlu0 %632
        %v634 = vadd.f32 %v568, %v569
        %635 = vadd.xlane.f32.xlu0 %v634
        %v636 = vpop.xlane.xlu0 %635
        %v637 = vadd.f32 %v570, %v571
        %638 = vadd.xlane.f32.xlu0 %v637
        %v639 = vpop.xlane.xlu0 %638
        %v640 = vadd.f32 %v572, %v573
        %641 = vadd.xlane.f32.xlu0 %v640
        %v642 = vpop.xlane.xlu0 %641
        %v643 = vadd.f32 %v574, %v575
        %644 = vadd.xlane.f32.xlu0 %v643
        %v645 = vpop.xlane.xlu0 %644
        %v646 = vadd.f32 %v576, %v577
        %647 = vadd.xlane.f32.xlu0 %v646
        %v648 = vpop.xlane.xlu0 %647
        %v649 = vadd.f32 %v578, %v579
        %650 = vadd.xlane.f32.xlu0 %v649
        %v651 = vpop.xlane.xlu0 %650
        %v652 = vadd.f32 %v580, %v581
        %653 = vadd.xlane.f32.xlu0 %v652
        %v654 = vpop.xlane.xlu0 %653
        %v655 = vadd.f32 %v582, %v583
        %656 = vadd.xlane.f32.xlu0 %v655
        %v657 = vpop.xlane.xlu0 %656
        %v658 = vadd.f32 %v584, %v585
        %659 = vadd.xlane.f32.xlu0 %v658
        %v660 = vpop.xlane.xlu0 %659
        %v661 = vmul.f32 %v588, %v510
        %v662 = vmul.f32 %v591, %v510
        %v663 = vmul.f32 %v594, %v510
        %v664 = vmul.f32 %v597, %v510
        %v665 = vmul.f32 %v600, %v510
        %v666 = vmul.f32 %v603, %v510
        %v667 = vmul.f32 %v606, %v510
        %v668 = vmul.f32 %v609, %v510
        %v669 = vmul.f32 %v612, %v510
        %v670 = vmul.f32 %v615, %v510
        %v671 = vmul.f32 %v618, %v510
        %v672 = vmul.f32 %v621, %v510
        %v673 = vmul.f32 %v624, %v510
        %v674 = vmul.f32 %v627, %v510
        %v675 = vmul.f32 %v630, %v510
        %v676 = vmul.f32 %v633, %v510
        %v677 = vmul.f32 %v636, %v510
        %v678 = vmul.f32 %v639, %v510
        %v679 = vmul.f32 %v642, %v510
        %v680 = vmul.f32 %v645, %v510
        %v681 = vmul.f32 %v648, %v510
        %v682 = vmul.f32 %v651, %v510
        %v683 = vmul.f32 %v654, %v510
        %v684 = vmul.f32 %v657, %v510
        %v685 = vmul.f32 %v660, %v510
        %v686 = vmul.f32 %v511, %v511
        %v687 = vmul.f32 %v512, %v512
        %v688 = vmul.f32 %v513, %v513
        %v689 = vmul.f32 %v514, %v514
        %v690 = vmul.f32 %v515, %v515
        %v691 = vmul.f32 %v516, %v516
        %v692 = vmul.f32 %v517, %v517
        %v693 = vmul.f32 %v518, %v518
        %v694 = vmul.f32 %v519, %v519
        %v695 = vmul.f32 %v520, %v520
        %v696 = vmul.f32 %v521, %v521
        %v697 = vmul.f32 %v522, %v522
        %v698 = vmul.f32 %v523, %v523
        %v699 = vmul.f32 %v524, %v524
        %v700 = vmul.f32 %v525, %v525
        %v701 = vmul.f32 %v526, %v526
        %v702 = vmul.f32 %v527, %v527
        %v703 = vmul.f32 %v528, %v528
        %v704 = vmul.f32 %v529, %v529
        %v705 = vmul.f32 %v530, %v530
        %v706 = vmul.f32 %v531, %v531
        %v707 = vmul.f32 %v532, %v532
        %v708 = vmul.f32 %v533, %v533
        %v709 = vmul.f32 %v534, %v534
        %v710 = vmul.f32 %v535, %v535
        %v711 = vsub.f32 %v661, %v686
        %v712 = vsub.f32 %v662, %v687
        %v713 = vsub.f32 %v663, %v688
        %v714 = vsub.f32 %v664, %v689
        %v715 = vsub.f32 %v665, %v690
        %v716 = vsub.f32 %v666, %v691
        %v717 = vsub.f32 %v667, %v692
        %v718 = vsub.f32 %v668, %v693
        %v719 = vsub.f32 %v669, %v694
        %v720 = vsub.f32 %v670, %v695
        %v721 = vsub.f32 %v671, %v696
        %v722 = vsub.f32 %v672, %v697
        %v723 = vsub.f32 %v673, %v698
        %v724 = vsub.f32 %v674, %v699
        %v725 = vsub.f32 %v675, %v700
        %v726 = vsub.f32 %v676, %v701
        %v727 = vsub.f32 %v677, %v702
        %v728 = vsub.f32 %v678, %v703
        %v729 = vsub.f32 %v679, %v704
        %v730 = vsub.f32 %v680, %v705
        %v731 = vsub.f32 %v681, %v706
        %v732 = vsub.f32 %v682, %v707
        %v733 = vsub.f32 %v683, %v708
        %v734 = vsub.f32 %v684, %v709
        %v735 = vsub.f32 %v685, %v710
        %v736 = vsub.f32 %v379, %v511
        %v737 = vsub.f32 %v380, %v511
        %v738 = vsub.f32 %v381, %v512
        %v739 = vsub.f32 %v382, %v512
        %v740 = vsub.f32 %v383, %v513
        %v741 = vsub.f32 %v384, %v513
        %v742 = vsub.f32 %v385, %v514
        %v743 = vsub.f32 %v386, %v514
        %v744 = vsub.f32 %v387, %v515
        %v745 = vsub.f32 %v388, %v515
        %v746 = vsub.f32 %v389, %v516
        %v747 = vsub.f32 %v390, %v516
        %v748 = vsub.f32 %v391, %v517
        %v749 = vsub.f32 %v392, %v517
        %v750 = vsub.f32 %v393, %v518
        %v751 = vsub.f32 %v394, %v518
        %v752 = vsub.f32 %v395, %v519
        %v753 = vsub.f32 %v396, %v519
        %v754 = vsub.f32 %v397, %v520
        %v755 = vsub.f32 %v398, %v520
        %v756 = vsub.f32 %v399, %v521
        %v757 = vsub.f32 %v400, %v521
        %v758 = vsub.f32 %v401, %v522
        %v759 = vsub.f32 %v402, %v522
        %v760 = vsub.f32 %v403, %v523
        %v761 = vsub.f32 %v404, %v523
        %v762 = vsub.f32 %v405, %v524
        %v763 = vsub.f32 %v406, %v524
        %v764 = vsub.f32 %v407, %v525
        %v765 = vsub.f32 %v408, %v525
        %v766 = vsub.f32 %v409, %v526
        %v767 = vsub.f32 %v410, %v526
        %v768 = vsub.f32 %v411, %v527
        %v769 = vsub.f32 %v412, %v527
        %v770 = vsub.f32 %v413, %v528
        %v771 = vsub.f32 %v414, %v528
        %v772 = vsub.f32 %v415, %v529
        %v773 = vsub.f32 %v416, %v529
        %v774 = vsub.f32 %v417, %v530
        %v775 = vsub.f32 %v418, %v530
        %v776 = vsub.f32 %v419, %v531
        %v777 = vsub.f32 %v420, %v531
        %v778 = vsub.f32 %v421, %v532
        %v779 = vsub.f32 %v422, %v532
        %v780 = vsub.f32 %v423, %v533
        %v781 = vsub.f32 %v424, %v533
        %v782 = vsub.f32 %v425, %v534
        %v783 = vsub.f32 %v426, %v534
        %v784 = vsub.f32 %v427, %v535
        %v785 = vsub.f32 %v428, %v535
        %v786 = vadd.f32 %v711, 1e-05
        %v787 = vadd.f32 %v712, 1e-05
        %v788 = vadd.f32 %v713, 1e-05
        %v789 = vadd.f32 %v714, 1e-05
        %v790 = vadd.f32 %v715, 1e-05
        %v791 = vadd.f32 %v716, 1e-05
        %v792 = vadd.f32 %v717, 1e-05
        %v793 = vadd.f32 %v718, 1e-05
        %v794 = vadd.f32 %v719, 1e-05
        %v795 = vadd.f32 %v720, 1e-05
        %v796 = vadd.f32 %v721, 1e-05
        %v797 = vadd.f32 %v722, 1e-05
        %v798 = vadd.f32 %v723, 1e-05
        %v799 = vadd.f32 %v724, 1e-05
        %v800 = vadd.f32 %v725, 1e-05
        %v801 = vadd.f32 %v726, 1e-05
        %v802 = vadd.f32 %v727, 1e-05
        %v803 = vadd.f32 %v728, 1e-05
        %v804 = vadd.f32 %v729, 1e-05
        %v805 = vadd.f32 %v730, 1e-05
        %v806 = vadd.f32 %v731, 1e-05
        %v807 = vadd.f32 %v732, 1e-05
        %v808 = vadd.f32 %v733, 1e-05
        %v809 = vadd.f32 %v734, 1e-05
        %v810 = vadd.f32 %v735, 1e-05
        %v811 = vrsqrt.pop %v786
        %v812 = vmul.f32 %v811, %v786
        %v813 = vmul.f32 %v812, %v811
        %v814 = vmul.f32 0.5, %v813
        %v815 = vsub.f32 1.5, %v814
        %v816 = vmul.f32 %v811, %v815
        %vm817 = vweird.f32 %v786
        %vm818 = vweird.f32 %v811
        %vm819 = vmor %vm817, %vm818
        %v820 = vsel %vm819, %v811, %v816
        %v821 = vrsqrt.pop %v787
        %v822 = vmul.f32 %v821, %v787
        %v823 = vmul.f32 %v822, %v821
        %v824 = vmul.f32 0.5, %v823
        %v825 = vsub.f32 1.5, %v824
        %v826 = vmul.f32 %v821, %v825
        %vm827 = vweird.f32 %v787
        %vm828 = vweird.f32 %v821
        %vm829 = vmor %vm827, %vm828
        %v830 = vsel %vm829, %v821, %v826
        %v831 = vrsqrt.pop %v788
        %v832 = vmul.f32 %v831, %v788
        %v833 = vmul.f32 %v832, %v831
        %v834 = vmul.f32 0.5, %v833
        %v835 = vsub.f32 1.5, %v834
        %v836 = vmul.f32 %v831, %v835
        %vm837 = vweird.f32 %v788
        %vm838 = vweird.f32 %v831
        %vm839 = vmor %vm837, %vm838
        %v840 = vsel %vm839, %v831, %v836
        %v841 = vrsqrt.pop %v789
        %v842 = vmul.f32 %v841, %v789
        %v843 = vmul.f32 %v842, %v841
        %v844 = vmul.f32 0.5, %v843
        %v845 = vsub.f32 1.5, %v844
        %v846 = vmul.f32 %v841, %v845
        %vm847 = vweird.f32 %v789
        %vm848 = vweird.f32 %v841
        %vm849 = vmor %vm847, %vm848
        %v850 = vsel %vm849, %v841, %v846
        %v851 = vrsqrt.pop %v790
        %v852 = vmul.f32 %v851, %v790
        %v853 = vmul.f32 %v852, %v851
        %v854 = vmul.f32 0.5, %v853
        %v855 = vsub.f32 1.5, %v854
        %v856 = vmul.f32 %v851, %v855
        %vm857 = vweird.f32 %v790
        %vm858 = vweird.f32 %v851
        %vm859 = vmor %vm857, %vm858
        %v860 = vsel %vm859, %v851, %v856
        %v861 = vrsqrt.pop %v791
        %v862 = vmul.f32 %v861, %v791
        %v863 = vmul.f32 %v862, %v861
        %v864 = vmul.f32 0.5, %v863
        %v865 = vsub.f32 1.5, %v864
        %v866 = vmul.f32 %v861, %v865
        %vm867 = vweird.f32 %v791
        %vm868 = vweird.f32 %v861
        %vm869 = vmor %vm867, %vm868
        %v870 = vsel %vm869, %v861, %v866
        %v871 = vrsqrt.pop %v792
        %v872 = vmul.f32 %v871, %v792
        %v873 = vmul.f32 %v872, %v871
        %v874 = vmul.f32 0.5, %v873
        %v875 = vsub.f32 1.5, %v874
        %v876 = vmul.f32 %v871, %v875
        %vm877 = vweird.f32 %v792
        %vm878 = vweird.f32 %v871
        %vm879 = vmor %vm877, %vm878
        %v880 = vsel %vm879, %v871, %v876
        %v881 = vrsqrt.pop %v793
        %v882 = vmul.f32 %v881, %v793
        %v883 = vmul.f32 %v882, %v881
        %v884 = vmul.f32 0.5, %v883
        %v885 = vsub.f32 1.5, %v884
        %v886 = vmul.f32 %v881, %v885
        %vm887 = vweird.f32 %v793
        %vm888 = vweird.f32 %v881
        %vm889 = vmor %vm887, %vm888
        %v890 = vsel %vm889, %v881, %v886
        %v891 = vrsqrt.pop %v794
        %v892 = vmul.f32 %v891, %v794
        %v893 = vmul.f32 %v892, %v891
        %v894 = vmul.f32 0.5, %v893
        %v895 = vsub.f32 1.5, %v894
        %v896 = vmul.f32 %v891, %v895
        %vm897 = vweird.f32 %v794
        %vm898 = vweird.f32 %v891
        %vm899 = vmor %vm897, %vm898
        %v900 = vsel %vm899, %v891, %v896
        %v901 = vrsqrt.pop %v795
        %v902 = vmul.f32 %v901, %v795
        %v903 = vmul.f32 %v902, %v901
        %v904 = vmul.f32 0.5, %v903
        %v905 = vsub.f32 1.5, %v904
        %v906 = vmul.f32 %v901, %v905
        %vm907 = vweird.f32 %v795
        %vm908 = vweird.f32 %v901
        %vm909 = vmor %vm907, %vm908
        %v910 = vsel %vm909, %v901, %v906
        %v911 = vrsqrt.pop %v796
        %v912 = vmul.f32 %v911, %v796
        %v913 = vmul.f32 %v912, %v911
        %v914 = vmul.f32 0.5, %v913
        %v915 = vsub.f32 1.5, %v914
        %v916 = vmul.f32 %v911, %v915
        %vm917 = vweird.f32 %v796
        %vm918 = vweird.f32 %v911
        %vm919 = vmor %vm917, %vm918
        %v920 = vsel %vm919, %v911, %v916
        %v921 = vrsqrt.pop %v797
        %v922 = vmul.f32 %v921, %v797
        %v923 = vmul.f32 %v922, %v921
        %v924 = vmul.f32 0.5, %v923
        %v925 = vsub.f32 1.5, %v924
        %v926 = vmul.f32 %v921, %v925
        %vm927 = vweird.f32 %v797
        %vm928 = vweird.f32 %v921
        %vm929 = vmor %vm927, %vm928
        %v930 = vsel %vm929, %v921, %v926
        %v931 = vrsqrt.pop %v798
        %v932 = vmul.f32 %v931, %v798
        %v933 = vmul.f32 %v932, %v931
        %v934 = vmul.f32 0.5, %v933
        %v935 = vsub.f32 1.5, %v934
        %v936 = vmul.f32 %v931, %v935
        %vm937 = vweird.f32 %v798
        %vm938 = vweird.f32 %v931
        %vm939 = vmor %vm937, %vm938
        %v940 = vsel %vm939, %v931, %v936
        %v941 = vrsqrt.pop %v799
        %v942 = vmul.f32 %v941, %v799
        %v943 = vmul.f32 %v942, %v941
        %v944 = vmul.f32 0.5, %v943
        %v945 = vsub.f32 1.5, %v944
        %v946 = vmul.f32 %v941, %v945
        %vm947 = vweird.f32 %v799
        %vm948 = vweird.f32 %v941
        %vm949 = vmor %vm947, %vm948
        %v950 = vsel %vm949, %v941, %v946
        %v951 = vrsqrt.pop %v800
        %v952 = vmul.f32 %v951, %v800
        %v953 = vmul.f32 %v952, %v951
        %v954 = vmul.f32 0.5, %v953
        %v955 = vsub.f32 1.5, %v954
        %v956 = vmul.f32 %v951, %v955
        %vm957 = vweird.f32 %v800
        %vm958 = vweird.f32 %v951
        %vm959 = vmor %vm957, %vm958
        %v960 = vsel %vm959, %v951, %v956
        %v961 = vrsqrt.pop %v801
        %v962 = vmul.f32 %v961, %v801
        %v963 = vmul.f32 %v962, %v961
        %v964 = vmul.f32 0.5, %v963
        %v965 = vsub.f32 1.5, %v964
        %v966 = vmul.f32 %v961, %v965
        %vm967 = vweird.f32 %v801
        %vm968 = vweird.f32 %v961
        %vm969 = vmor %vm967, %vm968
        %v970 = vsel %vm969, %v961, %v966
        %v971 = vrsqrt.pop %v802
        %v972 = vmul.f32 %v971, %v802
        %v973 = vmul.f32 %v972, %v971
        %v974 = vmul.f32 0.5, %v973
        %v975 = vsub.f32 1.5, %v974
        %v976 = vmul.f32 %v971, %v975
        %vm977 = vweird.f32 %v802
        %vm978 = vweird.f32 %v971
        %vm979 = vmor %vm977, %vm978
        %v980 = vsel %vm979, %v971, %v976
        %v981 = vrsqrt.pop %v803
        %v982 = vmul.f32 %v981, %v803
        %v983 = vmul.f32 %v982, %v981
        %v984 = vmul.f32 0.5, %v983
        %v985 = vsub.f32 1.5, %v984
        %v986 = vmul.f32 %v981, %v985
        %vm987 = vweird.f32 %v803
        %vm988 = vweird.f32 %v981
        %vm989 = vmor %vm987, %vm988
        %v990 = vsel %vm989, %v981, %v986
        %v991 = vrsqrt.pop %v804
        %v992 = vmul.f32 %v991, %v804
        %v993 = vmul.f32 %v992, %v991
        %v994 = vmul.f32 0.5, %v993
        %v995 = vsub.f32 1.5, %v994
        %v996 = vmul.f32 %v991, %v995
        %vm997 = vweird.f32 %v804
        %vm998 = vweird.f32 %v991
        %vm999 = vmor %vm997, %vm998
        %v1000 = vsel %vm999, %v991, %v996
        %v1001 = vrsqrt.pop %v805
        %v1002 = vmul.f32 %v1001, %v805
        %v1003 = vmul.f32 %v1002, %v1001
        %v1004 = vmul.f32 0.5, %v1003
        %v1005 = vsub.f32 1.5, %v1004
        %v1006 = vmul.f32 %v1001, %v1005
        %vm1007 = vweird.f32 %v805
        %vm1008 = vweird.f32 %v1001
        %vm1009 = vmor %vm1007, %vm1008
        %v1010 = vsel %vm1009, %v1001, %v1006
        %v1011 = vrsqrt.pop %v806
        %v1012 = vmul.f32 %v1011, %v806
        %v1013 = vmul.f32 %v1012, %v1011
        %v1014 = vmul.f32 0.5, %v1013
        %v1015 = vsub.f32 1.5, %v1014
        %v1016 = vmul.f32 %v1011, %v1015
        %vm1017 = vweird.f32 %v806
        %vm1018 = vweird.f32 %v1011
        %vm1019 = vmor %vm1017, %vm1018
        %v1020 = vsel %vm1019, %v1011, %v1016
        %v1021 = vrsqrt.pop %v807
        %v1022 = vmul.f32 %v1021, %v807
        %v1023 = vmul.f32 %v1022, %v1021
        %v1024 = vmul.f32 0.5, %v1023
        %v1025 = vsub.f32 1.5, %v1024
        %v1026 = vmul.f32 %v1021, %v1025
        %vm1027 = vweird.f32 %v807
        %vm1028 = vweird.f32 %v1021
        %vm1029 = vmor %vm1027, %vm1028
        %v1030 = vsel %vm1029, %v1021, %v1026
        %v1031 = vrsqrt.pop %v808
        %v1032 = vmul.f32 %v1031, %v808
        %v1033 = vmul.f32 %v1032, %v1031
        %v1034 = vmul.f32 0.5, %v1033
        %v1035 = vsub.f32 1.5, %v1034
        %v1036 = vmul.f32 %v1031, %v1035
        %vm1037 = vweird.f32 %v808
        %vm1038 = vweird.f32 %v1031
        %vm1039 = vmor %vm1037, %vm1038
        %v1040 = vsel %vm1039, %v1031, %v1036
        %v1041 = vrsqrt.pop %v809
        %v1042 = vmul.f32 %v1041, %v809
        %v1043 = vmul.f32 %v1042, %v1041
        %v1044 = vmul.f32 0.5, %v1043
        %v1045 = vsub.f32 1.5, %v1044
        %v1046 = vmul.f32 %v1041, %v1045
        %vm1047 = vweird.f32 %v809
        %vm1048 = vweird.f32 %v1041
        %vm1049 = vmor %vm1047, %vm1048
        %v1050 = vsel %vm1049, %v1041, %v1046
        %v1051 = vrsqrt.pop %v810
        %v1052 = vmul.f32 %v1051, %v810
        %v1053 = vmul.f32 %v1052, %v1051
        %v1054 = vmul.f32 0.5, %v1053
        %v1055 = vsub.f32 1.5, %v1054
        %v1056 = vmul.f32 %v1051, %v1055
        %vm1057 = vweird.f32 %v810
        %vm1058 = vweird.f32 %v1051
        %vm1059 = vmor %vm1057, %vm1058
        %v1060 = vsel %vm1059, %v1051, %v1056
        %v1061 = vmul.f32 %v736, %v820
        %v1062 = vmul.f32 %v737, %v820
        %v1063 = vmul.f32 %v738, %v830
        %v1064 = vmul.f32 %v739, %v830
        %v1065 = vmul.f32 %v740, %v840
        %v1066 = vmul.f32 %v741, %v840
        %v1067 = vmul.f32 %v742, %v850
        %v1068 = vmul.f32 %v743, %v850
        %v1069 = vmul.f32 %v744, %v860
        %v1070 = vmul.f32 %v745, %v860
        %v1071 = vmul.f32 %v746, %v870
        %v1072 = vmul.f32 %v747, %v870
        %v1073 = vmul.f32 %v748, %v880
        %v1074 = vmul.f32 %v749, %v880
        %v1075 = vmul.f32 %v750, %v890
        %v1076 = vmul.f32 %v751, %v890
        %v1077 = vmul.f32 %v752, %v900
        %v1078 = vmul.f32 %v753, %v900
        %v1079 = vmul.f32 %v754, %v910
        %v1080 = vmul.f32 %v755, %v910
        %v1081 = vmul.f32 %v756, %v920
        %v1082 = vmul.f32 %v757, %v920
        %v1083 = vmul.f32 %v758, %v930
        %v1084 = vmul.f32 %v759, %v930
        %v1085 = vmul.f32 %v760, %v940
        %v1086 = vmul.f32 %v761, %v940
        %v1087 = vmul.f32 %v762, %v950
        %v1088 = vmul.f32 %v763, %v950
        %v1089 = vmul.f32 %v764, %v960
        %v1090 = vmul.f32 %v765, %v960
        %v1091 = vmul.f32 %v766, %v970
        %v1092 = vmul.f32 %v767, %v970
        %v1093 = vmul.f32 %v768, %v980
        %v1094 = vmul.f32 %v769, %v980
        %v1095 = vmul.f32 %v770, %v990
        %v1096 = vmul.f32 %v771, %v990
        %v1097 = vmul.f32 %v772, %v1000
        %v1098 = vmul.f32 %v773, %v1000
        %v1099 = vmul.f32 %v774, %v1010
        %v1100 = vmul.f32 %v775, %v1010
        %v1101 = vmul.f32 %v776, %v1020
        %v1102 = vmul.f32 %v777, %v1020
        %v1103 = vmul.f32 %v778, %v1030
        %v1104 = vmul.f32 %v779, %v1030
        %v1105 = vmul.f32 %v780, %v1040
        %v1106 = vmul.f32 %v781, %v1040
        %v1107 = vmul.f32 %v782, %v1050
        %v1108 = vmul.f32 %v783, %v1050
        %v1109 = vmul.f32 %v784, %v1060
        %v1110 = vmul.f32 %v785, %v1060
        %v1111 = vld [vmem:[#allocation6] sm:$0x3]
        %v1113 = vperm.slane %v1111, 0
        %v1114 = vperm.slane %v1111, 1
        %v1117 = vmul.f32 %v1061, %v1113
        %v1118 = vmul.f32 %v1062, %v1114
        %v1119 = vmul.f32 %v1063, %v1113
        %v1120 = vmul.f32 %v1064, %v1114
        %v1121 = vmul.f32 %v1065, %v1113
        %v1122 = vmul.f32 %v1066, %v1114
        %v1123 = vmul.f32 %v1067, %v1113
        %v1124 = vmul.f32 %v1068, %v1114
        %v1125 = vmul.f32 %v1069, %v1113
        %v1126 = vmul.f32 %v1070, %v1114
        %v1127 = vmul.f32 %v1071, %v1113
        %v1128 = vmul.f32 %v1072, %v1114
        %v1129 = vmul.f32 %v1073, %v1113
        %v1130 = vmul.f32 %v1074, %v1114
        %v1131 = vmul.f32 %v1075, %v1113
        %v1132 = vmul.f32 %v1076, %v1114
        %v1133 = vmul.f32 %v1077, %v1113
        %v1134 = vmul.f32 %v1078, %v1114
        %v1135 = vmul.f32 %v1079, %v1113
        %v1136 = vmul.f32 %v1080, %v1114
        %v1137 = vmul.f32 %v1081, %v1113
        %v1138 = vmul.f32 %v1082, %v1114
        %v1139 = vmul.f32 %v1083, %v1113
        %v1140 = vmul.f32 %v1084, %v1114
        %v1141 = vmul.f32 %v1085, %v1113
        %v1142 = vmul.f32 %v1086, %v1114
        %v1143 = vmul.f32 %v1087, %v1113
        %v1144 = vmul.f32 %v1088, %v1114
        %v1145 = vmul.f32 %v1089, %v1113
        %v1146 = vmul.f32 %v1090, %v1114
        %v1147 = vmul.f32 %v1091, %v1113
        %v1148 = vmul.f32 %v1092, %v1114
        %v1149 = vmul.f32 %v1093, %v1113
        %v1150 = vmul.f32 %v1094, %v1114
        %v1151 = vmul.f32 %v1095, %v1113
        %v1152 = vmul.f32 %v1096, %v1114
        %v1153 = vmul.f32 %v1097, %v1113
        %v1154 = vmul.f32 %v1098, %v1114
        %v1155 = vmul.f32 %v1099, %v1113
        %v1156 = vmul.f32 %v1100, %v1114
        %v1157 = vmul.f32 %v1101, %v1113
        %v1158 = vmul.f32 %v1102, %v1114
        %v1159 = vmul.f32 %v1103, %v1113
        %v1160 = vmul.f32 %v1104, %v1114
        %v1161 = vmul.f32 %v1105, %v1113
        %v1162 = vmul.f32 %v1106, %v1114
        %v1163 = vmul.f32 %v1107, %v1113
        %v1164 = vmul.f32 %v1108, %v1114
        %v1165 = vmul.f32 %v1109, %v1113
        %v1166 = vmul.f32 %v1110, %v1114
        %v1167 = vld [vmem:[#allocation8] sm:$0x3]
        %v1169 = vperm.slane %v1167, 0
        %v1170 = vperm.slane %v1167, 1
        %v1173 = vadd.f32 %v1117, %v1169
        %v1174 = vadd.f32 %v1118, %v1170
        %v1175 = vadd.f32 %v1119, %v1169
        %v1176 = vadd.f32 %v1120, %v1170
        %v1177 = vadd.f32 %v1121, %v1169
        %v1178 = vadd.f32 %v1122, %v1170
        %v1179 = vadd.f32 %v1123, %v1169
        %v1180 = vadd.f32 %v1124, %v1170
        %v1181 = vadd.f32 %v1125, %v1169
        %v1182 = vadd.f32 %v1126, %v1170
        %v1183 = vadd.f32 %v1127, %v1169
        %v1184 = vadd.f32 %v1128, %v1170
        %v1185 = vadd.f32 %v1129, %v1169
        %v1186 = vadd.f32 %v1130, %v1170
        %v1187 = vadd.f32 %v1131, %v1169
        %v1188 = vadd.f32 %v1132, %v1170
        %v1189 = vadd.f32 %v1133, %v1169
        %v1190 = vadd.f32 %v1134, %v1170
        %v1191 = vadd.f32 %v1135, %v1169
        %v1192 = vadd.f32 %v1136, %v1170
        %v1193 = vadd.f32 %v1137, %v1169
        %v1194 = vadd.f32 %v1138, %v1170
        %v1195 = vadd.f32 %v1139, %v1169
        %v1196 = vadd.f32 %v1140, %v1170
        %v1197 = vadd.f32 %v1141, %v1169
        %v1198 = vadd.f32 %v1142, %v1170
        %v1199 = vadd.f32 %v1143, %v1169
        %v1200 = vadd.f32 %v1144, %v1170
        %v1201 = vadd.f32 %v1145, %v1169
        %v1202 = vadd.f32 %v1146, %v1170
        %v1203 = vadd.f32 %v1147, %v1169
        %v1204 = vadd.f32 %v1148, %v1170
        %v1205 = vadd.f32 %v1149, %v1169
        %v1206 = vadd.f32 %v1150, %v1170
        %v1207 = vadd.f32 %v1151, %v1169
        %v1208 = vadd.f32 %v1152, %v1170
        %v1209 = vadd.f32 %v1153, %v1169
        %v1210 = vadd.f32 %v1154, %v1170
        %v1211 = vadd.f32 %v1155, %v1169
        %v1212 = vadd.f32 %v1156, %v1170
        %v1213 = vadd.f32 %v1157, %v1169
        %v1214 = vadd.f32 %v1158, %v1170
        %v1215 = vadd.f32 %v1159, %v1169
        %v1216 = vadd.f32 %v1160, %v1170
        %v1217 = vadd.f32 %v1161, %v1169
        %v1218 = vadd.f32 %v1162, %v1170
        %v1219 = vadd.f32 %v1163, %v1169
        %v1220 = vadd.f32 %v1164, %v1170
        %v1221 = vadd.f32 %v1165, %v1169
        %v1222 = vadd.f32 %v1166, %v1170
        %v1223 = vpack.c.bf16 %v1175, %v1173
        %v1224 = vpack.c.bf16 %v1176, %v1174
        %v1225 = vpack.c.bf16 %v1179, %v1177
        %v1226 = vpack.c.bf16 %v1180, %v1178
        %v1227 = vpack.c.bf16 %v1183, %v1181
        %v1228 = vpack.c.bf16 %v1184, %v1182
        %v1229 = vpack.c.bf16 %v1187, %v1185
        %v1230 = vpack.c.bf16 %v1188, %v1186
        %v1231 = vpack.c.bf16 %v1191, %v1189
        %v1232 = vpack.c.bf16 %v1192, %v1190
        %v1233 = vpack.c.bf16 %v1195, %v1193
        %v1234 = vpack.c.bf16 %v1196, %v1194
        %v1235 = vpack.c.bf16 %v1199, %v1197
        %v1236 = vpack.c.bf16 %v1200, %v1198
        %v1237 = vpack.c.bf16 %v1203, %v1201
        %v1238 = vpack.c.bf16 %v1204, %v1202
        %v1239 = vpack.c.bf16 %v1207, %v1205
        %v1240 = vpack.c.bf16 %v1208, %v1206
        %v1241 = vpack.c.bf16 %v1211, %v1209
        %v1242 = vpack.c.bf16 %v1212, %v1210
        %v1243 = vpack.c.bf16 %v1215, %v1213
        %v1244 = vpack.c.bf16 %v1216, %v1214
        %v1245 = vpack.c.bf16 %v1219, %v1217
        %v1246 = vpack.c.bf16 %v1220, %v1218
        %v1247 = vpack.c.bf16 %v1221, %v1221
        %v1248 = vpack.c.bf16 %v1222, %v1222
        %1249 = vst [vmem:[#allocation2] sm:$0xff] 0.0
        %1250 = vst [vmem:[#allocation2 + $0x8] sm:$0xff] 0.0
        %1251 = vst [vmem:[#allocation2 + $0x10] sm:$0xff] 0.0
        %1252 = vst [vmem:[#allocation2 + $0x18] sm:$0xff] 0.0
        %1253 = vst [vmem:[#allocation2 + $0x20] sm:$0xff] 0.0
        %1254 = vst [vmem:[#allocation2 + $0x28] sm:$0xff] 0.0
        %1255 = vst [vmem:[#allocation2 + $0x30] sm:$0xff] 0.0
        %1256 = vst [vmem:[#allocation2 + $0x38] sm:$0xff] 0.0
        %1257 = vst [vmem:[#allocation2 + $0x40] sm:$0xff] 0.0
        %1258 = vst [vmem:[#allocation2 + $0x48] sm:$0xff] 0.0
        %1259 = vst [vmem:[#allocation2 + $0x50] sm:$0xff] 0.0
        %1260 = vst [vmem:[#allocation2 + $0x58] sm:$0xff] 0.0
        %1261 = vst [vmem:[#allocation2 + $0x60] sm:$0xff] 0.0
        %1262 = vst [vmem:[#allocation2 + $0x68] sm:$0xff] 0.0
        %1263 = vst [vmem:[#allocation2 + $0x70] sm:$0xff] 0.0
        %1264 = vst [vmem:[#allocation2 + $0x78] sm:$0xff] 0.0
        %1265 = vst [vmem:[#allocation2 + $0x80] sm:$0xff] 0.0
        %1266 = vst [vmem:[#allocation2 + $0x88] sm:$0xff] 0.0
        %1267 = vst [vmem:[#allocation2 + $0x90] sm:$0xff] 0.0
        %1268 = vst [vmem:[#allocation2 + $0x98] sm:$0xff] 0.0
        %1269 = vst [vmem:[#allocation2 + $0xa0] sm:$0xff] 0.0
        %1270 = vst [vmem:[#allocation2 + $0xa8] sm:$0xff] 0.0
        %1271 = vst [vmem:[#allocation2 + $0xb0] sm:$0xff] 0.0
        %1272 = vst [vmem:[#allocation2 + $0xb8] sm:$0xff] 0.0
        %1273 = vst [vmem:[#allocation2 + $0xc0] sm:$0xff] 0.0
        %1274 = vst [vmem:[#allocation2 + $0xc8] sm:$0xff] 0.0
        %1275 = vst [vmem:[#allocation2 + $0xd0] sm:$0xff] 0.0
        %1276 = vst [vmem:[#allocation2 + $0xd8] sm:$0xff] 0.0
        %1277 = vst [vmem:[#allocation2 + $0xe0] sm:$0xff] 0.0
        %1278 = vst [vmem:[#allocation2 + $0xe8] sm:$0xff] 0.0
        %1279 = vst [vmem:[#allocation2 + $0xf0] sm:$0xff] 0.0
        %1280 = vst [vmem:[#allocation2 + $0xf8] sm:$0xff] 0.0
        %1281 = vst [vmem:[#allocation2 + $0x100] sm:$0xff] 0.0
        %1282 = vst [vmem:[#allocation2 + $0x108] sm:$0xff] 0.0
        %1283 = vst [vmem:[#allocation2 + $0x110] sm:$0xff] 0.0
        %1284 = vst [vmem:[#allocation2 + $0x118] sm:$0xff] 0.0
        %1285 = vst [vmem:[#allocation2 + $0x120] sm:$0xff] 0.0
        %1286 = vst [vmem:[#allocation2 + $0x128] sm:$0xff] 0.0
        %1287 = vst [vmem:[#allocation2 + $0x130] sm:$0xff] 0.0
        %1288 = vst [vmem:[#allocation2 + $0x138] sm:$0xff] 0.0
        %1289 = vst [vmem:[#allocation2 + $0x140] sm:$0xff] 0.0
        %1290 = vst [vmem:[#allocation2 + $0x148] sm:$0xff] 0.0
        %1291 = vst [vmem:[#allocation2 + $0x150] sm:$0xff] 0.0
        %1292 = vst [vmem:[#allocation2 + $0x158] sm:$0xff] 0.0
        %1293 = vst [vmem:[#allocation2 + $0x160] sm:$0xff] 0.0
        %1294 = vst [vmem:[#allocation2 + $0x168] sm:$0xff] 0.0
        %1295 = vst [vmem:[#allocation2 + $0x170] sm:$0xff] 0.0
        %1296 = vst [vmem:[#allocation2 + $0x178] sm:$0xff] 0.0
        %1297 = vst [vmem:[#allocation2 + $0x180] sm:$0xff] 0.0
        %1298 = vst [vmem:[#allocation2 + $0x188] sm:$0xff] 0.0
        %v1299 = vld [vmem:[#allocation9] sm:$0xff]
        %v1300 = vld [vmem:[#allocation9 + $0x18] sm:$0xff]
        %v1301 = vld [vmem:[#allocation9 + $0x30] sm:$0xff]
        %v1302 = vld [vmem:[#allocation9 + $0x48] sm:$0xff]
        %v1303 = vld [vmem:[#allocation9 + $0x60] sm:$0xff]
        %v1304 = vld [vmem:[#allocation9 + $0x78] sm:$0xff]
        %v1305 = vld [vmem:[#allocation9 + $0x90] sm:$0xff]
        %v1306 = vld [vmem:[#allocation9 + $0xa8] sm:$0xff]
        %v1307 = vld [vmem:[#allocation9 + $0xc0] sm:$0xff]
        %v1308 = vld [vmem:[#allocation9 + $0xd8] sm:$0xff]
        %v1309 = vld [vmem:[#allocation9 + $0xf0] sm:$0xff]
        %v1310 = vld [vmem:[#allocation9 + $0x108] sm:$0xff]
        %v1311 = vld [vmem:[#allocation9 + $0x120] sm:$0xff]
        %v1312 = vld [vmem:[#allocation9 + $0x138] sm:$0xff]
        %v1313 = vld [vmem:[#allocation9 + $0x150] sm:$0xff]
        %v1314 = vld [vmem:[#allocation9 + $0x168] sm:$0xff]
        %v1315 = vld [vmem:[#allocation9 + $0x180] sm:$0xff]
        %v1316 = vld [vmem:[#allocation9 + $0x198] sm:$0xff]
        %v1317 = vld [vmem:[#allocation9 + $0x1b0] sm:$0xff]
        %v1318 = vld [vmem:[#allocation9 + $0x1c8] sm:$0xff]
        %v1319 = vld [vmem:[#allocation9 + $0x1e0] sm:$0xff]
        %v1320 = vld [vmem:[#allocation9 + $0x1f8] sm:$0xff]
        %v1321 = vld [vmem:[#allocation9 + $0x210] sm:$0xff]
        %v1322 = vld [vmem:[#allocation9 + $0x228] sm:$0xff]
        %v1323 = vld [vmem:[#allocation9 + $0x240] sm:$0xff]
        %v1324 = vld [vmem:[#allocation9 + $0x258] sm:$0xff]
        %v1325 = vld [vmem:[#allocation9 + $0x270] sm:$0xff]
        %v1326 = vld [vmem:[#allocation9 + $0x288] sm:$0xff]
        %v1327 = vld [vmem:[#allocation9 + $0x2a0] sm:$0xff]
        %v1328 = vld [vmem:[#allocation9 + $0x2b8] sm:$0xff]
        %v1329 = vld [vmem:[#allocation9 + $0x2d0] sm:$0xff]
        %v1330 = vld [vmem:[#allocation9 + $0x2e8] sm:$0xff]
        %v1331 = vld [vmem:[#allocation11] sm:$0x3]
        %v1333 = vperm.slane %v1331, 0
        %v1334 = vperm.slane %v1331, 1
        %v1369 = vunpack.c.l.b16 %v1299
        %v1370 = vunpack.c.h.b16 %v1299
        %v1371 = vunpack.c.l.b16 %v1300
        %v1372 = vunpack.c.h.b16 %v1300
        %v1373 = vunpack.c.l.b16 %v1301
        %v1374 = vunpack.c.h.b16 %v1301
        %v1375 = vunpack.c.l.b16 %v1302
        %v1376 = vunpack.c.h.b16 %v1302
        %v1377 = vunpack.c.l.b16 %v1303
        %v1378 = vunpack.c.h.b16 %v1303
        %v1379 = vunpack.c.l.b16 %v1304
        %v1380 = vunpack.c.h.b16 %v1304
        %v1381 = vunpack.c.l.b16 %v1305
        %v1382 = vunpack.c.h.b16 %v1305
        %v1383 = vunpack.c.l.b16 %v1306
        %v1384 = vunpack.c.h.b16 %v1306
        %v1385 = vunpack.c.l.b16 %v1307
        %v1386 = vunpack.c.h.b16 %v1307
        %v1387 = vunpack.c.l.b16 %v1308
        %v1388 = vunpack.c.h.b16 %v1308
        %v1389 = vunpack.c.l.b16 %v1309
        %v1390 = vunpack.c.h.b16 %v1309
        %v1391 = vunpack.c.l.b16 %v1310
        %v1392 = vunpack.c.h.b16 %v1310
        %v1393 = vunpack.c.l.b16 %v1311
        %v1394 = vunpack.c.h.b16 %v1311
        %v1395 = vunpack.c.l.b16 %v1312
        %v1396 = vunpack.c.h.b16 %v1312
        %v1397 = vunpack.c.l.b16 %v1313
        %v1398 = vunpack.c.h.b16 %v1313
        %v1399 = vunpack.c.l.b16 %v1314
        %v1400 = vunpack.c.h.b16 %v1314
        %v1401 = vunpack.c.l.b16 %v1315
        %v1402 = vunpack.c.h.b16 %v1315
        %v1403 = vunpack.c.l.b16 %v1316
        %v1404 = vunpack.c.h.b16 %v1316
        %v1405 = vunpack.c.l.b16 %v1317
        %v1406 = vunpack.c.h.b16 %v1317
        %v1407 = vunpack.c.l.b16 %v1318
        %v1408 = vunpack.c.h.b16 %v1318
        %v1409 = vunpack.c.l.b16 %v1319
        %v1410 = vunpack.c.h.b16 %v1319
        %v1411 = vunpack.c.l.b16 %v1320
        %v1412 = vunpack.c.h.b16 %v1320
        %v1413 = vunpack.c.l.b16 %v1321
        %v1414 = vunpack.c.h.b16 %v1321
        %v1415 = vunpack.c.l.b16 %v1322
        %v1416 = vunpack.c.h.b16 %v1322
        %v1417 = vunpack.c.l.b16 %v1323
        %v1418 = vunpack.c.h.b16 %v1323
        %v1419 = vunpack.c.l.b16 %v1324
        %v1420 = vunpack.c.h.b16 %v1324
        %v1421 = vunpack.c.l.b16 %v1325
        %v1422 = vunpack.c.h.b16 %v1325
        %v1423 = vunpack.c.l.b16 %v1326
        %v1424 = vunpack.c.h.b16 %v1326
        %v1425 = vunpack.c.l.b16 %v1327
        %v1426 = vunpack.c.h.b16 %v1327
        %v1427 = vunpack.c.l.b16 %v1328
        %v1428 = vunpack.c.h.b16 %v1328
        %v1429 = vunpack.c.l.b16 %v1329
        %v1430 = vunpack.c.h.b16 %v1329
        %v1431 = vunpack.c.l.b16 %v1330
        %v1432 = vunpack.c.h.b16 %v1330
        %v1433 = vpack.c.b16 %v1371, %v1369
        %v1434 = vpack.c.b16 %v1372, %v1370
        %v1435 = vpack.c.b16 %v1375, %v1373
        %v1436 = vpack.c.b16 %v1376, %v1374
        %v1437 = vpack.c.b16 %v1379, %v1377
        %v1438 = vpack.c.b16 %v1380, %v1378
        %v1439 = vpack.c.b16 %v1383, %v1381
        %v1440 = vpack.c.b16 %v1384, %v1382
        %v1441 = vpack.c.b16 %v1387, %v1385
        %v1442 = vpack.c.b16 %v1388, %v1386
        %v1443 = vpack.c.b16 %v1391, %v1389
        %v1444 = vpack.c.b16 %v1392, %v1390
        %v1445 = vpack.c.b16 %v1395, %v1393
        %v1446 = vpack.c.b16 %v1396, %v1394
        %v1447 = vpack.c.b16 %v1399, %v1397
        %v1448 = vpack.c.b16 %v1400, %v1398
        %v1449 = vpack.c.b16 %v1403, %v1401
        %v1450 = vpack.c.b16 %v1404, %v1402
        %v1451 = vpack.c.b16 %v1407, %v1405
        %v1452 = vpack.c.b16 %v1408, %v1406
        %v1453 = vpack.c.b16 %v1411, %v1409
        %v1454 = vpack.c.b16 %v1412, %v1410
        %v1455 = vpack.c.b16 %v1415, %v1413
        %v1456 = vpack.c.b16 %v1416, %v1414
        %v1457 = vpack.c.b16 %v1419, %v1417
        %v1458 = vpack.c.b16 %v1420, %v1418
        %v1459 = vpack.c.b16 %v1423, %v1421
        %v1460 = vpack.c.b16 %v1424, %v1422
        %v1461 = vpack.c.b16 %v1427, %v1425
        %v1462 = vpack.c.b16 %v1428, %v1426
        %v1463 = vpack.c.b16 %v1431, %v1429
        %v1464 = vpack.c.b16 %v1432, %v1430
        %1497 = vmatpush.bf16.msra.mxu0 %v1447
        %1498 = vmatpush.bf16.msra.mxu0 %v1445
        %1499 = vmatpush.bf16.msra.mxu0 %v1443
        %1500 = vmatpush.bf16.msra.mxu0 %v1441
        %1501 = vmatpush.bf16.msra.mxu0 %v1439
        %1502 = vmatpush.bf16.msra.mxu0 %v1437
        %1503 = vmatpush.bf16.msra.mxu0 %v1435
        %1504 = vmatpush.bf16.msra.mxu0 %v1433
        %1505 = vmatmul.bf16.gmra.mxu0 %v1223
        %v1506 = vpop.f32.mrf.mxu0
        %v1507 = vadd.f32 %v1333, %v1506
        %v1508 = vpop.f32.mrf.mxu0
        %v1509 = vadd.f32 %v1333, %v1508
        %1510 = vmatmul.bf16.gmra.mxu0 %v1225
        %v1511 = vpop.f32.mrf.mxu0
        %v1512 = vadd.f32 %v1333, %v1511
        %v1513 = vpop.f32.mrf.mxu0
        %v1514 = vadd.f32 %v1333, %v1513
        %1515 = vmatmul.bf16.gmra.mxu0 %v1227
        %v1516 = vpop.f32.mrf.mxu0
        %v1517 = vadd.f32 %v1333, %v1516
        %v1518 = vpop.f32.mrf.mxu0
        %v1519 = vadd.f32 %v1333, %v1518
        %1520 = vmatmul.bf16.gmra.mxu0 %v1229
        %v1521 = vpop.f32.mrf.mxu0
        %v1522 = vadd.f32 %v1333, %v1521
        %v1523 = vpop.f32.mrf.mxu0
        %v1524 = vadd.f32 %v1333, %v1523
        %1525 = vmatmul.bf16.gmra.mxu0 %v1231
        %v1526 = vpop.f32.mrf.mxu0
        %v1527 = vadd.f32 %v1333, %v1526
        %v1528 = vpop.f32.mrf.mxu0
        %v1529 = vadd.f32 %v1333, %v1528
        %1530 = vmatmul.bf16.gmra.mxu0 %v1233
        %v1531 = vpop.f32.mrf.mxu0
        %v1532 = vadd.f32 %v1333, %v1531
        %v1533 = vpop.f32.mrf.mxu0
        %v1534 = vadd.f32 %v1333, %v1533
        %1535 = vmatmul.bf16.gmra.mxu0 %v1235
        %v1536 = vpop.f32.mrf.mxu0
        %v1537 = vadd.f32 %v1333, %v1536
        %v1538 = vpop.f32.mrf.mxu0
        %v1539 = vadd.f32 %v1333, %v1538
        %1540 = vmatmul.bf16.gmra.mxu0 %v1237
        %v1541 = vpop.f32.mrf.mxu0
        %v1542 = vadd.f32 %v1333, %v1541
        %v1543 = vpop.f32.mrf.mxu0
        %v1544 = vadd.f32 %v1333, %v1543
        %1545 = vmatmul.bf16.gmra.mxu0 %v1239
        %v1546 = vpop.f32.mrf.mxu0
        %v1547 = vadd.f32 %v1333, %v1546
        %v1548 = vpop.f32.mrf.mxu0
        %v1549 = vadd.f32 %v1333, %v1548
        %1550 = vmatmul.bf16.gmra.mxu0 %v1241
        %v1551 = vpop.f32.mrf.mxu0
        %v1552 = vadd.f32 %v1333, %v1551
        %v1553 = vpop.f32.mrf.mxu0
        %v1554 = vadd.f32 %v1333, %v1553
        %1555 = vmatmul.bf16.gmra.mxu0 %v1243
        %v1556 = vpop.f32.mrf.mxu0
        %v1557 = vadd.f32 %v1333, %v1556
        %v1558 = vpop.f32.mrf.mxu0
        %v1559 = vadd.f32 %v1333, %v1558
        %1560 = vmatmul.bf16.gmra.mxu0 %v1245
        %v1561 = vpop.f32.mrf.mxu0
        %v1562 = vadd.f32 %v1333, %v1561
        %v1563 = vpop.f32.mrf.mxu0
        %v1564 = vadd.f32 %v1333, %v1563
        %1565 = vmatmul.bf16.gmra.mxu0 %v1247
        %v1566 = vpop.f32.mrf.mxu0
        %v1567 = vadd.f32 %v1333, %v1566
        %v1568 = vpop.f32.mrf.mxu0
        %1569 = vdwg.mxu0
        %1570 = vmatpush.bf16.msra.mxu0 %v1463
        %1571 = vmatpush.bf16.msra.mxu0 %v1461
        %1572 = vmatpush.bf16.msra.mxu0 %v1459
        %1573 = vmatpush.bf16.msra.mxu0 %v1457
        %1574 = vmatpush.bf16.msra.mxu0 %v1455
        %1575 = vmatpush.bf16.msra.mxu0 %v1453
        %1576 = vmatpush.bf16.msra.mxu0 %v1451
        %1577 = vmatpush.bf16.msra.mxu0 %v1449
        %1578 = vmatmul.bf16.gmra.mxu0 %v1224
        %v1579 = vpop.f32.mrf.mxu0
        %v1580 = vadd.f32 %v1507, %v1579
        %v1581 = vpop.f32.mrf.mxu0
        %v1582 = vadd.f32 %v1509, %v1581
        %1583 = vmatmul.bf16.gmra.mxu0 %v1226
        %v1584 = vpop.f32.mrf.mxu0
        %v1585 = vadd.f32 %v1512, %v1584
        %v1586 = vpop.f32.mrf.mxu0
        %v1587 = vadd.f32 %v1514, %v1586
        %1588 = vmatmul.bf16.gmra.mxu0 %v1228
        %v1589 = vpop.f32.mrf.mxu0
        %v1590 = vadd.f32 %v1517, %v1589
        %v1591 = vpop.f32.mrf.mxu0
        %v1592 = vadd.f32 %v1519, %v1591
        %1593 = vmatmul.bf16.gmra.mxu0 %v1230
        %v1594 = vpop.f32.mrf.mxu0
        %v1595 = vadd.f32 %v1522, %v1594
        %v1596 = vpop.f32.mrf.mxu0
        %v1597 = vadd.f32 %v1524, %v1596
        %1598 = vmatmul.bf16.gmra.mxu0 %v1232
        %v1599 = vpop.f32.mrf.mxu0
        %v1600 = vadd.f32 %v1527, %v1599
        %v1601 = vpop.f32.mrf.mxu0
        %v1602 = vadd.f32 %v1529, %v1601
        %1603 = vmatmul.bf16.gmra.mxu0 %v1234
        %v1604 = vpop.f32.mrf.mxu0
        %v1605 = vadd.f32 %v1532, %v1604
        %v1606 = vpop.f32.mrf.mxu0
        %v1607 = vadd.f32 %v1534, %v1606
        %1608 = vmatmul.bf16.gmra.mxu0 %v1236
        %v1609 = vpop.f32.mrf.mxu0
        %v1610 = vadd.f32 %v1537, %v1609
        %v1611 = vpop.f32.mrf.mxu0
        %v1612 = vadd.f32 %v1539, %v1611
        %1613 = vmatmul.bf16.gmra.mxu0 %v1238
        %v1614 = vpop.f32.mrf.mxu0
        %v1615 = vadd.f32 %v1542, %v1614
        %v1616 = vpop.f32.mrf.mxu0
        %v1617 = vadd.f32 %v1544, %v1616
        %1618 = vmatmul.bf16.gmra.mxu0 %v1240
        %v1619 = vpop.f32.mrf.mxu0
        %v1620 = vadd.f32 %v1547, %v1619
        %v1621 = vpop.f32.mrf.mxu0
        %v1622 = vadd.f32 %v1549, %v1621
        %1623 = vmatmul.bf16.gmra.mxu0 %v1242
        %v1624 = vpop.f32.mrf.mxu0
        %v1625 = vadd.f32 %v1552, %v1624
        %v1626 = vpop.f32.mrf.mxu0
        %v1627 = vadd.f32 %v1554, %v1626
        %1628 = vmatmul.bf16.gmra.mxu0 %v1244
        %v1629 = vpop.f32.mrf.mxu0
        %v1630 = vadd.f32 %v1557, %v1629
        %v1631 = vpop.f32.mrf.mxu0
        %v1632 = vadd.f32 %v1559, %v1631
        %1633 = vmatmul.bf16.gmra.mxu0 %v1246
        %v1634 = vpop.f32.mrf.mxu0
        %v1635 = vadd.f32 %v1562, %v1634
        %v1636 = vpop.f32.mrf.mxu0
        %v1637 = vadd.f32 %v1564, %v1636
        %1638 = vmatmul.bf16.gmra.mxu0 %v1248
        %v1639 = vpop.f32.mrf.mxu0
        %v1640 = vadd.f32 %v1567, %v1639
        %v1641 = vpop.f32.mrf.mxu0
        %1642 = vdwg.mxu0
        %1643 = vmatpush.bf16.msra.mxu0 %v1448
        %1644 = vmatpush.bf16.msra.mxu0 %v1446
        %1645 = vmatpush.bf16.msra.mxu0 %v1444
        %1646 = vmatpush.bf16.msra.mxu0 %v1442
        %1647 = vmatpush.bf16.msra.mxu0 %v1440
        %1648 = vmatpush.bf16.msra.mxu0 %v1438
        %1649 = vmatpush.bf16.msra.mxu0 %v1436
        %1650 = vmatpush.bf16.msra.mxu0 %v1434
        %1651 = vmatmul.bf16.gmra.mxu0 %v1223
        %v1652 = vpop.f32.mrf.mxu0
        %v1653 = vadd.f32 %v1334, %v1652
        %v1654 = vpop.f32.mrf.mxu0
        %v1655 = vadd.f32 %v1334, %v1654
        %1656 = vmatmul.bf16.gmra.mxu0 %v1225
        %v1657 = vpop.f32.mrf.mxu0
        %v1658 = vadd.f32 %v1334, %v1657
        %v1659 = vpop.f32.mrf.mxu0
        %v1660 = vadd.f32 %v1334, %v1659
        %1661 = vmatmul.bf16.gmra.mxu0 %v1227
        %v1662 = vpop.f32.mrf.mxu0
        %v1663 = vadd.f32 %v1334, %v1662
        %v1664 = vpop.f32.mrf.mxu0
        %v1665 = vadd.f32 %v1334, %v1664
        %1666 = vmatmul.bf16.gmra.mxu0 %v1229
        %v1667 = vpop.f32.mrf.mxu0
        %v1668 = vadd.f32 %v1334, %v1667
        %v1669 = vpop.f32.mrf.mxu0
        %v1670 = vadd.f32 %v1334, %v1669
        %1671 = vmatmul.bf16.gmra.mxu0 %v1231
        %v1672 = vpop.f32.mrf.mxu0
        %v1673 = vadd.f32 %v1334, %v1672
        %v1674 = vpop.f32.mrf.mxu0
        %v1675 = vadd.f32 %v1334, %v1674
        %1676 = vmatmul.bf16.gmra.mxu0 %v1233
        %v1677 = vpop.f32.mrf.mxu0
        %v1678 = vadd.f32 %v1334, %v1677
        %v1679 = vpop.f32.mrf.mxu0
        %v1680 = vadd.f32 %v1334, %v1679
        %1681 = vmatmul.bf16.gmra.mxu0 %v1235
        %v1682 = vpop.f32.mrf.mxu0
        %v1683 = vadd.f32 %v1334, %v1682
        %v1684 = vpop.f32.mrf.mxu0
        %v1685 = vadd.f32 %v1334, %v1684
        %1686 = vmatmul.bf16.gmra.mxu0 %v1237
        %v1687 = vpop.f32.mrf.mxu0
        %v1688 = vadd.f32 %v1334, %v1687
        %v1689 = vpop.f32.mrf.mxu0
        %v1690 = vadd.f32 %v1334, %v1689
        %1691 = vmatmul.bf16.gmra.mxu0 %v1239
        %v1692 = vpop.f32.mrf.mxu0
        %v1693 = vadd.f32 %v1334, %v1692
        %v1694 = vpop.f32.mrf.mxu0
        %v1695 = vadd.f32 %v1334, %v1694
        %1696 = vmatmul.bf16.gmra.mxu0 %v1241
        %v1697 = vpop.f32.mrf.mxu0
        %v1698 = vadd.f32 %v1334, %v1697
        %v1699 = vpop.f32.mrf.mxu0
        %v1700 = vadd.f32 %v1334, %v1699
        %1701 = vmatmul.bf16.gmra.mxu0 %v1243
        %v1702 = vpop.f32.mrf.mxu0
        %v1703 = vadd.f32 %v1334, %v1702
        %v1704 = vpop.f32.mrf.mxu0
        %v1705 = vadd.f32 %v1334, %v1704
        %1706 = vmatmul.bf16.gmra.mxu0 %v1245
        %v1707 = vpop.f32.mrf.mxu0
        %v1708 = vadd.f32 %v1334, %v1707
        %v1709 = vpop.f32.mrf.mxu0
        %v1710 = vadd.f32 %v1334, %v1709
        %1711 = vmatmul.bf16.gmra.mxu0 %v1247
        %v1712 = vpop.f32.mrf.mxu0
        %v1713 = vadd.f32 %v1334, %v1712
        %v1714 = vpop.f32.mrf.mxu0
        %1715 = vdwg.mxu0
        %1716 = vmatpush.bf16.msra.mxu0 %v1464
        %1717 = vmatpush.bf16.msra.mxu0 %v1462
        %1718 = vmatpush.bf16.msra.mxu0 %v1460
        %1719 = vmatpush.bf16.msra.mxu0 %v1458
        %1720 = vmatpush.bf16.msra.mxu0 %v1456
        %1721 = vmatpush.bf16.msra.mxu0 %v1454
        %1722 = vmatpush.bf16.msra.mxu0 %v1452
        %1723 = vmatpush.bf16.msra.mxu0 %v1450
        %1724 = vmatmul.bf16.gmra.mxu0 %v1224
        %v1725 = vpop.f32.mrf.mxu0
        %v1726 = vadd.f32 %v1653, %v1725
        %v1727 = vpop.f32.mrf.mxu0
        %v1728 = vadd.f32 %v1655, %v1727
        %1729 = vmatmul.bf16.gmra.mxu0 %v1226
        %v1730 = vpop.f32.mrf.mxu0
        %v1731 = vadd.f32 %v1658, %v1730
        %v1732 = vpop.f32.mrf.mxu0
        %v1733 = vadd.f32 %v1660, %v1732
        %1734 = vmatmul.bf16.gmra.mxu0 %v1228
        %v1735 = vpop.f32.mrf.mxu0
        %v1736 = vadd.f32 %v1663, %v1735
        %v1737 = vpop.f32.mrf.mxu0
        %v1738 = vadd.f32 %v1665, %v1737
        %1739 = vmatmul.bf16.gmra.mxu0 %v1230
        %v1740 = vpop.f32.mrf.mxu0
        %v1741 = vadd.f32 %v1668, %v1740
        %v1742 = vpop.f32.mrf.mxu0
        %v1743 = vadd.f32 %v1670, %v1742
        %1744 = vmatmul.bf16.gmra.mxu0 %v1232
        %v1745 = vpop.f32.mrf.mxu0
        %v1746 = vadd.f32 %v1673, %v1745
        %v1747 = vpop.f32.mrf.mxu0
        %v1748 = vadd.f32 %v1675, %v1747
        %1749 = vmatmul.bf16.gmra.mxu0 %v1234
        %v1750 = vpop.f32.mrf.mxu0
        %v1751 = vadd.f32 %v1678, %v1750
        %v1752 = vpop.f32.mrf.mxu0
        %v1753 = vadd.f32 %v1680, %v1752
        %1754 = vmatmul.bf16.gmra.mxu0 %v1236
        %v1755 = vpop.f32.mrf.mxu0
        %v1756 = vadd.f32 %v1683, %v1755
        %v1757 = vpop.f32.mrf.mxu0
        %v1758 = vadd.f32 %v1685, %v1757
        %1759 = vmatmul.bf16.gmra.mxu0 %v1238
        %v1760 = vpop.f32.mrf.mxu0
        %v1761 = vadd.f32 %v1688, %v1760
        %v1762 = vpop.f32.mrf.mxu0
        %v1763 = vadd.f32 %v1690, %v1762
        %1764 = vmatmul.bf16.gmra.mxu0 %v1240
        %v1765 = vpop.f32.mrf.mxu0
        %v1766 = vadd.f32 %v1693, %v1765
        %v1767 = vpop.f32.mrf.mxu0
        %v1768 = vadd.f32 %v1695, %v1767
        %1769 = vmatmul.bf16.gmra.mxu0 %v1242
        %v1770 = vpop.f32.mrf.mxu0
        %v1771 = vadd.f32 %v1698, %v1770
        %v1772 = vpop.f32.mrf.mxu0
        %v1773 = vadd.f32 %v1700, %v1772
        %1774 = vmatmul.bf16.gmra.mxu0 %v1244
        %v1775 = vpop.f32.mrf.mxu0
        %v1776 = vadd.f32 %v1703, %v1775
        %v1777 = vpop.f32.mrf.mxu0
        %v1778 = vadd.f32 %v1705, %v1777
        %1779 = vmatmul.bf16.gmra.mxu0 %v1246
        %v1780 = vpop.f32.mrf.mxu0
        %v1781 = vadd.f32 %v1708, %v1780
        %v1782 = vpop.f32.mrf.mxu0
        %v1783 = vadd.f32 %v1710, %v1782
        %1784 = vmatmul.bf16.gmra.mxu0 %v1248
        %v1785 = vpop.f32.mrf.mxu0
        %v1786 = vadd.f32 %v1713, %v1785
        %v1787 = vpop.f32.mrf.mxu0
        %1788 = vdwg.mxu0
        %v1789 = vmul.f32 %v1580, 0.5
        %v1790 = vmul.f32 %v1726, 0.5
        %v1791 = vmul.f32 %v1582, 0.5
        %v1792 = vmul.f32 %v1728, 0.5
        %v1793 = vmul.f32 %v1585, 0.5
        %v1794 = vmul.f32 %v1731, 0.5
        %v1795 = vmul.f32 %v1587, 0.5
        %v1796 = vmul.f32 %v1733, 0.5
        %v1797 = vmul.f32 %v1590, 0.5
        %v1798 = vmul.f32 %v1736, 0.5
        %v1799 = vmul.f32 %v1592, 0.5
        %v1800 = vmul.f32 %v1738, 0.5
        %v1801 = vmul.f32 %v1595, 0.5
        %v1802 = vmul.f32 %v1741, 0.5
        %v1803 = vmul.f32 %v1597, 0.5
        %v1804 = vmul.f32 %v1743, 0.5
        %v1805 = vmul.f32 %v1600, 0.5
        %v1806 = vmul.f32 %v1746, 0.5
        %v1807 = vmul.f32 %v1602, 0.5
        %v1808 = vmul.f32 %v1748, 0.5
        %v1809 = vmul.f32 %v1605, 0.5
        %v1810 = vmul.f32 %v1751, 0.5
        %v1811 = vmul.f32 %v1607, 0.5
        %v1812 = vmul.f32 %v1753, 0.5
        %v1813 = vmul.f32 %v1610, 0.5
        %v1814 = vmul.f32 %v1756, 0.5
        %v1815 = vmul.f32 %v1612, 0.5
        %v1816 = vmul.f32 %v1758, 0.5
        %v1817 = vmul.f32 %v1615, 0.5
        %v1818 = vmul.f32 %v1761, 0.5
        %v1819 = vmul.f32 %v1617, 0.5
        %v1820 = vmul.f32 %v1763, 0.5
        %v1821 = vmul.f32 %v1620, 0.5
        %v1822 = vmul.f32 %v1766, 0.5
        %v1823 = vmul.f32 %v1622, 0.5
        %v1824 = vmul.f32 %v1768, 0.5
        %v1825 = vmul.f32 %v1625, 0.5
        %v1826 = vmul.f32 %v1771, 0.5
        %v1827 = vmul.f32 %v1627, 0.5
        %v1828 = vmul.f32 %v1773, 0.5
        %v1829 = vmul.f32 %v1630, 0.5
        %v1830 = vmul.f32 %v1776, 0.5
        %v1831 = vmul.f32 %v1632, 0.5
        %v1832 = vmul.f32 %v1778, 0.5
        %v1833 = vmul.f32 %v1635, 0.5
        %v1834 = vmul.f32 %v1781, 0.5
        %v1835 = vmul.f32 %v1637, 0.5
        %v1836 = vmul.f32 %v1783, 0.5
        %v1837 = vmul.f32 %v1640, 0.5
        %v1838 = vmul.f32 %v1786, 0.5
        %v1839 = vmul.f32 %v1580, 0.044715
        %v1840 = vmul.f32 %v1726, 0.044715
        %v1841 = vmul.f32 %v1582, 0.044715
        %v1842 = vmul.f32 %v1728, 0.044715
        %v1843 = vmul.f32 %v1585, 0.044715
        %v1844 = vmul.f32 %v1731, 0.044715
        %v1845 = vmul.f32 %v1587, 0.044715
        %v1846 = vmul.f32 %v1733, 0.044715
        %v1847 = vmul.f32 %v1590, 0.044715
        %v1848 = vmul.f32 %v1736, 0.044715
        %v1849 = vmul.f32 %v1592, 0.044715
        %v1850 = vmul.f32 %v1738, 0.044715
        %v1851 = vmul.f32 %v1595, 0.044715
        %v1852 = vmul.f32 %v1741, 0.044715
        %v1853 = vmul.f32 %v1597, 0.044715
        %v1854 = vmul.f32 %v1743, 0.044715
        %v1855 = vmul.f32 %v1600, 0.044715
        %v1856 = vmul.f32 %v1746, 0.044715
        %v1857 = vmul.f32 %v1602, 0.044715
        %v1858 = vmul.f32 %v1748, 0.044715
        %v1859 = vmul.f32 %v1605, 0.044715
        %v1860 = vmul.f32 %v1751, 0.044715
        %v1861 = vmul.f32 %v1607, 0.044715
        %v1862 = vmul.f32 %v1753, 0.044715
        %v1863 = vmul.f32 %v1610, 0.044715
        %v1864 = vmul.f32 %v1756, 0.044715
        %v1865 = vmul.f32 %v1612, 0.044715
        %v1866 = vmul.f32 %v1758, 0.044715
        %v1867 = vmul.f32 %v1615, 0.044715
        %v1868 = vmul.f32 %v1761, 0.044715
        %v1869 = vmul.f32 %v1617, 0.044715
        %v1870 = vmul.f32 %v1763, 0.044715
        %v1871 = vmul.f32 %v1620, 0.044715
        %v1872 = vmul.f32 %v1766, 0.044715
        %v1873 = vmul.f32 %v1622, 0.044715
        %v1874 = vmul.f32 %v1768, 0.044715
        %v1875 = vmul.f32 %v1625, 0.044715
        %v1876 = vmul.f32 %v1771, 0.044715
        %v1877 = vmul.f32 %v1627, 0.044715
        %v1878 = vmul.f32 %v1773, 0.044715
        %v1879 = vmul.f32 %v1630, 0.044715
        %v1880 = vmul.f32 %v1776, 0.044715
        %v1881 = vmul.f32 %v1632, 0.044715
        %v1882 = vmul.f32 %v1778, 0.044715
        %v1883 = vmul.f32 %v1635, 0.044715
        %v1884 = vmul.f32 %v1781, 0.044715
        %v1885 = vmul.f32 %v1637, 0.044715
        %v1886 = vmul.f32 %v1783, 0.044715
        %v1887 = vmul.f32 %v1640, 0.044715
        %v1888 = vmul.f32 %v1786, 0.044715
        %v1889 = vmul.f32 %v1839, %v1580
        %v1890 = vmul.f32 %v1840, %v1726
        %v1891 = vmul.f32 %v1841, %v1582
        %v1892 = vmul.f32 %v1842, %v1728
        %v1893 = vmul.f32 %v1843, %v1585
        %v1894 = vmul.f32 %v1844, %v1731
        %v1895 = vmul.f32 %v1845, %v1587
        %v1896 = vmul.f32 %v1846, %v1733
        %v1897 = vmul.f32 %v1847, %v1590
        %v1898 = vmul.f32 %v1848, %v1736
        %v1899 = vmul.f32 %v1849, %v1592
        %v1900 = vmul.f32 %v1850, %v1738
        %v1901 = vmul.f32 %v1851, %v1595
        %v1902 = vmul.f32 %v1852, %v1741
        %v1903 = vmul.f32 %v1853, %v1597
        %v1904 = vmul.f32 %v1854, %v1743
        %v1905 = vmul.f32 %v1855, %v1600
        %v1906 = vmul.f32 %v1856, %v1746
        %v1907 = vmul.f32 %v1857, %v1602
        %v1908 = vmul.f32 %v1858, %v1748
        %v1909 = vmul.f32 %v1859, %v1605
        %v1910 = vmul.f32 %v1860, %v1751
        %v1911 = vmul.f32 %v1861, %v1607
        %v1912 = vmul.f32 %v1862, %v1753
        %v1913 = vmul.f32 %v1863, %v1610
        %v1914 = vmul.f32 %v1864, %v1756
        %v1915 = vmul.f32 %v1865, %v1612
        %v1916 = vmul.f32 %v1866, %v1758
        %v1917 = vmul.f32 %v1867, %v1615
        %v1918 = vmul.f32 %v1868, %v1761
        %v1919 = vmul.f32 %v1869, %v1617
        %v1920 = vmul.f32 %v1870, %v1763
        %v1921 = vmul.f32 %v1871, %v1620
        %v1922 = vmul.f32 %v1872, %v1766
        %v1923 = vmul.f32 %v1873, %v1622
        %v1924 = vmul.f32 %v1874, %v1768
        %v1925 = vmul.f32 %v1875, %v1625
        %v1926 = vmul.f32 %v1876, %v1771
        %v1927 = vmul.f32 %v1877, %v1627
        %v1928 = vmul.f32 %v1878, %v1773
        %v1929 = vmul.f32 %v1879, %v1630
        %v1930 = vmul.f32 %v1880, %v1776
        %v1931 = vmul.f32 %v1881, %v1632
        %v1932 = vmul.f32 %v1882, %v1778
        %v1933 = vmul.f32 %v1883, %v1635
        %v1934 = vmul.f32 %v1884, %v1781
        %v1935 = vmul.f32 %v1885, %v1637
        %v1936 = vmul.f32 %v1886, %v1783
        %v1937 = vmul.f32 %v1887, %v1640
        %v1938 = vmul.f32 %v1888, %v1786
        %v1939 = vmul.f32 %v1889, %v1580
        %v1940 = vmul.f32 %v1890, %v1726
        %v1941 = vmul.f32 %v1891, %v1582
        %v1942 = vmul.f32 %v1892, %v1728
        %v1943 = vmul.f32 %v1893, %v1585
        %v1944 = vmul.f32 %v1894, %v1731
        %v1945 = vmul.f32 %v1895, %v1587
        %v1946 = vmul.f32 %v1896, %v1733
        %v1947 = vmul.f32 %v1897, %v1590
        %v1948 = vmul.f32 %v1898, %v1736
        %v1949 = vmul.f32 %v1899, %v1592
        %v1950 = vmul.f32 %v1900, %v1738
        %v1951 = vmul.f32 %v1901, %v1595
        %v1952 = vmul.f32 %v1902, %v1741
        %v1953 = vmul.f32 %v1903, %v1597
        %v1954 = vmul.f32 %v1904, %v1743
        %v1955 = vmul.f32 %v1905, %v1600
        %v1956 = vmul.f32 %v1906, %v1746
        %v1957 = vmul.f32 %v1907, %v1602
        %v1958 = vmul.f32 %v1908, %v1748
        %v1959 = vmul.f32 %v1909, %v1605
        %v1960 = vmul.f32 %v1910, %v1751
        %v1961 = vmul.f32 %v1911, %v1607
        %v1962 = vmul.f32 %v1912, %v1753
        %v1963 = vmul.f32 %v1913, %v1610
        %v1964 = vmul.f32 %v1914, %v1756
        %v1965 = vmul.f32 %v1915, %v1612
        %v1966 = vmul.f32 %v1916, %v1758
        %v1967 = vmul.f32 %v1917, %v1615
        %v1968 = vmul.f32 %v1918, %v1761
        %v1969 = vmul.f32 %v1919, %v1617
        %v1970 = vmul.f32 %v1920, %v1763
        %v1971 = vmul.f32 %v1921, %v1620
        %v1972 = vmul.f32 %v1922, %v1766
        %v1973 = vmul.f32 %v1923, %v1622
        %v1974 = vmul.f32 %v1924, %v1768
        %v1975 = vmul.f32 %v1925, %v1625
        %v1976 = vmul.f32 %v1926, %v1771
        %v1977 = vmul.f32 %v1927, %v1627
        %v1978 = vmul.f32 %v1928, %v1773
        %v1979 = vmul.f32 %v1929, %v1630
        %v1980 = vmul.f32 %v1930, %v1776
        %v1981 = vmul.f32 %v1931, %v1632
        %v1982 = vmul.f32 %v1932, %v1778
        %v1983 = vmul.f32 %v1933, %v1635
        %v1984 = vmul.f32 %v1934, %v1781
        %v1985 = vmul.f32 %v1935, %v1637
        %v1986 = vmul.f32 %v1936, %v1783
        %v1987 = vmul.f32 %v1937, %v1640
        %v1988 = vmul.f32 %v1938, %v1786
        %v1989 = vadd.f32 %v1580, %v1939
        %v1990 = vadd.f32 %v1726, %v1940
        %v1991 = vadd.f32 %v1582, %v1941
        %v1992 = vadd.f32 %v1728, %v1942
        %v1993 = vadd.f32 %v1585, %v1943
        %v1994 = vadd.f32 %v1731, %v1944
        %v1995 = vadd.f32 %v1587, %v1945
        %v1996 = vadd.f32 %v1733, %v1946
        %v1997 = vadd.f32 %v1590, %v1947
        %v1998 = vadd.f32 %v1736, %v1948
        %v1999 = vadd.f32 %v1592, %v1949
        %v2000 = vadd.f32 %v1738, %v1950
        %v2001 = vadd.f32 %v1595, %v1951
        %v2002 = vadd.f32 %v1741, %v1952
        %v2003 = vadd.f32 %v1597, %v1953
        %v2004 = vadd.f32 %v1743, %v1954
        %v2005 = vadd.f32 %v1600, %v1955
        %v2006 = vadd.f32 %v1746, %v1956
        %v2007 = vadd.f32 %v1602, %v1957
        %v2008 = vadd.f32 %v1748, %v1958
        %v2009 = vadd.f32 %v1605, %v1959
        %v2010 = vadd.f32 %v1751, %v1960
        %v2011 = vadd.f32 %v1607, %v1961
        %v2012 = vadd.f32 %v1753, %v1962
        %v2013 = vadd.f32 %v1610, %v1963
        %v2014 = vadd.f32 %v1756, %v1964
        %v2015 = vadd.f32 %v1612, %v1965
        %v2016 = vadd.f32 %v1758, %v1966
        %v2017 = vadd.f32 %v1615, %v1967
        %v2018 = vadd.f32 %v1761, %v1968
        %v2019 = vadd.f32 %v1617, %v1969
        %v2020 = vadd.f32 %v1763, %v1970
        %v2021 = vadd.f32 %v1620, %v1971
        %v2022 = vadd.f32 %v1766, %v1972
        %v2023 = vadd.f32 %v1622, %v1973
        %v2024 = vadd.f32 %v1768, %v1974
        %v2025 = vadd.f32 %v1625, %v1975
        %v2026 = vadd.f32 %v1771, %v1976
        %v2027 = vadd.f32 %v1627, %v1977
        %v2028 = vadd.f32 %v1773, %v1978
        %v2029 = vadd.f32 %v1630, %v1979
        %v2030 = vadd.f32 %v1776, %v1980
        %v2031 = vadd.f32 %v1632, %v1981
        %v2032 = vadd.f32 %v1778, %v1982
        %v2033 = vadd.f32 %v1635, %v1983
        %v2034 = vadd.f32 %v1781, %v1984
        %v2035 = vadd.f32 %v1637, %v1985
        %v2036 = vadd.f32 %v1783, %v1986
        %v2037 = vadd.f32 %v1640, %v1987
        %v2038 = vadd.f32 %v1786, %v1988
        %v2039 = vmul.f32 %v1989, 0.7978846
        %v2040 = vmul.f32 %v1990, 0.7978846
        %v2041 = vmul.f32 %v1991, 0.7978846
        %v2042 = vmul.f32 %v1992, 0.7978846
        %v2043 = vmul.f32 %v1993, 0.7978846
        %v2044 = vmul.f32 %v1994, 0.7978846
        %v2045 = vmul.f32 %v1995, 0.7978846
        %v2046 = vmul.f32 %v1996, 0.7978846
        %v2047 = vmul.f32 %v1997, 0.7978846
        %v2048 = vmul.f32 %v1998, 0.7978846
        %v2049 = vmul.f32 %v1999, 0.7978846
        %v2050 = vmul.f32 %v2000, 0.7978846
        %v2051 = vmul.f32 %v2001, 0.7978846
        %v2052 = vmul.f32 %v2002, 0.7978846
        %v2053 = vmul.f32 %v2003, 0.7978846
        %v2054 = vmul.f32 %v2004, 0.7978846
        %v2055 = vmul.f32 %v2005, 0.7978846
        %v2056 = vmul.f32 %v2006, 0.7978846
        %v2057 = vmul.f32 %v2007, 0.7978846
        %v2058 = vmul.f32 %v2008, 0.7978846
        %v2059 = vmul.f32 %v2009, 0.7978846
        %v2060 = vmul.f32 %v2010, 0.7978846
        %v2061 = vmul.f32 %v2011, 0.7978846
        %v2062 = vmul.f32 %v2012, 0.7978846
        %v2063 = vmul.f32 %v2013, 0.7978846
        %v2064 = vmul.f32 %v2014, 0.7978846
        %v2065 = vmul.f32 %v2015, 0.7978846
        %v2066 = vmul.f32 %v2016, 0.7978846
        %v2067 = vmul.f32 %v2017, 0.7978846
        %v2068 = vmul.f32 %v2018, 0.7978846
        %v2069 = vmul.f32 %v2019, 0.7978846
        %v2070 = vmul.f32 %v2020, 0.7978846
        %v2071 = vmul.f32 %v2021, 0.7978846
        %v2072 = vmul.f32 %v2022, 0.7978846
        %v2073 = vmul.f32 %v2023, 0.7978846
        %v2074 = vmul.f32 %v2024, 0.7978846
        %v2075 = vmul.f32 %v2025, 0.7978846
        %v2076 = vmul.f32 %v2026, 0.7978846
        %v2077 = vmul.f32 %v2027, 0.7978846
        %v2078 = vmul.f32 %v2028, 0.7978846
        %v2079 = vmul.f32 %v2029, 0.7978846
        %v2080 = vmul.f32 %v2030, 0.7978846
        %v2081 = vmul.f32 %v2031, 0.7978846
        %v2082 = vmul.f32 %v2032, 0.7978846
        %v2083 = vmul.f32 %v2033, 0.7978846
        %v2084 = vmul.f32 %v2034, 0.7978846
        %v2085 = vmul.f32 %v2035, 0.7978846
        %v2086 = vmul.f32 %v2036, 0.7978846
        %v2087 = vmul.f32 %v2037, 0.7978846
        %v2088 = vmul.f32 %v2038, 0.7978846
        %v2089 = vtanh.pop %v2039
        %v2090 = vtanh.pop %v2040
        %v2091 = vtanh.pop %v2041
        %v2092 = vtanh.pop %v2042
        %v2093 = vtanh.pop %v2043
        %v2094 = vtanh.pop %v2044
        %v2095 = vtanh.pop %v2045
        %v2096 = vtanh.pop %v2046
        %v2097 = vtanh.pop %v2047
        %v2098 = vtanh.pop %v2048
        %v2099 = vtanh.pop %v2049
        %v2100 = vtanh.pop %v2050
        %v2101 = vtanh.pop %v2051
        %v2102 = vtanh.pop %v2052
        %v2103 = vtanh.pop %v2053
        %v2104 = vtanh.pop %v2054
        %v2105 = vtanh.pop %v2055
        %v2106 = vtanh.pop %v2056
        %v2107 = vtanh.pop %v2057
        %v2108 = vtanh.pop %v2058
        %v2109 = vtanh.pop %v2059
        %v2110 = vtanh.pop %v2060
        %v2111 = vtanh.pop %v2061
        %v2112 = vtanh.pop %v2062
        %v2113 = vtanh.pop %v2063
        %v2114 = vtanh.pop %v2064
        %v2115 = vtanh.pop %v2065
        %v2116 = vtanh.pop %v2066
        %v2117 = vtanh.pop %v2067
        %v2118 = vtanh.pop %v2068
        %v2119 = vtanh.pop %v2069
        %v2120 = vtanh.pop %v2070
        %v2121 = vtanh.pop %v2071
        %v2122 = vtanh.pop %v2072
        %v2123 = vtanh.pop %v2073
        %v2124 = vtanh.pop %v2074
        %v2125 = vtanh.pop %v2075
        %v2126 = vtanh.pop %v2076
        %v2127 = vtanh.pop %v2077
        %v2128 = vtanh.pop %v2078
        %v2129 = vtanh.pop %v2079
        %v2130 = vtanh.pop %v2080
        %v2131 = vtanh.pop %v2081
        %v2132 = vtanh.pop %v2082
        %v2133 = vtanh.pop %v2083
        %v2134 = vtanh.pop %v2084
        %v2135 = vtanh.pop %v2085
        %v2136 = vtanh.pop %v2086
        %v2137 = vtanh.pop %v2087
        %v2138 = vtanh.pop %v2088
        %v2139 = vadd.f32 %v2089, 1.0
        %v2140 = vadd.f32 %v2090, 1.0
        %v2141 = vadd.f32 %v2091, 1.0
        %v2142 = vadd.f32 %v2092, 1.0
        %v2143 = vadd.f32 %v2093, 1.0
        %v2144 = vadd.f32 %v2094, 1.0
        %v2145 = vadd.f32 %v2095, 1.0
        %v2146 = vadd.f32 %v2096, 1.0
        %v2147 = vadd.f32 %v2097, 1.0
        %v2148 = vadd.f32 %v2098, 1.0
        %v2149 = vadd.f32 %v2099, 1.0
        %v2150 = vadd.f32 %v2100, 1.0
        %v2151 = vadd.f32 %v2101, 1.0
        %v2152 = vadd.f32 %v2102, 1.0
        %v2153 = vadd.f32 %v2103, 1.0
        %v2154 = vadd.f32 %v2104, 1.0
        %v2155 = vadd.f32 %v2105, 1.0
        %v2156 = vadd.f32 %v2106, 1.0
        %v2157 = vadd.f32 %v2107, 1.0
        %v2158 = vadd.f32 %v2108, 1.0
        %v2159 = vadd.f32 %v2109, 1.0
        %v2160 = vadd.f32 %v2110, 1.0
        %v2161 = vadd.f32 %v2111, 1.0
        %v2162 = vadd.f32 %v2112, 1.0
        %v2163 = vadd.f32 %v2113, 1.0
        %v2164 = vadd.f32 %v2114, 1.0
        %v2165 = vadd.f32 %v2115, 1.0
        %v2166 = vadd.f32 %v2116, 1.0
        %v2167 = vadd.f32 %v2117, 1.0
        %v2168 = vadd.f32 %v2118, 1.0
        %v2169 = vadd.f32 %v2119, 1.0
        %v2170 = vadd.f32 %v2120, 1.0
        %v2171 = vadd.f32 %v2121, 1.0
        %v2172 = vadd.f32 %v2122, 1.0
        %v2173 = vadd.f32 %v2123, 1.0
        %v2174 = vadd.f32 %v2124, 1.0
        %v2175 = vadd.f32 %v2125, 1.0
        %v2176 = vadd.f32 %v2126, 1.0
        %v2177 = vadd.f32 %v2127, 1.0
        %v2178 = vadd.f32 %v2128, 1.0
        %v2179 = vadd.f32 %v2129, 1.0
        %v2180 = vadd.f32 %v2130, 1.0
        %v2181 = vadd.f32 %v2131, 1.0
        %v2182 = vadd.f32 %v2132, 1.0
        %v2183 = vadd.f32 %v2133, 1.0
        %v2184 = vadd.f32 %v2134, 1.0
        %v2185 = vadd.f32 %v2135, 1.0
        %v2186 = vadd.f32 %v2136, 1.0
        %v2187 = vadd.f32 %v2137, 1.0
        %v2188 = vadd.f32 %v2138, 1.0
        %v2189 = vmul.f32 %v1789, %v2139
        %v2190 = vmul.f32 %v1790, %v2140
        %v2191 = vmul.f32 %v1791, %v2141
        %v2192 = vmul.f32 %v1792, %v2142
        %v2193 = vmul.f32 %v1793, %v2143
        %v2194 = vmul.f32 %v1794, %v2144
        %v2195 = vmul.f32 %v1795, %v2145
        %v2196 = vmul.f32 %v1796, %v2146
        %v2197 = vmul.f32 %v1797, %v2147
        %v2198 = vmul.f32 %v1798, %v2148
        %v2199 = vmul.f32 %v1799, %v2149
        %v2200 = vmul.f32 %v1800, %v2150
        %v2201 = vmul.f32 %v1801, %v2151
        %v2202 = vmul.f32 %v1802, %v2152
        %v2203 = vmul.f32 %v1803, %v2153
        %v2204 = vmul.f32 %v1804, %v2154
        %v2205 = vmul.f32 %v1805, %v2155
        %v2206 = vmul.f32 %v1806, %v2156
        %v2207 = vmul.f32 %v1807, %v2157
        %v2208 = vmul.f32 %v1808, %v2158
        %v2209 = vmul.f32 %v1809, %v2159
        %v2210 = vmul.f32 %v1810, %v2160
        %v2211 = vmul.f32 %v1811, %v2161
        %v2212 = vmul.f32 %v1812, %v2162
        %v2213 = vmul.f32 %v1813, %v2163
        %v2214 = vmul.f32 %v1814, %v2164
        %v2215 = vmul.f32 %v1815, %v2165
        %v2216 = vmul.f32 %v1816, %v2166
        %v2217 = vmul.f32 %v1817, %v2167
        %v2218 = vmul.f32 %v1818, %v2168
        %v2219 = vmul.f32 %v1819, %v2169
        %v2220 = vmul.f32 %v1820, %v2170
        %v2221 = vmul.f32 %v1821, %v2171
        %v2222 = vmul.f32 %v1822, %v2172
        %v2223 = vmul.f32 %v1823, %v2173
        %v2224 = vmul.f32 %v1824, %v2174
        %v2225 = vmul.f32 %v1825, %v2175
        %v2226 = vmul.f32 %v1826, %v2176
        %v2227 = vmul.f32 %v1827, %v2177
        %v2228 = vmul.f32 %v1828, %v2178
        %v2229 = vmul.f32 %v1829, %v2179
        %v2230 = vmul.f32 %v1830, %v2180
        %v2231 = vmul.f32 %v1831, %v2181
        %v2232 = vmul.f32 %v1832, %v2182
        %v2233 = vmul.f32 %v1833, %v2183
        %v2234 = vmul.f32 %v1834, %v2184
        %v2235 = vmul.f32 %v1835, %v2185
        %v2236 = vmul.f32 %v1836, %v2186
        %v2237 = vmul.f32 %v1837, %v2187
        %v2238 = vmul.f32 %v1838, %v2188
        %v2239 = vld [vmem:[#allocation2] sm:$0xff]
        %v2240 = vld [vmem:[#allocation2 + $0x8] sm:$0xff]
        %v2241 = vld [vmem:[#allocation2 + $0x10] sm:$0xff]
        %v2242 = vld [vmem:[#allocation2 + $0x18] sm:$0xff]
        %v2243 = vld [vmem:[#allocation2 + $0x20] sm:$0xff]
        %v2244 = vld [vmem:[#allocation2 + $0x28] sm:$0xff]
        %v2245 = vld [vmem:[#allocation2 + $0x30] sm:$0xff]
        %v2246 = vld [vmem:[#allocation2 + $0x38] sm:$0xff]
        %v2247 = vld [vmem:[#allocation2 + $0x40] sm:$0xff]
        %v2248 = vld [vmem:[#allocation2 + $0x48] sm:$0xff]
        %v2249 = vld [vmem:[#allocation2 + $0x50] sm:$0xff]
        %v2250 = vld [vmem:[#allocation2 + $0x58] sm:$0xff]
        %v2251 = vld [vmem:[#allocation2 + $0x60] sm:$0xff]
        %v2252 = vld [vmem:[#allocation2 + $0x68] sm:$0xff]
        %v2253 = vld [vmem:[#allocation2 + $0x70] sm:$0xff]
        %v2254 = vld [vmem:[#allocation2 + $0x78] sm:$0xff]
        %v2255 = vld [vmem:[#allocation2 + $0x80] sm:$0xff]
        %v2256 = vld [vmem:[#allocation2 + $0x88] sm:$0xff]
        %v2257 = vld [vmem:[#allocation2 + $0x90] sm:$0xff]
        %v2258 = vld [vmem:[#allocation2 + $0x98] sm:$0xff]
        %v2259 = vld [vmem:[#allocation2 + $0xa0] sm:$0xff]
        %v2260 = vld [vmem:[#allocation2 + $0xa8] sm:$0xff]
        %v2261 = vld [vmem:[#allocation2 + $0xb0] sm:$0xff]
        %v2262 = vld [vmem:[#allocation2 + $0xb8] sm:$0xff]
        %v2263 = vld [vmem:[#allocation2 + $0xc0] sm:$0xff]
        %v2264 = vld [vmem:[#allocation2 + $0xc8] sm:$0xff]
        %v2265 = vld [vmem:[#allocation2 + $0xd0] sm:$0xff]
        %v2266 = vld [vmem:[#allocation2 + $0xd8] sm:$0xff]
        %v2267 = vld [vmem:[#allocation2 + $0xe0] sm:$0xff]
        %v2268 = vld [vmem:[#allocation2 + $0xe8] sm:$0xff]
        %v2269 = vld [vmem:[#allocation2 + $0xf0] sm:$0xff]
        %v2270 = vld [vmem:[#allocation2 + $0xf8] sm:$0xff]
        %v2271 = vld [vmem:[#allocation2 + $0x100] sm:$0xff]
        %v2272 = vld [vmem:[#allocation2 + $0x108] sm:$0xff]
        %v2273 = vld [vmem:[#allocation2 + $0x110] sm:$0xff]
        %v2274 = vld [vmem:[#allocation2 + $0x118] sm:$0xff]
        %v2275 = vld [vmem:[#allocation2 + $0x120] sm:$0xff]
        %v2276 = vld [vmem:[#allocation2 + $0x128] sm:$0xff]
        %v2277 = vld [vmem:[#allocation2 + $0x130] sm:$0xff]
        %v2278 = vld [vmem:[#allocation2 + $0x138] sm:$0xff]
        %v2279 = vld [vmem:[#allocation2 + $0x140] sm:$0xff]
        %v2280 = vld [vmem:[#allocation2 + $0x148] sm:$0xff]
        %v2281 = vld [vmem:[#allocation2 + $0x150] sm:$0xff]
        %v2282 = vld [vmem:[#allocation2 + $0x158] sm:$0xff]
        %v2283 = vld [vmem:[#allocation2 + $0x160] sm:$0xff]
        %v2284 = vld [vmem:[#allocation2 + $0x168] sm:$0xff]
        %v2285 = vld [vmem:[#allocation2 + $0x170] sm:$0xff]
        %v2286 = vld [vmem:[#allocation2 + $0x178] sm:$0xff]
        %v2287 = vld [vmem:[#allocation2 + $0x180] sm:$0xff]
        %v2288 = vld [vmem:[#allocation2 + $0x188] sm:$0xff]
        %v2289 = vpack.c.bf16 %v2191, %v2189
        %v2290 = vpack.c.bf16 %v2192, %v2190
        %v2291 = vpack.c.bf16 %v2195, %v2193
        %v2292 = vpack.c.bf16 %v2196, %v2194
        %v2293 = vpack.c.bf16 %v2199, %v2197
        %v2294 = vpack.c.bf16 %v2200, %v2198
        %v2295 = vpack.c.bf16 %v2203, %v2201
        %v2296 = vpack.c.bf16 %v2204, %v2202
        %v2297 = vpack.c.bf16 %v2207, %v2205
        %v2298 = vpack.c.bf16 %v2208, %v2206
        %v2299 = vpack.c.bf16 %v2211, %v2209
        %v2300 = vpack.c.bf16 %v2212, %v2210
        %v2301 = vpack.c.bf16 %v2215, %v2213
        %v2302 = vpack.c.bf16 %v2216, %v2214
        %v2303 = vpack.c.bf16 %v2219, %v2217
        %v2304 = vpack.c.bf16 %v2220, %v2218
        %v2305 = vpack.c.bf16 %v2223, %v2221
        %v2306 = vpack.c.bf16 %v2224, %v2222
        %v2307 = vpack.c.bf16 %v2227, %v2225
        %v2308 = vpack.c.bf16 %v2228, %v2226
        %v2309 = vpack.c.bf16 %v2231, %v2229
        %v2310 = vpack.c.bf16 %v2232, %v2230
        %v2311 = vpack.c.bf16 %v2235, %v2233
        %v2312 = vpack.c.bf16 %v2236, %v2234
        %v2313 = vpack.c.bf16 %v2237, %v2237
        %v2314 = vpack.c.bf16 %v2238, %v2238
        %v2315 = vld [vmem:[#allocation12] sm:$0xff]
        %v2316 = vld [vmem:[#allocation12 + $0x8] sm:$0xff]
        %v2317 = vld [vmem:[#allocation12 + $0x10] sm:$0xff]
        %v2318 = vld [vmem:[#allocation12 + $0x18] sm:$0xff]
        %v2319 = vld [vmem:[#allocation12 + $0x20] sm:$0xff]
        %v2320 = vld [vmem:[#allocation12 + $0x28] sm:$0xff]
        %v2321 = vld [vmem:[#allocation12 + $0x30] sm:$0xff]
        %v2322 = vld [vmem:[#allocation12 + $0x38] sm:$0xff]
        %v2323 = vld [vmem:[#allocation12 + $0x40] sm:$0xff]
        %v2324 = vld [vmem:[#allocation12 + $0x48] sm:$0xff]
        %v2325 = vld [vmem:[#allocation12 + $0x50] sm:$0xff]
        %v2326 = vld [vmem:[#allocation12 + $0x58] sm:$0xff]
        %v2327 = vld [vmem:[#allocation12 + $0x60] sm:$0xff]
        %v2328 = vld [vmem:[#allocation12 + $0x68] sm:$0xff]
        %v2329 = vld [vmem:[#allocation12 + $0x70] sm:$0xff]
        %v2330 = vld [vmem:[#allocation12 + $0x78] sm:$0xff]
        %v2331 = vld [vmem:[#allocation12 + $0x80] sm:$0xff]
        %v2332 = vld [vmem:[#allocation12 + $0x88] sm:$0xff]
        %v2333 = vld [vmem:[#allocation12 + $0x90] sm:$0xff]
        %v2334 = vld [vmem:[#allocation12 + $0x98] sm:$0xff]
        %v2335 = vld [vmem:[#allocation12 + $0xa0] sm:$0xff]
        %v2336 = vld [vmem:[#allocation12 + $0xa8] sm:$0xff]
        %v2337 = vld [vmem:[#allocation12 + $0xb0] sm:$0xff]
        %v2338 = vld [vmem:[#allocation12 + $0xb8] sm:$0xff]
        %v2339 = vld [vmem:[#allocation12 + $0xc0] sm:$0xff]
        %v2340 = vld [vmem:[#allocation12 + $0xc8] sm:$0xff]
        %v2341 = vld [vmem:[#allocation12 + $0xd0] sm:$0xff]
        %v2342 = vld [vmem:[#allocation12 + $0xd8] sm:$0xff]
        %v2343 = vld [vmem:[#allocation12 + $0xe0] sm:$0xff]
        %v2344 = vld [vmem:[#allocation12 + $0xe8] sm:$0xff]
        %v2345 = vld [vmem:[#allocation12 + $0xf0] sm:$0xff]
        %v2346 = vld [vmem:[#allocation12 + $0xf8] sm:$0xff]
        %v2379 = vunpack.c.l.b16 %v2315
        %v2380 = vunpack.c.h.b16 %v2315
        %v2381 = vunpack.c.l.b16 %v2316
        %v2382 = vunpack.c.h.b16 %v2316
        %v2383 = vunpack.c.l.b16 %v2317
        %v2384 = vunpack.c.h.b16 %v2317
        %v2385 = vunpack.c.l.b16 %v2318
        %v2386 = vunpack.c.h.b16 %v2318
        %v2387 = vunpack.c.l.b16 %v2319
        %v2388 = vunpack.c.h.b16 %v2319
        %v2389 = vunpack.c.l.b16 %v2320
        %v2390 = vunpack.c.h.b16 %v2320
        %v2391 = vunpack.c.l.b16 %v2321
        %v2392 = vunpack.c.h.b16 %v2321
        %v2393 = vunpack.c.l.b16 %v2322
        %v2394 = vunpack.c.h.b16 %v2322
        %v2395 = vunpack.c.l.b16 %v2323
        %v2396 = vunpack.c.h.b16 %v2323
        %v2397 = vunpack.c.l.b16 %v2324
        %v2398 = vunpack.c.h.b16 %v2324
        %v2399 = vunpack.c.l.b16 %v2325
        %v2400 = vunpack.c.h.b16 %v2325
        %v2401 = vunpack.c.l.b16 %v2326
        %v2402 = vunpack.c.h.b16 %v2326
        %v2403 = vunpack.c.l.b16 %v2327
        %v2404 = vunpack.c.h.b16 %v2327
        %v2405 = vunpack.c.l.b16 %v2328
        %v2406 = vunpack.c.h.b16 %v2328
        %v2407 = vunpack.c.l.b16 %v2329
        %v2408 = vunpack.c.h.b16 %v2329
        %v2409 = vunpack.c.l.b16 %v2330
        %v2410 = vunpack.c.h.b16 %v2330
        %v2411 = vunpack.c.l.b16 %v2331
        %v2412 = vunpack.c.h.b16 %v2331
        %v2413 = vunpack.c.l.b16 %v2332
        %v2414 = vunpack.c.h.b16 %v2332
        %v2415 = vunpack.c.l.b16 %v2333
        %v2416 = vunpack.c.h.b16 %v2333
        %v2417 = vunpack.c.l.b16 %v2334
        %v2418 = vunpack.c.h.b16 %v2334
        %v2419 = vunpack.c.l.b16 %v2335
        %v2420 = vunpack.c.h.b16 %v2335
        %v2421 = vunpack.c.l.b16 %v2336
        %v2422 = vunpack.c.h.b16 %v2336
        %v2423 = vunpack.c.l.b16 %v2337
        %v2424 = vunpack.c.h.b16 %v2337
        %v2425 = vunpack.c.l.b16 %v2338
        %v2426 = vunpack.c.h.b16 %v2338
        %v2427 = vunpack.c.l.b16 %v2339
        %v2428 = vunpack.c.h.b16 %v2339
        %v2429 = vunpack.c.l.b16 %v2340
        %v2430 = vunpack.c.h.b16 %v2340
        %v2431 = vunpack.c.l.b16 %v2341
        %v2432 = vunpack.c.h.b16 %v2341
        %v2433 = vunpack.c.l.b16 %v2342
        %v2434 = vunpack.c.h.b16 %v2342
        %v2435 = vunpack.c.l.b16 %v2343
        %v2436 = vunpack.c.h.b16 %v2343
        %v2437 = vunpack.c.l.b16 %v2344
        %v2438 = vunpack.c.h.b16 %v2344
        %v2439 = vunpack.c.l.b16 %v2345
        %v2440 = vunpack.c.h.b16 %v2345
        %v2441 = vunpack.c.l.b16 %v2346
        %v2442 = vunpack.c.h.b16 %v2346
        %v2443 = vpack.c.b16 %v2381, %v2379
        %v2444 = vpack.c.b16 %v2382, %v2380
        %v2445 = vpack.c.b16 %v2385, %v2383
        %v2446 = vpack.c.b16 %v2386, %v2384
        %v2447 = vpack.c.b16 %v2389, %v2387
        %v2448 = vpack.c.b16 %v2390, %v2388
        %v2449 = vpack.c.b16 %v2393, %v2391
        %v2450 = vpack.c.b16 %v2394, %v2392
        %v2451 = vpack.c.b16 %v2397, %v2395
        %v2452 = vpack.c.b16 %v2398, %v2396
        %v2453 = vpack.c.b16 %v2401, %v2399
        %v2454 = vpack.c.b16 %v2402, %v2400
        %v2455 = vpack.c.b16 %v2405, %v2403
        %v2456 = vpack.c.b16 %v2406, %v2404
        %v2457 = vpack.c.b16 %v2409, %v2407
        %v2458 = vpack.c.b16 %v2410, %v2408
        %v2459 = vpack.c.b16 %v2413, %v2411
        %v2460 = vpack.c.b16 %v2414, %v2412
        %v2461 = vpack.c.b16 %v2417, %v2415
        %v2462 = vpack.c.b16 %v2418, %v2416
        %v2463 = vpack.c.b16 %v2421, %v2419
        %v2464 = vpack.c.b16 %v2422, %v2420
        %v2465 = vpack.c.b16 %v2425, %v2423
        %v2466 = vpack.c.b16 %v2426, %v2424
        %v2467 = vpack.c.b16 %v2429, %v2427
        %v2468 = vpack.c.b16 %v2430, %v2428
        %v2469 = vpack.c.b16 %v2433, %v2431
        %v2470 = vpack.c.b16 %v2434, %v2432
        %v2471 = vpack.c.b16 %v2437, %v2435
        %v2472 = vpack.c.b16 %v2438, %v2436
        %v2473 = vpack.c.b16 %v2441, %v2439
        %v2474 = vpack.c.b16 %v2442, %v2440
        %2507 = vmatpush.bf16.msra.mxu0 %v2457
        %2508 = vmatpush.bf16.msra.mxu0 %v2455
        %2509 = vmatpush.bf16.msra.mxu0 %v2453
        %2510 = vmatpush.bf16.msra.mxu0 %v2451
        %2511 = vmatpush.bf16.msra.mxu0 %v2449
        %2512 = vmatpush.bf16.msra.mxu0 %v2447
        %2513 = vmatpush.bf16.msra.mxu0 %v2445
        %2514 = vmatpush.bf16.msra.mxu0 %v2443
        %2515 = vmatmul.bf16.gmra.mxu0 %v2289
        %v2516 = vpop.f32.mrf.mxu0
        %v2517 = vadd.f32 0.0, %v2516
        %v2518 = vpop.f32.mrf.mxu0
        %v2519 = vadd.f32 0.0, %v2518
        %2520 = vmatmul.bf16.gmra.mxu0 %v2291
        %v2521 = vpop.f32.mrf.mxu0
        %v2522 = vadd.f32 0.0, %v2521
        %v2523 = vpop.f32.mrf.mxu0
        %v2524 = vadd.f32 0.0, %v2523
        %2525 = vmatmul.bf16.gmra.mxu0 %v2293
        %v2526 = vpop.f32.mrf.mxu0
        %v2527 = vadd.f32 0.0, %v2526
        %v2528 = vpop.f32.mrf.mxu0
        %v2529 = vadd.f32 0.0, %v2528
        %2530 = vmatmul.bf16.gmra.mxu0 %v2295
        %v2531 = vpop.f32.mrf.mxu0
        %v2532 = vadd.f32 0.0, %v2531
        %v2533 = vpop.f32.mrf.mxu0
        %v2534 = vadd.f32 0.0, %v2533
        %2535 = vmatmul.bf16.gmra.mxu0 %v2297
        %v2536 = vpop.f32.mrf.mxu0
        %v2537 = vadd.f32 0.0, %v2536
        %v2538 = vpop.f32.mrf.mxu0
        %v2539 = vadd.f32 0.0, %v2538
        %2540 = vmatmul.bf16.gmra.mxu0 %v2299
        %v2541 = vpop.f32.mrf.mxu0
        %v2542 = vadd.f32 0.0, %v2541
        %v2543 = vpop.f32.mrf.mxu0
        %v2544 = vadd.f32 0.0, %v2543
        %2545 = vmatmul.bf16.gmra.mxu0 %v2301
        %v2546 = vpop.f32.mrf.mxu0
        %v2547 = vadd.f32 0.0, %v2546
        %v2548 = vpop.f32.mrf.mxu0
        %v2549 = vadd.f32 0.0, %v2548
        %2550 = vmatmul.bf16.gmra.mxu0 %v2303
        %v2551 = vpop.f32.mrf.mxu0
        %v2552 = vadd.f32 0.0, %v2551
        %v2553 = vpop.f32.mrf.mxu0
        %v2554 = vadd.f32 0.0, %v2553
        %2555 = vmatmul.bf16.gmra.mxu0 %v2305
        %v2556 = vpop.f32.mrf.mxu0
        %v2557 = vadd.f32 0.0, %v2556
        %v2558 = vpop.f32.mrf.mxu0
        %v2559 = vadd.f32 0.0, %v2558
        %2560 = vmatmul.bf16.gmra.mxu0 %v2307
        %v2561 = vpop.f32.mrf.mxu0
        %v2562 = vadd.f32 0.0, %v2561
        %v2563 = vpop.f32.mrf.mxu0
        %v2564 = vadd.f32 0.0, %v2563
        %2565 = vmatmul.bf16.gmra.mxu0 %v2309
        %v2566 = vpop.f32.mrf.mxu0
        %v2567 = vadd.f32 0.0, %v2566
        %v2568 = vpop.f32.mrf.mxu0
        %v2569 = vadd.f32 0.0, %v2568
        %2570 = vmatmul.bf16.gmra.mxu0 %v2311
        %v2571 = vpop.f32.mrf.mxu0
        %v2572 = vadd.f32 0.0, %v2571
        %v2573 = vpop.f32.mrf.mxu0
        %v2574 = vadd.f32 0.0, %v2573
        %2575 = vmatmul.bf16.gmra.mxu0 %v2313
        %v2576 = vpop.f32.mrf.mxu0
        %v2577 = vadd.f32 0.0, %v2576
        %v2578 = vpop.f32.mrf.mxu0
        %2579 = vdwg.mxu0
        %2580 = vmatpush.bf16.msra.mxu0 %v2473
        %2581 = vmatpush.bf16.msra.mxu0 %v2471
        %2582 = vmatpush.bf16.msra.mxu0 %v2469
        %2583 = vmatpush.bf16.msra.mxu0 %v2467
        %2584 = vmatpush.bf16.msra.mxu0 %v2465
        %2585 = vmatpush.bf16.msra.mxu0 %v2463
        %2586 = vmatpush.bf16.msra.mxu0 %v2461
        %2587 = vmatpush.bf16.msra.mxu0 %v2459
        %2588 = vmatmul.bf16.gmra.mxu0 %v2290
        %v2589 = vpop.f32.mrf.mxu0
        %v2590 = vadd.f32 %v2517, %v2589
        %v2591 = vpop.f32.mrf.mxu0
        %v2592 = vadd.f32 %v2519, %v2591
        %2593 = vmatmul.bf16.gmra.mxu0 %v2292
        %v2594 = vpop.f32.mrf.mxu0
        %v2595 = vadd.f32 %v2522, %v2594
        %v2596 = vpop.f32.mrf.mxu0
        %v2597 = vadd.f32 %v2524, %v2596
        %2598 = vmatmul.bf16.gmra.mxu0 %v2294
        %v2599 = vpop.f32.mrf.mxu0
        %v2600 = vadd.f32 %v2527, %v2599
        %v2601 = vpop.f32.mrf.mxu0
        %v2602 = vadd.f32 %v2529, %v2601
        %2603 = vmatmul.bf16.gmra.mxu0 %v2296
        %v2604 = vpop.f32.mrf.mxu0
        %v2605 = vadd.f32 %v2532, %v2604
        %v2606 = vpop.f32.mrf.mxu0
        %v2607 = vadd.f32 %v2534, %v2606
        %2608 = vmatmul.bf16.gmra.mxu0 %v2298
        %v2609 = vpop.f32.mrf.mxu0
        %v2610 = vadd.f32 %v2537, %v2609
        %v2611 = vpop.f32.mrf.mxu0
        %v2612 = vadd.f32 %v2539, %v2611
        %2613 = vmatmul.bf16.gmra.mxu0 %v2300
        %v2614 = vpop.f32.mrf.mxu0
        %v2615 = vadd.f32 %v2542, %v2614
        %v2616 = vpop.f32.mrf.mxu0
        %v2617 = vadd.f32 %v2544, %v2616
        %2618 = vmatmul.bf16.gmra.mxu0 %v2302
        %v2619 = vpop.f32.mrf.mxu0
        %v2620 = vadd.f32 %v2547, %v2619
        %v2621 = vpop.f32.mrf.mxu0
        %v2622 = vadd.f32 %v2549, %v2621
        %2623 = vmatmul.bf16.gmra.mxu0 %v2304
        %v2624 = vpop.f32.mrf.mxu0
        %v2625 = vadd.f32 %v2552, %v2624
        %v2626 = vpop.f32.mrf.mxu0
        %v2627 = vadd.f32 %v2554, %v2626
        %2628 = vmatmul.bf16.gmra.mxu0 %v2306
        %v2629 = vpop.f32.mrf.mxu0
        %v2630 = vadd.f32 %v2557, %v2629
        %v2631 = vpop.f32.mrf.mxu0
        %v2632 = vadd.f32 %v2559, %v2631
        %2633 = vmatmul.bf16.gmra.mxu0 %v2308
        %v2634 = vpop.f32.mrf.mxu0
        %v2635 = vadd.f32 %v2562, %v2634
        %v2636 = vpop.f32.mrf.mxu0
        %v2637 = vadd.f32 %v2564, %v2636
        %2638 = vmatmul.bf16.gmra.mxu0 %v2310
        %v2639 = vpop.f32.mrf.mxu0
        %v2640 = vadd.f32 %v2567, %v2639
        %v2641 = vpop.f32.mrf.mxu0
        %v2642 = vadd.f32 %v2569, %v2641
        %2643 = vmatmul.bf16.gmra.mxu0 %v2312
        %v2644 = vpop.f32.mrf.mxu0
        %v2645 = vadd.f32 %v2572, %v2644
        %v2646 = vpop.f32.mrf.mxu0
        %v2647 = vadd.f32 %v2574, %v2646
        %2648 = vmatmul.bf16.gmra.mxu0 %v2314
        %v2649 = vpop.f32.mrf.mxu0
        %v2650 = vadd.f32 %v2577, %v2649
        %v2651 = vpop.f32.mrf.mxu0
        %2652 = vdwg.mxu0
        %2653 = vmatpush.bf16.msra.mxu0 %v2458
        %2654 = vmatpush.bf16.msra.mxu0 %v2456
        %2655 = vmatpush.bf16.msra.mxu0 %v2454
        %2656 = vmatpush.bf16.msra.mxu0 %v2452
        %2657 = vmatpush.bf16.msra.mxu0 %v2450
        %2658 = vmatpush.bf16.msra.mxu0 %v2448
        %2659 = vmatpush.bf16.msra.mxu0 %v2446
        %2660 = vmatpush.bf16.msra.mxu0 %v2444
        %2661 = vmatmul.bf16.gmra.mxu0 %v2289
        %v2662 = vpop.f32.mrf.mxu0
        %v2663 = vadd.f32 0.0, %v2662
        %v2664 = vpop.f32.mrf.mxu0
        %v2665 = vadd.f32 0.0, %v2664
        %2666 = vmatmul.bf16.gmra.mxu0 %v2291
        %v2667 = vpop.f32.mrf.mxu0
        %v2668 = vadd.f32 0.0, %v2667
        %v2669 = vpop.f32.mrf.mxu0
        %v2670 = vadd.f32 0.0, %v2669
        %2671 = vmatmul.bf16.gmra.mxu0 %v2293
        %v2672 = vpop.f32.mrf.mxu0
        %v2673 = vadd.f32 0.0, %v2672
        %v2674 = vpop.f32.mrf.mxu0
        %v2675 = vadd.f32 0.0, %v2674
        %2676 = vmatmul.bf16.gmra.mxu0 %v2295
        %v2677 = vpop.f32.mrf.mxu0
        %v2678 = vadd.f32 0.0, %v2677
        %v2679 = vpop.f32.mrf.mxu0
        %v2680 = vadd.f32 0.0, %v2679
        %2681 = vmatmul.bf16.gmra.mxu0 %v2297
        %v2682 = vpop.f32.mrf.mxu0
        %v2683 = vadd.f32 0.0, %v2682
        %v2684 = vpop.f32.mrf.mxu0
        %v2685 = vadd.f32 0.0, %v2684
        %2686 = vmatmul.bf16.gmra.mxu0 %v2299
        %v2687 = vpop.f32.mrf.mxu0
        %v2688 = vadd.f32 0.0, %v2687
        %v2689 = vpop.f32.mrf.mxu0
        %v2690 = vadd.f32 0.0, %v2689
        %2691 = vmatmul.bf16.gmra.mxu0 %v2301
        %v2692 = vpop.f32.mrf.mxu0
        %v2693 = vadd.f32 0.0, %v2692
        %v2694 = vpop.f32.mrf.mxu0
        %v2695 = vadd.f32 0.0, %v2694
        %2696 = vmatmul.bf16.gmra.mxu0 %v2303
        %v2697 = vpop.f32.mrf.mxu0
        %v2698 = vadd.f32 0.0, %v2697
        %v2699 = vpop.f32.mrf.mxu0
        %v2700 = vadd.f32 0.0, %v2699
        %2701 = vmatmul.bf16.gmra.mxu0 %v2305
        %v2702 = vpop.f32.mrf.mxu0
        %v2703 = vadd.f32 0.0, %v2702
        %v2704 = vpop.f32.mrf.mxu0
        %v2705 = vadd.f32 0.0, %v2704
        %2706 = vmatmul.bf16.gmra.mxu0 %v2307
        %v2707 = vpop.f32.mrf.mxu0
        %v2708 = vadd.f32 0.0, %v2707
        %v2709 = vpop.f32.mrf.mxu0
        %v2710 = vadd.f32 0.0, %v2709
        %2711 = vmatmul.bf16.gmra.mxu0 %v2309
        %v2712 = vpop.f32.mrf.mxu0
        %v2713 = vadd.f32 0.0, %v2712
        %v2714 = vpop.f32.mrf.mxu0
        %v2715 = vadd.f32 0.0, %v2714
        %2716 = vmatmul.bf16.gmra.mxu0 %v2311
        %v2717 = vpop.f32.mrf.mxu0
        %v2718 = vadd.f32 0.0, %v2717
        %v2719 = vpop.f32.mrf.mxu0
        %v2720 = vadd.f32 0.0, %v2719
        %2721 = vmatmul.bf16.gmra.mxu0 %v2313
        %v2722 = vpop.f32.mrf.mxu0
        %v2723 = vadd.f32 0.0, %v2722
        %v2724 = vpop.f32.mrf.mxu0
        %2725 = vdwg.mxu0
        %2726 = vmatpush.bf16.msra.mxu0 %v2474
        %2727 = vmatpush.bf16.msra.mxu0 %v2472
        %2728 = vmatpush.bf16.msra.mxu0 %v2470
        %2729 = vmatpush.bf16.msra.mxu0 %v2468
        %2730 = vmatpush.bf16.msra.mxu0 %v2466
        %2731 = vmatpush.bf16.msra.mxu0 %v2464
        %2732 = vmatpush.bf16.msra.mxu0 %v2462
        %2733 = vmatpush.bf16.msra.mxu0 %v2460
        %2734 = vmatmul.bf16.gmra.mxu0 %v2290
        %v2735 = vpop.f32.mrf.mxu0
        %v2736 = vadd.f32 %v2663, %v2735
        %v2737 = vpop.f32.mrf.mxu0
        %v2738 = vadd.f32 %v2665, %v2737
        %2739 = vmatmul.bf16.gmra.mxu0 %v2292
        %v2740 = vpop.f32.mrf.mxu0
        %v2741 = vadd.f32 %v2668, %v2740
        %v2742 = vpop.f32.mrf.mxu0
        %v2743 = vadd.f32 %v2670, %v2742
        %2744 = vmatmul.bf16.gmra.mxu0 %v2294
        %v2745 = vpop.f32.mrf.mxu0
        %v2746 = vadd.f32 %v2673, %v2745
        %v2747 = vpop.f32.mrf.mxu0
        %v2748 = vadd.f32 %v2675, %v2747
        %2749 = vmatmul.bf16.gmra.mxu0 %v2296
        %v2750 = vpop.f32.mrf.mxu0
        %v2751 = vadd.f32 %v2678, %v2750
        %v2752 = vpop.f32.mrf.mxu0
        %v2753 = vadd.f32 %v2680, %v2752
        %2754 = vmatmul.bf16.gmra.mxu0 %v2298
        %v2755 = vpop.f32.mrf.mxu0
        %v2756 = vadd.f32 %v2683, %v2755
        %v2757 = vpop.f32.mrf.mxu0
        %v2758 = vadd.f32 %v2685, %v2757
        %2759 = vmatmul.bf16.gmra.mxu0 %v2300
        %v2760 = vpop.f32.mrf.mxu0
        %v2761 = vadd.f32 %v2688, %v2760
        %v2762 = vpop.f32.mrf.mxu0
        %v2763 = vadd.f32 %v2690, %v2762
        %2764 = vmatmul.bf16.gmra.mxu0 %v2302
        %v2765 = vpop.f32.mrf.mxu0
        %v2766 = vadd.f32 %v2693, %v2765
        %v2767 = vpop.f32.mrf.mxu0
        %v2768 = vadd.f32 %v2695, %v2767
        %2769 = vmatmul.bf16.gmra.mxu0 %v2304
        %v2770 = vpop.f32.mrf.mxu0
        %v2771 = vadd.f32 %v2698, %v2770
        %v2772 = vpop.f32.mrf.mxu0
        %v2773 = vadd.f32 %v2700, %v2772
        %2774 = vmatmul.bf16.gmra.mxu0 %v2306
        %v2775 = vpop.f32.mrf.mxu0
        %v2776 = vadd.f32 %v2703, %v2775
        %v2777 = vpop.f32.mrf.mxu0
        %v2778 = vadd.f32 %v2705, %v2777
        %2779 = vmatmul.bf16.gmra.mxu0 %v2308
        %v2780 = vpop.f32.mrf.mxu0
        %v2781 = vadd.f32 %v2708, %v2780
        %v2782 = vpop.f32.mrf.mxu0
        %v2783 = vadd.f32 %v2710, %v2782
        %2784 = vmatmul.bf16.gmra.mxu0 %v2310
        %v2785 = vpop.f32.mrf.mxu0
        %v2786 = vadd.f32 %v2713, %v2785
        %v2787 = vpop.f32.mrf.mxu0
        %v2788 = vadd.f32 %v2715, %v2787
        %2789 = vmatmul.bf16.gmra.mxu0 %v2312
        %v2790 = vpop.f32.mrf.mxu0
        %v2791 = vadd.f32 %v2718, %v2790
        %v2792 = vpop.f32.mrf.mxu0
        %v2793 = vadd.f32 %v2720, %v2792
        %2794 = vmatmul.bf16.gmra.mxu0 %v2314
        %v2795 = vpop.f32.mrf.mxu0
        %v2796 = vadd.f32 %v2723, %v2795
        %v2797 = vpop.f32.mrf.mxu0
        %2798 = vdwg.mxu0
        %v2799 = vadd.f32 %v2239, %v2590
        %v2800 = vadd.f32 %v2240, %v2736
        %v2801 = vadd.f32 %v2241, %v2592
        %v2802 = vadd.f32 %v2242, %v2738
        %v2803 = vadd.f32 %v2243, %v2595
        %v2804 = vadd.f32 %v2244, %v2741
        %v2805 = vadd.f32 %v2245, %v2597
        %v2806 = vadd.f32 %v2246, %v2743
        %v2807 = vadd.f32 %v2247, %v2600
        %v2808 = vadd.f32 %v2248, %v2746
        %v2809 = vadd.f32 %v2249, %v2602
        %v2810 = vadd.f32 %v2250, %v2748
        %v2811 = vadd.f32 %v2251, %v2605
        %v2812 = vadd.f32 %v2252, %v2751
        %v2813 = vadd.f32 %v2253, %v2607
        %v2814 = vadd.f32 %v2254, %v2753
        %v2815 = vadd.f32 %v2255, %v2610
        %v2816 = vadd.f32 %v2256, %v2756
        %v2817 = vadd.f32 %v2257, %v2612
        %v2818 = vadd.f32 %v2258, %v2758
        %v2819 = vadd.f32 %v2259, %v2615
        %v2820 = vadd.f32 %v2260, %v2761
        %v2821 = vadd.f32 %v2261, %v2617
        %v2822 = vadd.f32 %v2262, %v2763
        %v2823 = vadd.f32 %v2263, %v2620
        %v2824 = vadd.f32 %v2264, %v2766
        %v2825 = vadd.f32 %v2265, %v2622
        %v2826 = vadd.f32 %v2266, %v2768
        %v2827 = vadd.f32 %v2267, %v2625
        %v2828 = vadd.f32 %v2268, %v2771
        %v2829 = vadd.f32 %v2269, %v2627
        %v2830 = vadd.f32 %v2270, %v2773
        %v2831 = vadd.f32 %v2271, %v2630
        %v2832 = vadd.f32 %v2272, %v2776
        %v2833 = vadd.f32 %v2273, %v2632
        %v2834 = vadd.f32 %v2274, %v2778
        %v2835 = vadd.f32 %v2275, %v2635
        %v2836 = vadd.f32 %v2276, %v2781
        %v2837 = vadd.f32 %v2277, %v2637
        %v2838 = vadd.f32 %v2278, %v2783
        %v2839 = vadd.f32 %v2279, %v2640
        %v2840 = vadd.f32 %v2280, %v2786
        %v2841 = vadd.f32 %v2281, %v2642
        %v2842 = vadd.f32 %v2282, %v2788
        %v2843 = vadd.f32 %v2283, %v2645
        %v2844 = vadd.f32 %v2284, %v2791
        %v2845 = vadd.f32 %v2285, %v2647
        %v2846 = vadd.f32 %v2286, %v2793
        %v2847 = vadd.f32 %v2287, %v2650
        %v2848 = vadd.f32 %v2288, %v2796
        %2849 = vst [vmem:[#allocation2] sm:$0xff] %v2799
        %2850 = vst [vmem:[#allocation2 + $0x8] sm:$0xff] %v2800
        %2851 = vst [vmem:[#allocation2 + $0x10] sm:$0xff] %v2801
        %2852 = vst [vmem:[#allocation2 + $0x18] sm:$0xff] %v2802
        %2853 = vst [vmem:[#allocation2 + $0x20] sm:$0xff] %v2803
        %2854 = vst [vmem:[#allocation2 + $0x28] sm:$0xff] %v2804
        %2855 = vst [vmem:[#allocation2 + $0x30] sm:$0xff] %v2805
        %2856 = vst [vmem:[#allocation2 + $0x38] sm:$0xff] %v2806
        %2857 = vst [vmem:[#allocation2 + $0x40] sm:$0xff] %v2807
        %2858 = vst [vmem:[#allocation2 + $0x48] sm:$0xff] %v2808
        %2859 = vst [vmem:[#allocation2 + $0x50] sm:$0xff] %v2809
        %2860 = vst [vmem:[#allocation2 + $0x58] sm:$0xff] %v2810
        %2861 = vst [vmem:[#allocation2 + $0x60] sm:$0xff] %v2811
        %2862 = vst [vmem:[#allocation2 + $0x68] sm:$0xff] %v2812
        %2863 = vst [vmem:[#allocation2 + $0x70] sm:$0xff] %v2813
        %2864 = vst [vmem:[#allocation2 + $0x78] sm:$0xff] %v2814
        %2865 = vst [vmem:[#allocation2 + $0x80] sm:$0xff] %v2815
        %2866 = vst [vmem:[#allocation2 + $0x88] sm:$0xff] %v2816
        %2867 = vst [vmem:[#allocation2 + $0x90] sm:$0xff] %v2817
        %2868 = vst [vmem:[#allocation2 + $0x98] sm:$0xff] %v2818
        %2869 = vst [vmem:[#allocation2 + $0xa0] sm:$0xff] %v2819
        %2870 = vst [vmem:[#allocation2 + $0xa8] sm:$0xff] %v2820
        %2871 = vst [vmem:[#allocation2 + $0xb0] sm:$0xff] %v2821
        %2872 = vst [vmem:[#allocation2 + $0xb8] sm:$0xff] %v2822
        %2873 = vst [vmem:[#allocation2 + $0xc0] sm:$0xff] %v2823
        %2874 = vst [vmem:[#allocation2 + $0xc8] sm:$0xff] %v2824
        %2875 = vst [vmem:[#allocation2 + $0xd0] sm:$0xff] %v2825
        %2876 = vst [vmem:[#allocation2 + $0xd8] sm:$0xff] %v2826
        %2877 = vst [vmem:[#allocation2 + $0xe0] sm:$0xff] %v2827
        %2878 = vst [vmem:[#allocation2 + $0xe8] sm:$0xff] %v2828
        %2879 = vst [vmem:[#allocation2 + $0xf0] sm:$0xff] %v2829
        %2880 = vst [vmem:[#allocation2 + $0xf8] sm:$0xff] %v2830
        %2881 = vst [vmem:[#allocation2 + $0x100] sm:$0xff] %v2831
        %2882 = vst [vmem:[#allocation2 + $0x108] sm:$0xff] %v2832
        %2883 = vst [vmem:[#allocation2 + $0x110] sm:$0xff] %v2833
        %2884 = vst [vmem:[#allocation2 + $0x118] sm:$0xff] %v2834
        %2885 = vst [vmem:[#allocation2 + $0x120] sm:$0xff] %v2835
        %2886 = vst [vmem:[#allocation2 + $0x128] sm:$0xff] %v2836
        %2887 = vst [vmem:[#allocation2 + $0x130] sm:$0xff] %v2837
        %2888 = vst [vmem:[#allocation2 + $0x138] sm:$0xff] %v2838
        %2889 = vst [vmem:[#allocation2 + $0x140] sm:$0xff] %v2839
        %2890 = vst [vmem:[#allocation2 + $0x148] sm:$0xff] %v2840
        %2891 = vst [vmem:[#allocation2 + $0x150] sm:$0xff] %v2841
        %2892 = vst [vmem:[#allocation2 + $0x158] sm:$0xff] %v2842
        %2893 = vst [vmem:[#allocation2 + $0x160] sm:$0xff] %v2843
        %2894 = vst [vmem:[#allocation2 + $0x168] sm:$0xff] %v2844
        %2895 = vst [vmem:[#allocation2 + $0x170] sm:$0xff] %v2845
        %2896 = vst [vmem:[#allocation2 + $0x178] sm:$0xff] %v2846
        %2897 = vst [vmem:[#allocation2 + $0x180] sm:$0xff] %v2847
        %2898 = vst [vmem:[#allocation2 + $0x188] sm:$0xff] %v2848
        %v2899 = vld [vmem:[#allocation9 + $0x8] sm:$0xff]
        %v2900 = vld [vmem:[#allocation9 + $0x20] sm:$0xff]
        %v2901 = vld [vmem:[#allocation9 + $0x38] sm:$0xff]
        %v2902 = vld [vmem:[#allocation9 + $0x50] sm:$0xff]
        %v2903 = vld [vmem:[#allocation9 + $0x68] sm:$0xff]
        %v2904 = vld [vmem:[#allocation9 + $0x80] sm:$0xff]
        %v2905 = vld [vmem:[#allocation9 + $0x98] sm:$0xff]
        %v2906 = vld [vmem:[#allocation9 + $0xb0] sm:$0xff]
        %v2907 = vld [vmem:[#allocation9 + $0xc8] sm:$0xff]
        %v2908 = vld [vmem:[#allocation9 + $0xe0] sm:$0xff]
        %v2909 = vld [vmem:[#allocation9 + $0xf8] sm:$0xff]
        %v2910 = vld [vmem:[#allocation9 + $0x110] sm:$0xff]
        %v2911 = vld [vmem:[#allocation9 + $0x128] sm:$0xff]
        %v2912 = vld [vmem:[#allocation9 + $0x140] sm:$0xff]
        %v2913 = vld [vmem:[#allocation9 + $0x158] sm:$0xff]
        %v2914 = vld [vmem:[#allocation9 + $0x170] sm:$0xff]
        %v2915 = vld [vmem:[#allocation9 + $0x188] sm:$0xff]
        %v2916 = vld [vmem:[#allocation9 + $0x1a0] sm:$0xff]
        %v2917 = vld [vmem:[#allocation9 + $0x1b8] sm:$0xff]
        %v2918 = vld [vmem:[#allocation9 + $0x1d0] sm:$0xff]
        %v2919 = vld [vmem:[#allocation9 + $0x1e8] sm:$0xff]
        %v2920 = vld [vmem:[#allocation9 + $0x200] sm:$0xff]
        %v2921 = vld [vmem:[#allocation9 + $0x218] sm:$0xff]
        %v2922 = vld [vmem:[#allocation9 + $0x230] sm:$0xff]
        %v2923 = vld [vmem:[#allocation9 + $0x248] sm:$0xff]
        %v2924 = vld [vmem:[#allocation9 + $0x260] sm:$0xff]
        %v2925 = vld [vmem:[#allocation9 + $0x278] sm:$0xff]
        %v2926 = vld [vmem:[#allocation9 + $0x290] sm:$0xff]
        %v2927 = vld [vmem:[#allocation9 + $0x2a8] sm:$0xff]
        %v2928 = vld [vmem:[#allocation9 + $0x2c0] sm:$0xff]
        %v2929 = vld [vmem:[#allocation9 + $0x2d8] sm:$0xff]
        %v2930 = vld [vmem:[#allocation9 + $0x2f0] sm:$0xff]
        %v2931 = vld [vmem:[#allocation11 + $0x2] sm:$0x3]
        %v2933 = vperm.slane %v2931, 0
        %v2934 = vperm.slane %v2931, 1
        %v2969 = vunpack.c.l.b16 %v2899
        %v2970 = vunpack.c.h.b16 %v2899
        %v2971 = vunpack.c.l.b16 %v2900
        %v2972 = vunpack.c.h.b16 %v2900
        %v2973 = vunpack.c.l.b16 %v2901
        %v2974 = vunpack.c.h.b16 %v2901
        %v2975 = vunpack.c.l.b16 %v2902
        %v2976 = vunpack.c.h.b16 %v2902
        %v2977 = vunpack.c.l.b16 %v2903
        %v2978 = vunpack.c.h.b16 %v2903
        %v2979 = vunpack.c.l.b16 %v2904
        %v2980 = vunpack.c.h.b16 %v2904
        %v2981 = vunpack.c.l.b16 %v2905
        %v2982 = vunpack.c.h.b16 %v2905
        %v2983 = vunpack.c.l.b16 %v2906
        %v2984 = vunpack.c.h.b16 %v2906
        %v2985 = vunpack.c.l.b16 %v2907
        %v2986 = vunpack.c.h.b16 %v2907
        %v2987 = vunpack.c.l.b16 %v2908
        %v2988 = vunpack.c.h.b16 %v2908
        %v2989 = vunpack.c.l.b16 %v2909
        %v2990 = vunpack.c.h.b16 %v2909
        %v2991 = vunpack.c.l.b16 %v2910
        %v2992 = vunpack.c.h.b16 %v2910
        %v2993 = vunpack.c.l.b16 %v2911
        %v2994 = vunpack.c.h.b16 %v2911
        %v2995 = vunpack.c.l.b16 %v2912
        %v2996 = vunpack.c.h.b16 %v2912
        %v2997 = vunpack.c.l.b16 %v2913
        %v2998 = vunpack.c.h.b16 %v2913
        %v2999 = vunpack.c.l.b16 %v2914
        %v3000 = vunpack.c.h.b16 %v2914
        %v3001 = vunpack.c.l.b16 %v2915
        %v3002 = vunpack.c.h.b16 %v2915
        %v3003 = vunpack.c.l.b16 %v2916
        %v3004 = vunpack.c.h.b16 %v2916
        %v3005 = vunpack.c.l.b16 %v2917
        %v3006 = vunpack.c.h.b16 %v2917
        %v3007 = vunpack.c.l.b16 %v2918
        %v3008 = vunpack.c.h.b16 %v2918
        %v3009 = vunpack.c.l.b16 %v2919
        %v3010 = vunpack.c.h.b16 %v2919
        %v3011 = vunpack.c.l.b16 %v2920
        %v3012 = vunpack.c.h.b16 %v2920
        %v3013 = vunpack.c.l.b16 %v2921
        %v3014 = vunpack.c.h.b16 %v2921
        %v3015 = vunpack.c.l.b16 %v2922
        %v3016 = vunpack.c.h.b16 %v2922
        %v3017 = vunpack.c.l.b16 %v2923
        %v3018 = vunpack.c.h.b16 %v2923
        %v3019 = vunpack.c.l.b16 %v2924
        %v3020 = vunpack.c.h.b16 %v2924
        %v3021 = vunpack.c.l.b16 %v2925
        %v3022 = vunpack.c.h.b16 %v2925
        %v3023 = vunpack.c.l.b16 %v2926
        %v3024 = vunpack.c.h.b16 %v2926
        %v3025 = vunpack.c.l.b16 %v2927
        %v3026 = vunpack.c.h.b16 %v2927
        %v3027 = vunpack.c.l.b16 %v2928
        %v3028 = vunpack.c.h.b16 %v2928
        %v3029 = vunpack.c.l.b16 %v2929
        %v3030 = vunpack.c.h.b16 %v2929
        %v3031 = vunpack.c.l.b16 %v2930
        %v3032 = vunpack.c.h.b16 %v2930
        %v3033 = vpack.c.b16 %v2971, %v2969
        %v3034 = vpack.c.b16 %v2972, %v2970
        %v3035 = vpack.c.b16 %v2975, %v2973
        %v3036 = vpack.c.b16 %v2976, %v2974
        %v3037 = vpack.c.b16 %v2979, %v2977
        %v3038 = vpack.c.b16 %v2980, %v2978
        %v3039 = vpack.c.b16 %v2983, %v2981
        %v3040 = vpack.c.b16 %v2984, %v2982
        %v3041 = vpack.c.b16 %v2987, %v2985
        %v3042 = vpack.c.b16 %v2988, %v2986
        %v3043 = vpack.c.b16 %v2991, %v2989
        %v3044 = vpack.c.b16 %v2992, %v2990
        %v3045 = vpack.c.b16 %v2995, %v2993
        %v3046 = vpack.c.b16 %v2996, %v2994
        %v3047 = vpack.c.b16 %v2999, %v2997
        %v3048 = vpack.c.b16 %v3000, %v2998
        %v3049 = vpack.c.b16 %v3003, %v3001
        %v3050 = vpack.c.b16 %v3004, %v3002
        %v3051 = vpack.c.b16 %v3007, %v3005
        %v3052 = vpack.c.b16 %v3008, %v3006
        %v3053 = vpack.c.b16 %v3011, %v3009
        %v3054 = vpack.c.b16 %v3012, %v3010
        %v3055 = vpack.c.b16 %v3015, %v3013
        %v3056 = vpack.c.b16 %v3016, %v3014
        %v3057 = vpack.c.b16 %v3019, %v3017
        %v3058 = vpack.c.b16 %v3020, %v3018
        %v3059 = vpack.c.b16 %v3023, %v3021
        %v3060 = vpack.c.b16 %v3024, %v3022
        %v3061 = vpack.c.b16 %v3027, %v3025
        %v3062 = vpack.c.b16 %v3028, %v3026
        %v3063 = vpack.c.b16 %v3031, %v3029
        %v3064 = vpack.c.b16 %v3032, %v3030
        %3097 = vmatpush.bf16.msra.mxu0 %v3047
        %3098 = vmatpush.bf16.msra.mxu0 %v3045
        %3099 = vmatpush.bf16.msra.mxu0 %v3043
        %3100 = vmatpush.bf16.msra.mxu0 %v3041
        %3101 = vmatpush.bf16.msra.mxu0 %v3039
        %3102 = vmatpush.bf16.msra.mxu0 %v3037
        %3103 = vmatpush.bf16.msra.mxu0 %v3035
        %3104 = vmatpush.bf16.msra.mxu0 %v3033
        %3105 = vmatmul.bf16.gmra.mxu0 %v1223
        %v3106 = vpop.f32.mrf.mxu0
        %v3107 = vadd.f32 %v2933, %v3106
        %v3108 = vpop.f32.mrf.mxu0
        %v3109 = vadd.f32 %v2933, %v3108
        %3110 = vmatmul.bf16.gmra.mxu0 %v1225
        %v3111 = vpop.f32.mrf.mxu0
        %v3112 = vadd.f32 %v2933, %v3111
        %v3113 = vpop.f32.mrf.mxu0
        %v3114 = vadd.f32 %v2933, %v3113
        %3115 = vmatmul.bf16.gmra.mxu0 %v1227
        %v3116 = vpop.f32.mrf.mxu0
        %v3117 = vadd.f32 %v2933, %v3116
        %v3118 = vpop.f32.mrf.mxu0
        %v3119 = vadd.f32 %v2933, %v3118
        %3120 = vmatmul.bf16.gmra.mxu0 %v1229
        %v3121 = vpop.f32.mrf.mxu0
        %v3122 = vadd.f32 %v2933, %v3121
        %v3123 = vpop.f32.mrf.mxu0
        %v3124 = vadd.f32 %v2933, %v3123
        %3125 = vmatmul.bf16.gmra.mxu0 %v1231
        %v3126 = vpop.f32.mrf.mxu0
        %v3127 = vadd.f32 %v2933, %v3126
        %v3128 = vpop.f32.mrf.mxu0
        %v3129 = vadd.f32 %v2933, %v3128
        %3130 = vmatmul.bf16.gmra.mxu0 %v1233
        %v3131 = vpop.f32.mrf.mxu0
        %v3132 = vadd.f32 %v2933, %v3131
        %v3133 = vpop.f32.mrf.mxu0
        %v3134 = vadd.f32 %v2933, %v3133
        %3135 = vmatmul.bf16.gmra.mxu0 %v1235
        %v3136 = vpop.f32.mrf.mxu0
        %v3137 = vadd.f32 %v2933, %v3136
        %v3138 = vpop.f32.mrf.mxu0
        %v3139 = vadd.f32 %v2933, %v3138
        %3140 = vmatmul.bf16.gmra.mxu0 %v1237
        %v3141 = vpop.f32.mrf.mxu0
        %v3142 = vadd.f32 %v2933, %v3141
        %v3143 = vpop.f32.mrf.mxu0
        %v3144 = vadd.f32 %v2933, %v3143
        %3145 = vmatmul.bf16.gmra.mxu0 %v1239
        %v3146 = vpop.f32.mrf.mxu0
        %v3147 = vadd.f32 %v2933, %v3146
        %v3148 = vpop.f32.mrf.mxu0
        %v3149 = vadd.f32 %v2933, %v3148
        %3150 = vmatmul.bf16.gmra.mxu0 %v1241
        %v3151 = vpop.f32.mrf.mxu0
        %v3152 = vadd.f32 %v2933, %v3151
        %v3153 = vpop.f32.mrf.mxu0
        %v3154 = vadd.f32 %v2933, %v3153
        %3155 = vmatmul.bf16.gmra.mxu0 %v1243
        %v3156 = vpop.f32.mrf.mxu0
        %v3157 = vadd.f32 %v2933, %v3156
        %v3158 = vpop.f32.mrf.mxu0
        %v3159 = vadd.f32 %v2933, %v3158
        %3160 = vmatmul.bf16.gmra.mxu0 %v1245
        %v3161 = vpop.f32.mrf.mxu0
        %v3162 = vadd.f32 %v2933, %v3161
        %v3163 = vpop.f32.mrf.mxu0
        %v3164 = vadd.f32 %v2933, %v3163
        %3165 = vmatmul.bf16.gmra.mxu0 %v1247
        %v3166 = vpop.f32.mrf.mxu0
        %v3167 = vadd.f32 %v2933, %v3166
        %v3168 = vpop.f32.mrf.mxu0
        %3169 = vdwg.mxu0
        %3170 = vmatpush.bf16.msra.mxu0 %v3063
        %3171 = vmatpush.bf16.msra.mxu0 %v3061
        %3172 = vmatpush.bf16.msra.mxu0 %v3059
        %3173 = vmatpush.bf16.msra.mxu0 %v3057
        %3174 = vmatpush.bf16.msra.mxu0 %v3055
        %3175 = vmatpush.bf16.msra.mxu0 %v3053
        %3176 = vmatpush.bf16.msra.mxu0 %v3051
        %3177 = vmatpush.bf16.msra.mxu0 %v3049
        %3178 = vmatmul.bf16.gmra.mxu0 %v1224
        %v3179 = vpop.f32.mrf.mxu0
        %v3180 = vadd.f32 %v3107, %v3179
        %v3181 = vpop.f32.mrf.mxu0
        %v3182 = vadd.f32 %v3109, %v3181
        %3183 = vmatmul.bf16.gmra.mxu0 %v1226
        %v3184 = vpop.f32.mrf.mxu0
        %v3185 = vadd.f32 %v3112, %v3184
        %v3186 = vpop.f32.mrf.mxu0
        %v3187 = vadd.f32 %v3114, %v3186
        %3188 = vmatmul.bf16.gmra.mxu0 %v1228
        %v3189 = vpop.f32.mrf.mxu0
        %v3190 = vadd.f32 %v3117, %v3189
        %v3191 = vpop.f32.mrf.mxu0
        %v3192 = vadd.f32 %v3119, %v3191
        %3193 = vmatmul.bf16.gmra.mxu0 %v1230
        %v3194 = vpop.f32.mrf.mxu0
        %v3195 = vadd.f32 %v3122, %v3194
        %v3196 = vpop.f32.mrf.mxu0
        %v3197 = vadd.f32 %v3124, %v3196
        %3198 = vmatmul.bf16.gmra.mxu0 %v1232
        %v3199 = vpop.f32.mrf.mxu0
        %v3200 = vadd.f32 %v3127, %v3199
        %v3201 = vpop.f32.mrf.mxu0
        %v3202 = vadd.f32 %v3129, %v3201
        %3203 = vmatmul.bf16.gmra.mxu0 %v1234
        %v3204 = vpop.f32.mrf.mxu0
        %v3205 = vadd.f32 %v3132, %v3204
        %v3206 = vpop.f32.mrf.mxu0
        %v3207 = vadd.f32 %v3134, %v3206
        %3208 = vmatmul.bf16.gmra.mxu0 %v1236
        %v3209 = vpop.f32.mrf.mxu0
        %v3210 = vadd.f32 %v3137, %v3209
        %v3211 = vpop.f32.mrf.mxu0
        %v3212 = vadd.f32 %v3139, %v3211
        %3213 = vmatmul.bf16.gmra.mxu0 %v1238
        %v3214 = vpop.f32.mrf.mxu0
        %v3215 = vadd.f32 %v3142, %v3214
        %v3216 = vpop.f32.mrf.mxu0
        %v3217 = vadd.f32 %v3144, %v3216
        %3218 = vmatmul.bf16.gmra.mxu0 %v1240
        %v3219 = vpop.f32.mrf.mxu0
        %v3220 = vadd.f32 %v3147, %v3219
        %v3221 = vpop.f32.mrf.mxu0
        %v3222 = vadd.f32 %v3149, %v3221
        %3223 = vmatmul.bf16.gmra.mxu0 %v1242
        %v3224 = vpop.f32.mrf.mxu0
        %v3225 = vadd.f32 %v3152, %v3224
        %v3226 = vpop.f32.mrf.mxu0
        %v3227 = vadd.f32 %v3154, %v3226
        %3228 = vmatmul.bf16.gmra.mxu0 %v1244
        %v3229 = vpop.f32.mrf.mxu0
        %v3230 = vadd.f32 %v3157, %v3229
        %v3231 = vpop.f32.mrf.mxu0
        %v3232 = vadd.f32 %v3159, %v3231
        %3233 = vmatmul.bf16.gmra.mxu0 %v1246
        %v3234 = vpop.f32.mrf.mxu0
        %v3235 = vadd.f32 %v3162, %v3234
        %v3236 = vpop.f32.mrf.mxu0
        %v3237 = vadd.f32 %v3164, %v3236
        %3238 = vmatmul.bf16.gmra.mxu0 %v1248
        %v3239 = vpop.f32.mrf.mxu0
        %v3240 = vadd.f32 %v3167, %v3239
        %v3241 = vpop.f32.mrf.mxu0
        %3242 = vdwg.mxu0
        %3243 = vmatpush.bf16.msra.mxu0 %v3048
        %3244 = vmatpush.bf16.msra.mxu0 %v3046
        %3245 = vmatpush.bf16.msra.mxu0 %v3044
        %3246 = vmatpush.bf16.msra.mxu0 %v3042
        %3247 = vmatpush.bf16.msra.mxu0 %v3040
        %3248 = vmatpush.bf16.msra.mxu0 %v3038
        %3249 = vmatpush.bf16.msra.mxu0 %v3036
        %3250 = vmatpush.bf16.msra.mxu0 %v3034
        %3251 = vmatmul.bf16.gmra.mxu0 %v1223
        %v3252 = vpop.f32.mrf.mxu0
        %v3253 = vadd.f32 %v2934, %v3252
        %v3254 = vpop.f32.mrf.mxu0
        %v3255 = vadd.f32 %v2934, %v3254
        %3256 = vmatmul.bf16.gmra.mxu0 %v1225
        %v3257 = vpop.f32.mrf.mxu0
        %v3258 = vadd.f32 %v2934, %v3257
        %v3259 = vpop.f32.mrf.mxu0
        %v3260 = vadd.f32 %v2934, %v3259
        %3261 = vmatmul.bf16.gmra.mxu0 %v1227
        %v3262 = vpop.f32.mrf.mxu0
        %v3263 = vadd.f32 %v2934, %v3262
        %v3264 = vpop.f32.mrf.mxu0
        %v3265 = vadd.f32 %v2934, %v3264
        %3266 = vmatmul.bf16.gmra.mxu0 %v1229
        %v3267 = vpop.f32.mrf.mxu0
        %v3268 = vadd.f32 %v2934, %v3267
        %v3269 = vpop.f32.mrf.mxu0
        %v3270 = vadd.f32 %v2934, %v3269
        %3271 = vmatmul.bf16.gmra.mxu0 %v1231
        %v3272 = vpop.f32.mrf.mxu0
        %v3273 = vadd.f32 %v2934, %v3272
        %v3274 = vpop.f32.mrf.mxu0
        %v3275 = vadd.f32 %v2934, %v3274
        %3276 = vmatmul.bf16.gmra.mxu0 %v1233
        %v3277 = vpop.f32.mrf.mxu0
        %v3278 = vadd.f32 %v2934, %v3277
        %v3279 = vpop.f32.mrf.mxu0
        %v3280 = vadd.f32 %v2934, %v3279
        %3281 = vmatmul.bf16.gmra.mxu0 %v1235
        %v3282 = vpop.f32.mrf.mxu0
        %v3283 = vadd.f32 %v2934, %v3282
        %v3284 = vpop.f32.mrf.mxu0
        %v3285 = vadd.f32 %v2934, %v3284
        %3286 = vmatmul.bf16.gmra.mxu0 %v1237
        %v3287 = vpop.f32.mrf.mxu0
        %v3288 = vadd.f32 %v2934, %v3287
        %v3289 = vpop.f32.mrf.mxu0
        %v3290 = vadd.f32 %v2934, %v3289
        %3291 = vmatmul.bf16.gmra.mxu0 %v1239
        %v3292 = vpop.f32.mrf.mxu0
        %v3293 = vadd.f32 %v2934, %v3292
        %v3294 = vpop.f32.mrf.mxu0
        %v3295 = vadd.f32 %v2934, %v3294
        %3296 = vmatmul.bf16.gmra.mxu0 %v1241
        %v3297 = vpop.f32.mrf.mxu0
        %v3298 = vadd.f32 %v2934, %v3297
        %v3299 = vpop.f32.mrf.mxu0
        %v3300 = vadd.f32 %v2934, %v3299
        %3301 = vmatmul.bf16.gmra.mxu0 %v1243
        %v3302 = vpop.f32.mrf.mxu0
        %v3303 = vadd.f32 %v2934, %v3302
        %v3304 = vpop.f32.mrf.mxu0
        %v3305 = vadd.f32 %v2934, %v3304
        %3306 = vmatmul.bf16.gmra.mxu0 %v1245
        %v3307 = vpop.f32.mrf.mxu0
        %v3308 = vadd.f32 %v2934, %v3307
        %v3309 = vpop.f32.mrf.mxu0
        %v3310 = vadd.f32 %v2934, %v3309
        %3311 = vmatmul.bf16.gmra.mxu0 %v1247
        %v3312 = vpop.f32.mrf.mxu0
        %v3313 = vadd.f32 %v2934, %v3312
        %v3314 = vpop.f32.mrf.mxu0
        %3315 = vdwg.mxu0
        %3316 = vmatpush.bf16.msra.mxu0 %v3064
        %3317 = vmatpush.bf16.msra.mxu0 %v3062
        %3318 = vmatpush.bf16.msra.mxu0 %v3060
        %3319 = vmatpush.bf16.msra.mxu0 %v3058
        %3320 = vmatpush.bf16.msra.mxu0 %v3056
        %3321 = vmatpush.bf16.msra.mxu0 %v3054
        %3322 = vmatpush.bf16.msra.mxu0 %v3052
        %3323 = vmatpush.bf16.msra.mxu0 %v3050
        %3324 = vmatmul.bf16.gmra.mxu0 %v1224
        %v3325 = vpop.f32.mrf.mxu0
        %v3326 = vadd.f32 %v3253, %v3325
        %v3327 = vpop.f32.mrf.mxu0
        %v3328 = vadd.f32 %v3255, %v3327
        %3329 = vmatmul.bf16.gmra.mxu0 %v1226
        %v3330 = vpop.f32.mrf.mxu0
        %v3331 = vadd.f32 %v3258, %v3330
        %v3332 = vpop.f32.mrf.mxu0
        %v3333 = vadd.f32 %v3260, %v3332
        %3334 = vmatmul.bf16.gmra.mxu0 %v1228
        %v3335 = vpop.f32.mrf.mxu0
        %v3336 = vadd.f32 %v3263, %v3335
        %v3337 = vpop.f32.mrf.mxu0
        %v3338 = vadd.f32 %v3265, %v3337
        %3339 = vmatmul.bf16.gmra.mxu0 %v1230
        %v3340 = vpop.f32.mrf.mxu0
        %v3341 = vadd.f32 %v3268, %v3340
        %v3342 = vpop.f32.mrf.mxu0
        %v3343 = vadd.f32 %v3270, %v3342
        %3344 = vmatmul.bf16.gmra.mxu0 %v1232
        %v3345 = vpop.f32.mrf.mxu0
        %v3346 = vadd.f32 %v3273, %v3345
        %v3347 = vpop.f32.mrf.mxu0
        %v3348 = vadd.f32 %v3275, %v3347
        %3349 = vmatmul.bf16.gmra.mxu0 %v1234
        %v3350 = vpop.f32.mrf.mxu0
        %v3351 = vadd.f32 %v3278, %v3350
        %v3352 = vpop.f32.mrf.mxu0
        %v3353 = vadd.f32 %v3280, %v3352
        %3354 = vmatmul.bf16.gmra.mxu0 %v1236
        %v3355 = vpop.f32.mrf.mxu0
        %v3356 = vadd.f32 %v3283, %v3355
        %v3357 = vpop.f32.mrf.mxu0
        %v3358 = vadd.f32 %v3285, %v3357
        %3359 = vmatmul.bf16.gmra.mxu0 %v1238
        %v3360 = vpop.f32.mrf.mxu0
        %v3361 = vadd.f32 %v3288, %v3360
        %v3362 = vpop.f32.mrf.mxu0
        %v3363 = vadd.f32 %v3290, %v3362
        %3364 = vmatmul.bf16.gmra.mxu0 %v1240
        %v3365 = vpop.f32.mrf.mxu0
        %v3366 = vadd.f32 %v3293, %v3365
        %v3367 = vpop.f32.mrf.mxu0
        %v3368 = vadd.f32 %v3295, %v3367
        %3369 = vmatmul.bf16.gmra.mxu0 %v1242
        %v3370 = vpop.f32.mrf.mxu0
        %v3371 = vadd.f32 %v3298, %v3370
        %v3372 = vpop.f32.mrf.mxu0
        %v3373 = vadd.f32 %v3300, %v3372
        %3374 = vmatmul.bf16.gmra.mxu0 %v1244
        %v3375 = vpop.f32.mrf.mxu0
        %v3376 = vadd.f32 %v3303, %v3375
        %v3377 = vpop.f32.mrf.mxu0
        %v3378 = vadd.f32 %v3305, %v3377
        %3379 = vmatmul.bf16.gmra.mxu0 %v1246
        %v3380 = vpop.f32.mrf.mxu0
        %v3381 = vadd.f32 %v3308, %v3380
        %v3382 = vpop.f32.mrf.mxu0
        %v3383 = vadd.f32 %v3310, %v3382
        %3384 = vmatmul.bf16.gmra.mxu0 %v1248
        %v3385 = vpop.f32.mrf.mxu0
        %v3386 = vadd.f32 %v3313, %v3385
        %v3387 = vpop.f32.mrf.mxu0
        %3388 = vdwg.mxu0
        %v3389 = vmul.f32 %v3180, 0.5
        %v3390 = vmul.f32 %v3326, 0.5
        %v3391 = vmul.f32 %v3182, 0.5
        %v3392 = vmul.f32 %v3328, 0.5
        %v3393 = vmul.f32 %v3185, 0.5
        %v3394 = vmul.f32 %v3331, 0.5
        %v3395 = vmul.f32 %v3187, 0.5
        %v3396 = vmul.f32 %v3333, 0.5
        %v3397 = vmul.f32 %v3190, 0.5
        %v3398 = vmul.f32 %v3336, 0.5
        %v3399 = vmul.f32 %v3192, 0.5
        %v3400 = vmul.f32 %v3338, 0.5
        %v3401 = vmul.f32 %v3195, 0.5
        %v3402 = vmul.f32 %v3341, 0.5
        %v3403 = vmul.f32 %v3197, 0.5
        %v3404 = vmul.f32 %v3343, 0.5
        %v3405 = vmul.f32 %v3200, 0.5
        %v3406 = vmul.f32 %v3346, 0.5
        %v3407 = vmul.f32 %v3202, 0.5
        %v3408 = vmul.f32 %v3348, 0.5
        %v3409 = vmul.f32 %v3205, 0.5
        %v3410 = vmul.f32 %v3351, 0.5
        %v3411 = vmul.f32 %v3207, 0.5
        %v3412 = vmul.f32 %v3353, 0.5
        %v3413 = vmul.f32 %v3210, 0.5
        %v3414 = vmul.f32 %v3356, 0.5
        %v3415 = vmul.f32 %v3212, 0.5
        %v3416 = vmul.f32 %v3358, 0.5
        %v3417 = vmul.f32 %v3215, 0.5
        %v3418 = vmul.f32 %v3361, 0.5
        %v3419 = vmul.f32 %v3217, 0.5
        %v3420 = vmul.f32 %v3363, 0.5
        %v3421 = vmul.f32 %v3220, 0.5
        %v3422 = vmul.f32 %v3366, 0.5
        %v3423 = vmul.f32 %v3222, 0.5
        %v3424 = vmul.f32 %v3368, 0.5
        %v3425 = vmul.f32 %v3225, 0.5
        %v3426 = vmul.f32 %v3371, 0.5
        %v3427 = vmul.f32 %v3227, 0.5
        %v3428 = vmul.f32 %v3373, 0.5
        %v3429 = vmul.f32 %v3230, 0.5
        %v3430 = vmul.f32 %v3376, 0.5
        %v3431 = vmul.f32 %v3232, 0.5
        %v3432 = vmul.f32 %v3378, 0.5
        %v3433 = vmul.f32 %v3235, 0.5
        %v3434 = vmul.f32 %v3381, 0.5
        %v3435 = vmul.f32 %v3237, 0.5
        %v3436 = vmul.f32 %v3383, 0.5
        %v3437 = vmul.f32 %v3240, 0.5
        %v3438 = vmul.f32 %v3386, 0.5
        %v3439 = vmul.f32 %v3180, 0.044715
        %v3440 = vmul.f32 %v3326, 0.044715
        %v3441 = vmul.f32 %v3182, 0.044715
        %v3442 = vmul.f32 %v3328, 0.044715
        %v3443 = vmul.f32 %v3185, 0.044715
        %v3444 = vmul.f32 %v3331, 0.044715
        %v3445 = vmul.f32 %v3187, 0.044715
        %v3446 = vmul.f32 %v3333, 0.044715
        %v3447 = vmul.f32 %v3190, 0.044715
        %v3448 = vmul.f32 %v3336, 0.044715
        %v3449 = vmul.f32 %v3192, 0.044715
        %v3450 = vmul.f32 %v3338, 0.044715
        %v3451 = vmul.f32 %v3195, 0.044715
        %v3452 = vmul.f32 %v3341, 0.044715
        %v3453 = vmul.f32 %v3197, 0.044715
        %v3454 = vmul.f32 %v3343, 0.044715
        %v3455 = vmul.f32 %v3200, 0.044715
        %v3456 = vmul.f32 %v3346, 0.044715
        %v3457 = vmul.f32 %v3202, 0.044715
        %v3458 = vmul.f32 %v3348, 0.044715
        %v3459 = vmul.f32 %v3205, 0.044715
        %v3460 = vmul.f32 %v3351, 0.044715
        %v3461 = vmul.f32 %v3207, 0.044715
        %v3462 = vmul.f32 %v3353, 0.044715
        %v3463 = vmul.f32 %v3210, 0.044715
        %v3464 = vmul.f32 %v3356, 0.044715
        %v3465 = vmul.f32 %v3212, 0.044715
        %v3466 = vmul.f32 %v3358, 0.044715
        %v3467 = vmul.f32 %v3215, 0.044715
        %v3468 = vmul.f32 %v3361, 0.044715
        %v3469 = vmul.f32 %v3217, 0.044715
        %v3470 = vmul.f32 %v3363, 0.044715
        %v3471 = vmul.f32 %v3220, 0.044715
        %v3472 = vmul.f32 %v3366, 0.044715
        %v3473 = vmul.f32 %v3222, 0.044715
        %v3474 = vmul.f32 %v3368, 0.044715
        %v3475 = vmul.f32 %v3225, 0.044715
        %v3476 = vmul.f32 %v3371, 0.044715
        %v3477 = vmul.f32 %v3227, 0.044715
        %v3478 = vmul.f32 %v3373, 0.044715
        %v3479 = vmul.f32 %v3230, 0.044715
        %v3480 = vmul.f32 %v3376, 0.044715
        %v3481 = vmul.f32 %v3232, 0.044715
        %v3482 = vmul.f32 %v3378, 0.044715
        %v3483 = vmul.f32 %v3235, 0.044715
        %v3484 = vmul.f32 %v3381, 0.044715
        %v3485 = vmul.f32 %v3237, 0.044715
        %v3486 = vmul.f32 %v3383, 0.044715
        %v3487 = vmul.f32 %v3240, 0.044715
        %v3488 = vmul.f32 %v3386, 0.044715
        %v3489 = vmul.f32 %v3439, %v3180
        %v3490 = vmul.f32 %v3440, %v3326
        %v3491 = vmul.f32 %v3441, %v3182
        %v3492 = vmul.f32 %v3442, %v3328
        %v3493 = vmul.f32 %v3443, %v3185
        %v3494 = vmul.f32 %v3444, %v3331
        %v3495 = vmul.f32 %v3445, %v3187
        %v3496 = vmul.f32 %v3446, %v3333
        %v3497 = vmul.f32 %v3447, %v3190
        %v3498 = vmul.f32 %v3448, %v3336
        %v3499 = vmul.f32 %v3449, %v3192
        %v3500 = vmul.f32 %v3450, %v3338
        %v3501 = vmul.f32 %v3451, %v3195
        %v3502 = vmul.f32 %v3452, %v3341
        %v3503 = vmul.f32 %v3453, %v3197
        %v3504 = vmul.f32 %v3454, %v3343
        %v3505 = vmul.f32 %v3455, %v3200
        %v3506 = vmul.f32 %v3456, %v3346
        %v3507 = vmul.f32 %v3457, %v3202
        %v3508 = vmul.f32 %v3458, %v3348
        %v3509 = vmul.f32 %v3459, %v3205
        %v3510 = vmul.f32 %v3460, %v3351
        %v3511 = vmul.f32 %v3461, %v3207
        %v3512 = vmul.f32 %v3462, %v3353
        %v3513 = vmul.f32 %v3463, %v3210
        %v3514 = vmul.f32 %v3464, %v3356
        %v3515 = vmul.f32 %v3465, %v3212
        %v3516 = vmul.f32 %v3466, %v3358
        %v3517 = vmul.f32 %v3467, %v3215
        %v3518 = vmul.f32 %v3468, %v3361
        %v3519 = vmul.f32 %v3469, %v3217
        %v3520 = vmul.f32 %v3470, %v3363
        %v3521 = vmul.f32 %v3471, %v3220
        %v3522 = vmul.f32 %v3472, %v3366
        %v3523 = vmul.f32 %v3473, %v3222
        %v3524 = vmul.f32 %v3474, %v3368
        %v3525 = vmul.f32 %v3475, %v3225
        %v3526 = vmul.f32 %v3476, %v3371
        %v3527 = vmul.f32 %v3477, %v3227
        %v3528 = vmul.f32 %v3478, %v3373
        %v3529 = vmul.f32 %v3479, %v3230
        %v3530 = vmul.f32 %v3480, %v3376
        %v3531 = vmul.f32 %v3481, %v3232
        %v3532 = vmul.f32 %v3482, %v3378
        %v3533 = vmul.f32 %v3483, %v3235
        %v3534 = vmul.f32 %v3484, %v3381
        %v3535 = vmul.f32 %v3485, %v3237
        %v3536 = vmul.f32 %v3486, %v3383
        %v3537 = vmul.f32 %v3487, %v3240
        %v3538 = vmul.f32 %v3488, %v3386
        %v3539 = vmul.f32 %v3489, %v3180
        %v3540 = vmul.f32 %v3490, %v3326
        %v3541 = vmul.f32 %v3491, %v3182
        %v3542 = vmul.f32 %v3492, %v3328
        %v3543 = vmul.f32 %v3493, %v3185
        %v3544 = vmul.f32 %v3494, %v3331
        %v3545 = vmul.f32 %v3495, %v3187
        %v3546 = vmul.f32 %v3496, %v3333
        %v3547 = vmul.f32 %v3497, %v3190
        %v3548 = vmul.f32 %v3498, %v3336
        %v3549 = vmul.f32 %v3499, %v3192
        %v3550 = vmul.f32 %v3500, %v3338
        %v3551 = vmul.f32 %v3501, %v3195
        %v3552 = vmul.f32 %v3502, %v3341
        %v3553 = vmul.f32 %v3503, %v3197
        %v3554 = vmul.f32 %v3504, %v3343
        %v3555 = vmul.f32 %v3505, %v3200
        %v3556 = vmul.f32 %v3506, %v3346
        %v3557 = vmul.f32 %v3507, %v3202
        %v3558 = vmul.f32 %v3508, %v3348
        %v3559 = vmul.f32 %v3509, %v3205
        %v3560 = vmul.f32 %v3510, %v3351
        %v3561 = vmul.f32 %v3511, %v3207
        %v3562 = vmul.f32 %v3512, %v3353
        %v3563 = vmul.f32 %v3513, %v3210
        %v3564 = vmul.f32 %v3514, %v3356
        %v3565 = vmul.f32 %v3515, %v3212
        %v3566 = vmul.f32 %v3516, %v3358
        %v3567 = vmul.f32 %v3517, %v3215
        %v3568 = vmul.f32 %v3518, %v3361
        %v3569 = vmul.f32 %v3519, %v3217
        %v3570 = vmul.f32 %v3520, %v3363
        %v3571 = vmul.f32 %v3521, %v3220
        %v3572 = vmul.f32 %v3522, %v3366
        %v3573 = vmul.f32 %v3523, %v3222
        %v3574 = vmul.f32 %v3524, %v3368
        %v3575 = vmul.f32 %v3525, %v3225
        %v3576 = vmul.f32 %v3526, %v3371
        %v3577 = vmul.f32 %v3527, %v3227
        %v3578 = vmul.f32 %v3528, %v3373
        %v3579 = vmul.f32 %v3529, %v3230
        %v3580 = vmul.f32 %v3530, %v3376
        %v3581 = vmul.f32 %v3531, %v3232
        %v3582 = vmul.f32 %v3532, %v3378
        %v3583 = vmul.f32 %v3533, %v3235
        %v3584 = vmul.f32 %v3534, %v3381
        %v3585 = vmul.f32 %v3535, %v3237
        %v3586 = vmul.f32 %v3536, %v3383
        %v3587 = vmul.f32 %v3537, %v3240
        %v3588 = vmul.f32 %v3538, %v3386
        %v3589 = vadd.f32 %v3180, %v3539
        %v3590 = vadd.f32 %v3326, %v3540
        %v3591 = vadd.f32 %v3182, %v3541
        %v3592 = vadd.f32 %v3328, %v3542
        %v3593 = vadd.f32 %v3185, %v3543
        %v3594 = vadd.f32 %v3331, %v3544
        %v3595 = vadd.f32 %v3187, %v3545
        %v3596 = vadd.f32 %v3333, %v3546
        %v3597 = vadd.f32 %v3190, %v3547
        %v3598 = vadd.f32 %v3336, %v3548
        %v3599 = vadd.f32 %v3192, %v3549
        %v3600 = vadd.f32 %v3338, %v3550
        %v3601 = vadd.f32 %v3195, %v3551
        %v3602 = vadd.f32 %v3341, %v3552
        %v3603 = vadd.f32 %v3197, %v3553
        %v3604 = vadd.f32 %v3343, %v3554
        %v3605 = vadd.f32 %v3200, %v3555
        %v3606 = vadd.f32 %v3346, %v3556
        %v3607 = vadd.f32 %v3202, %v3557
        %v3608 = vadd.f32 %v3348, %v3558
        %v3609 = vadd.f32 %v3205, %v3559
        %v3610 = vadd.f32 %v3351, %v3560
        %v3611 = vadd.f32 %v3207, %v3561
        %v3612 = vadd.f32 %v3353, %v3562
        %v3613 = vadd.f32 %v3210, %v3563
        %v3614 = vadd.f32 %v3356, %v3564
        %v3615 = vadd.f32 %v3212, %v3565
        %v3616 = vadd.f32 %v3358, %v3566
        %v3617 = vadd.f32 %v3215, %v3567
        %v3618 = vadd.f32 %v3361, %v3568
        %v3619 = vadd.f32 %v3217, %v3569
        %v3620 = vadd.f32 %v3363, %v3570
        %v3621 = vadd.f32 %v3220, %v3571
        %v3622 = vadd.f32 %v3366, %v3572
        %v3623 = vadd.f32 %v3222, %v3573
        %v3624 = vadd.f32 %v3368, %v3574
        %v3625 = vadd.f32 %v3225, %v3575
        %v3626 = vadd.f32 %v3371, %v3576
        %v3627 = vadd.f32 %v3227, %v3577
        %v3628 = vadd.f32 %v3373, %v3578
        %v3629 = vadd.f32 %v3230, %v3579
        %v3630 = vadd.f32 %v3376, %v3580
        %v3631 = vadd.f32 %v3232, %v3581
        %v3632 = vadd.f32 %v3378, %v3582
        %v3633 = vadd.f32 %v3235, %v3583
        %v3634 = vadd.f32 %v3381, %v3584
        %v3635 = vadd.f32 %v3237, %v3585
        %v3636 = vadd.f32 %v3383, %v3586
        %v3637 = vadd.f32 %v3240, %v3587
        %v3638 = vadd.f32 %v3386, %v3588
        %v3639 = vmul.f32 %v3589, 0.7978846
        %v3640 = vmul.f32 %v3590, 0.7978846
        %v3641 = vmul.f32 %v3591, 0.7978846
        %v3642 = vmul.f32 %v3592, 0.7978846
        %v3643 = vmul.f32 %v3593, 0.7978846
        %v3644 = vmul.f32 %v3594, 0.7978846
        %v3645 = vmul.f32 %v3595, 0.7978846
        %v3646 = vmul.f32 %v3596, 0.7978846
        %v3647 = vmul.f32 %v3597, 0.7978846
        %v3648 = vmul.f32 %v3598, 0.7978846
        %v3649 = vmul.f32 %v3599, 0.7978846
        %v3650 = vmul.f32 %v3600, 0.7978846
        %v3651 = vmul.f32 %v3601, 0.7978846
        %v3652 = vmul.f32 %v3602, 0.7978846
        %v3653 = vmul.f32 %v3603, 0.7978846
        %v3654 = vmul.f32 %v3604, 0.7978846
        %v3655 = vmul.f32 %v3605, 0.7978846
        %v3656 = vmul.f32 %v3606, 0.7978846
        %v3657 = vmul.f32 %v3607, 0.7978846
        %v3658 = vmul.f32 %v3608, 0.7978846
        %v3659 = vmul.f32 %v3609, 0.7978846
        %v3660 = vmul.f32 %v3610, 0.7978846
        %v3661 = vmul.f32 %v3611, 0.7978846
        %v3662 = vmul.f32 %v3612, 0.7978846
        %v3663 = vmul.f32 %v3613, 0.7978846
        %v3664 = vmul.f32 %v3614, 0.7978846
        %v3665 = vmul.f32 %v3615, 0.7978846
        %v3666 = vmul.f32 %v3616, 0.7978846
        %v3667 = vmul.f32 %v3617, 0.7978846
        %v3668 = vmul.f32 %v3618, 0.7978846
        %v3669 = vmul.f32 %v3619, 0.7978846
        %v3670 = vmul.f32 %v3620, 0.7978846
        %v3671 = vmul.f32 %v3621, 0.7978846
        %v3672 = vmul.f32 %v3622, 0.7978846
        %v3673 = vmul.f32 %v3623, 0.7978846
        %v3674 = vmul.f32 %v3624, 0.7978846
        %v3675 = vmul.f32 %v3625, 0.7978846
        %v3676 = vmul.f32 %v3626, 0.7978846
        %v3677 = vmul.f32 %v3627, 0.7978846
        %v3678 = vmul.f32 %v3628, 0.7978846
        %v3679 = vmul.f32 %v3629, 0.7978846
        %v3680 = vmul.f32 %v3630, 0.7978846
        %v3681 = vmul.f32 %v3631, 0.7978846
        %v3682 = vmul.f32 %v3632, 0.7978846
        %v3683 = vmul.f32 %v3633, 0.7978846
        %v3684 = vmul.f32 %v3634, 0.7978846
        %v3685 = vmul.f32 %v3635, 0.7978846
        %v3686 = vmul.f32 %v3636, 0.7978846
        %v3687 = vmul.f32 %v3637, 0.7978846
        %v3688 = vmul.f32 %v3638, 0.7978846
        %v3689 = vtanh.pop %v3639
        %v3690 = vtanh.pop %v3640
        %v3691 = vtanh.pop %v3641
        %v3692 = vtanh.pop %v3642
        %v3693 = vtanh.pop %v3643
        %v3694 = vtanh.pop %v3644
        %v3695 = vtanh.pop %v3645
        %v3696 = vtanh.pop %v3646
        %v3697 = vtanh.pop %v3647
        %v3698 = vtanh.pop %v3648
        %v3699 = vtanh.pop %v3649
        %v3700 = vtanh.pop %v3650
        %v3701 = vtanh.pop %v3651
        %v3702 = vtanh.pop %v3652
        %v3703 = vtanh.pop %v3653
        %v3704 = vtanh.pop %v3654
        %v3705 = vtanh.pop %v3655
        %v3706 = vtanh.pop %v3656
        %v3707 = vtanh.pop %v3657
        %v3708 = vtanh.pop %v3658
        %v3709 = vtanh.pop %v3659
        %v3710 = vtanh.pop %v3660
        %v3711 = vtanh.pop %v3661
        %v3712 = vtanh.pop %v3662
        %v3713 = vtanh.pop %v3663
        %v3714 = vtanh.pop %v3664
        %v3715 = vtanh.pop %v3665
        %v3716 = vtanh.pop %v3666
        %v3717 = vtanh.pop %v3667
        %v3718 = vtanh.pop %v3668
        %v3719 = vtanh.pop %v3669
        %v3720 = vtanh.pop %v3670
        %v3721 = vtanh.pop %v3671
        %v3722 = vtanh.pop %v3672
        %v3723 = vtanh.pop %v3673
        %v3724 = vtanh.pop %v3674
        %v3725 = vtanh.pop %v3675
        %v3726 = vtanh.pop %v3676
        %v3727 = vtanh.pop %v3677
        %v3728 = vtanh.pop %v3678
        %v3729 = vtanh.pop %v3679
        %v3730 = vtanh.pop %v3680
        %v3731 = vtanh.pop %v3681
        %v3732 = vtanh.pop %v3682
        %v3733 = vtanh.pop %v3683
        %v3734 = vtanh.pop %v3684
        %v3735 = vtanh.pop %v3685
        %v3736 = vtanh.pop %v3686
        %v3737 = vtanh.pop %v3687
        %v3738 = vtanh.pop %v3688
        %v3739 = vadd.f32 %v3689, 1.0
        %v3740 = vadd.f32 %v3690, 1.0
        %v3741 = vadd.f32 %v3691, 1.0
        %v3742 = vadd.f32 %v3692, 1.0
        %v3743 = vadd.f32 %v3693, 1.0
        %v3744 = vadd.f32 %v3694, 1.0
        %v3745 = vadd.f32 %v3695, 1.0
        %v3746 = vadd.f32 %v3696, 1.0
        %v3747 = vadd.f32 %v3697, 1.0
        %v3748 = vadd.f32 %v3698, 1.0
        %v3749 = vadd.f32 %v3699, 1.0
        %v3750 = vadd.f32 %v3700, 1.0
        %v3751 = vadd.f32 %v3701, 1.0
        %v3752 = vadd.f32 %v3702, 1.0
        %v3753 = vadd.f32 %v3703, 1.0
        %v3754 = vadd.f32 %v3704, 1.0
        %v3755 = vadd.f32 %v3705, 1.0
        %v3756 = vadd.f32 %v3706, 1.0
        %v3757 = vadd.f32 %v3707, 1.0
        %v3758 = vadd.f32 %v3708, 1.0
        %v3759 = vadd.f32 %v3709, 1.0
        %v3760 = vadd.f32 %v3710, 1.0
        %v3761 = vadd.f32 %v3711, 1.0
        %v3762 = vadd.f32 %v3712, 1.0
        %v3763 = vadd.f32 %v3713, 1.0
        %v3764 = vadd.f32 %v3714, 1.0
        %v3765 = vadd.f32 %v3715, 1.0
        %v3766 = vadd.f32 %v3716, 1.0
        %v3767 = vadd.f32 %v3717, 1.0
        %v3768 = vadd.f32 %v3718, 1.0
        %v3769 = vadd.f32 %v3719, 1.0
        %v3770 = vadd.f32 %v3720, 1.0
        %v3771 = vadd.f32 %v3721, 1.0
        %v3772 = vadd.f32 %v3722, 1.0
        %v3773 = vadd.f32 %v3723, 1.0
        %v3774 = vadd.f32 %v3724, 1.0
        %v3775 = vadd.f32 %v3725, 1.0
        %v3776 = vadd.f32 %v3726, 1.0
        %v3777 = vadd.f32 %v3727, 1.0
        %v3778 = vadd.f32 %v3728, 1.0
        %v3779 = vadd.f32 %v3729, 1.0
        %v3780 = vadd.f32 %v3730, 1.0
        %v3781 = vadd.f32 %v3731, 1.0
        %v3782 = vadd.f32 %v3732, 1.0
        %v3783 = vadd.f32 %v3733, 1.0
        %v3784 = vadd.f32 %v3734, 1.0
        %v3785 = vadd.f32 %v3735, 1.0
        %v3786 = vadd.f32 %v3736, 1.0
        %v3787 = vadd.f32 %v3737, 1.0
        %v3788 = vadd.f32 %v3738, 1.0
        %v3789 = vmul.f32 %v3389, %v3739
        %v3790 = vmul.f32 %v3390, %v3740
        %v3791 = vmul.f32 %v3391, %v3741
        %v3792 = vmul.f32 %v3392, %v3742
        %v3793 = vmul.f32 %v3393, %v3743
        %v3794 = vmul.f32 %v3394, %v3744
        %v3795 = vmul.f32 %v3395, %v3745
        %v3796 = vmul.f32 %v3396, %v3746
        %v3797 = vmul.f32 %v3397, %v3747
        %v3798 = vmul.f32 %v3398, %v3748
        %v3799 = vmul.f32 %v3399, %v3749
        %v3800 = vmul.f32 %v3400, %v3750
        %v3801 = vmul.f32 %v3401, %v3751
        %v3802 = vmul.f32 %v3402, %v3752
        %v3803 = vmul.f32 %v3403, %v3753
        %v3804 = vmul.f32 %v3404, %v3754
        %v3805 = vmul.f32 %v3405, %v3755
        %v3806 = vmul.f32 %v3406, %v3756
        %v3807 = vmul.f32 %v3407, %v3757
        %v3808 = vmul.f32 %v3408, %v3758
        %v3809 = vmul.f32 %v3409, %v3759
        %v3810 = vmul.f32 %v3410, %v3760
        %v3811 = vmul.f32 %v3411, %v3761
        %v3812 = vmul.f32 %v3412, %v3762
        %v3813 = vmul.f32 %v3413, %v3763
        %v3814 = vmul.f32 %v3414, %v3764
        %v3815 = vmul.f32 %v3415, %v3765
        %v3816 = vmul.f32 %v3416, %v3766
        %v3817 = vmul.f32 %v3417, %v3767
        %v3818 = vmul.f32 %v3418, %v3768
        %v3819 = vmul.f32 %v3419, %v3769
        %v3820 = vmul.f32 %v3420, %v3770
        %v3821 = vmul.f32 %v3421, %v3771
        %v3822 = vmul.f32 %v3422, %v3772
        %v3823 = vmul.f32 %v3423, %v3773
        %v3824 = vmul.f32 %v3424, %v3774
        %v3825 = vmul.f32 %v3425, %v3775
        %v3826 = vmul.f32 %v3426, %v3776
        %v3827 = vmul.f32 %v3427, %v3777
        %v3828 = vmul.f32 %v3428, %v3778
        %v3829 = vmul.f32 %v3429, %v3779
        %v3830 = vmul.f32 %v3430, %v3780
        %v3831 = vmul.f32 %v3431, %v3781
        %v3832 = vmul.f32 %v3432, %v3782
        %v3833 = vmul.f32 %v3433, %v3783
        %v3834 = vmul.f32 %v3434, %v3784
        %v3835 = vmul.f32 %v3435, %v3785
        %v3836 = vmul.f32 %v3436, %v3786
        %v3837 = vmul.f32 %v3437, %v3787
        %v3838 = vmul.f32 %v3438, %v3788
        %v3839 = vld [vmem:[#allocation2] sm:$0xff]
        %v3840 = vld [vmem:[#allocation2 + $0x8] sm:$0xff]
        %v3841 = vld [vmem:[#allocation2 + $0x10] sm:$0xff]
        %v3842 = vld [vmem:[#allocation2 + $0x18] sm:$0xff]
        %v3843 = vld [vmem:[#allocation2 + $0x20] sm:$0xff]
        %v3844 = vld [vmem:[#allocation2 + $0x28] sm:$0xff]
        %v3845 = vld [vmem:[#allocation2 + $0x30] sm:$0xff]
        %v3846 = vld [vmem:[#allocation2 + $0x38] sm:$0xff]
        %v3847 = vld [vmem:[#allocation2 + $0x40] sm:$0xff]
        %v3848 = vld [vmem:[#allocation2 + $0x48] sm:$0xff]
        %v3849 = vld [vmem:[#allocation2 + $0x50] sm:$0xff]
        %v3850 = vld [vmem:[#allocation2 + $0x58] sm:$0xff]
        %v3851 = vld [vmem:[#allocation2 + $0x60] sm:$0xff]
        %v3852 = vld [vmem:[#allocation2 + $0x68] sm:$0xff]
        %v3853 = vld [vmem:[#allocation2 + $0x70] sm:$0xff]
        %v3854 = vld [vmem:[#allocation2 + $0x78] sm:$0xff]
        %v3855 = vld [vmem:[#allocation2 + $0x80] sm:$0xff]
        %v3856 = vld [vmem:[#allocation2 + $0x88] sm:$0xff]
        %v3857 = vld [vmem:[#allocation2 + $0x90] sm:$0xff]
        %v3858 = vld [vmem:[#allocation2 + $0x98] sm:$0xff]
        %v3859 = vld [vmem:[#allocation2 + $0xa0] sm:$0xff]
        %v3860 = vld [vmem:[#allocation2 + $0xa8] sm:$0xff]
        %v3861 = vld [vmem:[#allocation2 + $0xb0] sm:$0xff]
        %v3862 = vld [vmem:[#allocation2 + $0xb8] sm:$0xff]
        %v3863 = vld [vmem:[#allocation2 + $0xc0] sm:$0xff]
        %v3864 = vld [vmem:[#allocation2 + $0xc8] sm:$0xff]
        %v3865 = vld [vmem:[#allocation2 + $0xd0] sm:$0xff]
        %v3866 = vld [vmem:[#allocation2 + $0xd8] sm:$0xff]
        %v3867 = vld [vmem:[#allocation2 + $0xe0] sm:$0xff]
        %v3868 = vld [vmem:[#allocation2 + $0xe8] sm:$0xff]
        %v3869 = vld [vmem:[#allocation2 + $0xf0] sm:$0xff]
        %v3870 = vld [vmem:[#allocation2 + $0xf8] sm:$0xff]
        %v3871 = vld [vmem:[#allocation2 + $0x100] sm:$0xff]
        %v3872 = vld [vmem:[#allocation2 + $0x108] sm:$0xff]
        %v3873 = vld [vmem:[#allocation2 + $0x110] sm:$0xff]
        %v3874 = vld [vmem:[#allocation2 + $0x118] sm:$0xff]
        %v3875 = vld [vmem:[#allocation2 + $0x120] sm:$0xff]
        %v3876 = vld [vmem:[#allocation2 + $0x128] sm:$0xff]
        %v3877 = vld [vmem:[#allocation2 + $0x130] sm:$0xff]
        %v3878 = vld [vmem:[#allocation2 + $0x138] sm:$0xff]
        %v3879 = vld [vmem:[#allocation2 + $0x140] sm:$0xff]
        %v3880 = vld [vmem:[#allocation2 + $0x148] sm:$0xff]
        %v3881 = vld [vmem:[#allocation2 + $0x150] sm:$0xff]
        %v3882 = vld [vmem:[#allocation2 + $0x158] sm:$0xff]
        %v3883 = vld [vmem:[#allocation2 + $0x160] sm:$0xff]
        %v3884 = vld [vmem:[#allocation2 + $0x168] sm:$0xff]
        %v3885 = vld [vmem:[#allocation2 + $0x170] sm:$0xff]
        %v3886 = vld [vmem:[#allocation2 + $0x178] sm:$0xff]
        %v3887 = vld [vmem:[#allocation2 + $0x180] sm:$0xff]
        %v3888 = vld [vmem:[#allocation2 + $0x188] sm:$0xff]
        %v3889 = vpack.c.bf16 %v3791, %v3789
        %v3890 = vpack.c.bf16 %v3792, %v3790
        %v3891 = vpack.c.bf16 %v3795, %v3793
        %v3892 = vpack.c.bf16 %v3796, %v3794
        %v3893 = vpack.c.bf16 %v3799, %v3797
        %v3894 = vpack.c.bf16 %v3800, %v3798
        %v3895 = vpack.c.bf16 %v3803, %v3801
        %v3896 = vpack.c.bf16 %v3804, %v3802
        %v3897 = vpack.c.bf16 %v3807, %v3805
        %v3898 = vpack.c.bf16 %v3808, %v3806
        %v3899 = vpack.c.bf16 %v3811, %v3809
        %v3900 = vpack.c.bf16 %v3812, %v3810
        %v3901 = vpack.c.bf16 %v3815, %v3813
        %v3902 = vpack.c.bf16 %v3816, %v3814
        %v3903 = vpack.c.bf16 %v3819, %v3817
        %v3904 = vpack.c.bf16 %v3820, %v3818
        %v3905 = vpack.c.bf16 %v3823, %v3821
        %v3906 = vpack.c.bf16 %v3824, %v3822
        %v3907 = vpack.c.bf16 %v3827, %v3825
        %v3908 = vpack.c.bf16 %v3828, %v3826
        %v3909 = vpack.c.bf16 %v3831, %v3829
        %v3910 = vpack.c.bf16 %v3832, %v3830
        %v3911 = vpack.c.bf16 %v3835, %v3833
        %v3912 = vpack.c.bf16 %v3836, %v3834
        %v3913 = vpack.c.bf16 %v3837, %v3837
        %v3914 = vpack.c.bf16 %v3838, %v3838
        %v3915 = vld [vmem:[#allocation12 + $0x100] sm:$0xff]
        %v3916 = vld [vmem:[#allocation12 + $0x108] sm:$0xff]
        %v3917 = vld [vmem:[#allocation12 + $0x110] sm:$0xff]
        %v3918 = vld [vmem:[#allocation12 + $0x118] sm:$0xff]
        %v3919 = vld [vmem:[#allocation12 + $0x120] sm:$0xff]
        %v3920 = vld [vmem:[#allocation12 + $0x128] sm:$0xff]
        %v3921 = vld [vmem:[#allocation12 + $0x130] sm:$0xff]
        %v3922 = vld [vmem:[#allocation12 + $0x138] sm:$0xff]
        %v3923 = vld [vmem:[#allocation12 + $0x140] sm:$0xff]
        %v3924 = vld [vmem:[#allocation12 + $0x148] sm:$0xff]
        %v3925 = vld [vmem:[#allocation12 + $0x150] sm:$0xff]
        %v3926 = vld [vmem:[#allocation12 + $0x158] sm:$0xff]
        %v3927 = vld [vmem:[#allocation12 + $0x160] sm:$0xff]
        %v3928 = vld [vmem:[#allocation12 + $0x168] sm:$0xff]
        %v3929 = vld [vmem:[#allocation12 + $0x170] sm:$0xff]
        %v3930 = vld [vmem:[#allocation12 + $0x178] sm:$0xff]
        %v3931 = vld [vmem:[#allocation12 + $0x180] sm:$0xff]
        %v3932 = vld [vmem:[#allocation12 + $0x188] sm:$0xff]
        %v3933 = vld [vmem:[#allocation12 + $0x190] sm:$0xff]
        %v3934 = vld [vmem:[#allocation12 + $0x198] sm:$0xff]
        %v3935 = vld [vmem:[#allocation12 + $0x1a0] sm:$0xff]
        %v3936 = vld [vmem:[#allocation12 + $0x1a8] sm:$0xff]
        %v3937 = vld [vmem:[#allocation12 + $0x1b0] sm:$0xff]
        %v3938 = vld [vmem:[#allocation12 + $0x1b8] sm:$0xff]
        %v3939 = vld [vmem:[#allocation12 + $0x1c0] sm:$0xff]
        %v3940 = vld [vmem:[#allocation12 + $0x1c8] sm:$0xff]
        %v3941 = vld [vmem:[#allocation12 + $0x1d0] sm:$0xff]
        %v3942 = vld [vmem:[#allocation12 + $0x1d8] sm:$0xff]
        %v3943 = vld [vmem:[#allocation12 + $0x1e0] sm:$0xff]
        %v3944 = vld [vmem:[#allocation12 + $0x1e8] sm:$0xff]
        %v3945 = vld [vmem:[#allocation12 + $0x1f0] sm:$0xff]
        %v3946 = vld [vmem:[#allocation12 + $0x1f8] sm:$0xff]
        %v3979 = vunpack.c.l.b16 %v3915
        %v3980 = vunpack.c.h.b16 %v3915
        %v3981 = vunpack.c.l.b16 %v3916
        %v3982 = vunpack.c.h.b16 %v3916
        %v3983 = vunpack.c.l.b16 %v3917
        %v3984 = vunpack.c.h.b16 %v3917
        %v3985 = vunpack.c.l.b16 %v3918
        %v3986 = vunpack.c.h.b16 %v3918
        %v3987 = vunpack.c.l.b16 %v3919
        %v3988 = vunpack.c.h.b16 %v3919
        %v3989 = vunpack.c.l.b16 %v3920
        %v3990 = vunpack.c.h.b16 %v3920
        %v3991 = vunpack.c.l.b16 %v3921
        %v3992 = vunpack.c.h.b16 %v3921
        %v3993 = vunpack.c.l.b16 %v3922
        %v3994 = vunpack.c.h.b16 %v3922
        %v3995 = vunpack.c.l.b16 %v3923
        %v3996 = vunpack.c.h.b16 %v3923
        %v3997 = vunpack.c.l.b16 %v3924
        %v3998 = vunpack.c.h.b16 %v3924
        %v3999 = vunpack.c.l.b16 %v3925
        %v4000 = vunpack.c.h.b16 %v3925
        %v4001 = vunpack.c.l.b16 %v3926
        %v4002 = vunpack.c.h.b16 %v3926
        %v4003 = vunpack.c.l.b16 %v3927
        %v4004 = vunpack.c.h.b16 %v3927
        %v4005 = vunpack.c.l.b16 %v3928
        %v4006 = vunpack.c.h.b16 %v3928
        %v4007 = vunpack.c.l.b16 %v3929
        %v4008 = vunpack.c.h.b16 %v3929
        %v4009 = vunpack.c.l.b16 %v3930
        %v4010 = vunpack.c.h.b16 %v3930
        %v4011 = vunpack.c.l.b16 %v3931
        %v4012 = vunpack.c.h.b16 %v3931
        %v4013 = vunpack.c.l.b16 %v3932
        %v4014 = vunpack.c.h.b16 %v3932
        %v4015 = vunpack.c.l.b16 %v3933
        %v4016 = vunpack.c.h.b16 %v3933
        %v4017 = vunpack.c.l.b16 %v3934
        %v4018 = vunpack.c.h.b16 %v3934
        %v4019 = vunpack.c.l.b16 %v3935
        %v4020 = vunpack.c.h.b16 %v3935
        %v4021 = vunpack.c.l.b16 %v3936
        %v4022 = vunpack.c.h.b16 %v3936
        %v4023 = vunpack.c.l.b16 %v3937
        %v4024 = vunpack.c.h.b16 %v3937
        %v4025 = vunpack.c.l.b16 %v3938
        %v4026 = vunpack.c.h.b16 %v3938
        %v4027 = vunpack.c.l.b16 %v3939
        %v4028 = vunpack.c.h.b16 %v3939
        %v4029 = vunpack.c.l.b16 %v3940
        %v4030 = vunpack.c.h.b16 %v3940
        %v4031 = vunpack.c.l.b16 %v3941
        %v4032 = vunpack.c.h.b16 %v3941
        %v4033 = vunpack.c.l.b16 %v3942
        %v4034 = vunpack.c.h.b16 %v3942
        %v4035 = vunpack.c.l.b16 %v3943
        %v4036 = vunpack.c.h.b16 %v3943
        %v4037 = vunpack.c.l.b16 %v3944
        %v4038 = vunpack.c.h.b16 %v3944
        %v4039 = vunpack.c.l.b16 %v3945
        %v4040 = vunpack.c.h.b16 %v3945
        %v4041 = vunpack.c.l.b16 %v3946
        %v4042 = vunpack.c.h.b16 %v3946
        %v4043 = vpack.c.b16 %v3981, %v3979
        %v4044 = vpack.c.b16 %v3982, %v3980
        %v4045 = vpack.c.b16 %v3985, %v3983
        %v4046 = vpack.c.b16 %v3986, %v3984
        %v4047 = vpack.c.b16 %v3989, %v3987
        %v4048 = vpack.c.b16 %v3990, %v3988
        %v4049 = vpack.c.b16 %v3993, %v3991
        %v4050 = vpack.c.b16 %v3994, %v3992
        %v4051 = vpack.c.b16 %v3997, %v3995
        %v4052 = vpack.c.b16 %v3998, %v3996
        %v4053 = vpack.c.b16 %v4001, %v3999
        %v4054 = vpack.c.b16 %v4002, %v4000
        %v4055 = vpack.c.b16 %v4005, %v4003
        %v4056 = vpack.c.b16 %v4006, %v4004
        %v4057 = vpack.c.b16 %v4009, %v4007
        %v4058 = vpack.c.b16 %v4010, %v4008
        %v4059 = vpack.c.b16 %v4013, %v4011
        %v4060 = vpack.c.b16 %v4014, %v4012
        %v4061 = vpack.c.b16 %v4017, %v4015
        %v4062 = vpack.c.b16 %v4018, %v4016
        %v4063 = vpack.c.b16 %v4021, %v4019
        %v4064 = vpack.c.b16 %v4022, %v4020
        %v4065 = vpack.c.b16 %v4025, %v4023
        %v4066 = vpack.c.b16 %v4026, %v4024
        %v4067 = vpack.c.b16 %v4029, %v4027
        %v4068 = vpack.c.b16 %v4030, %v4028
        %v4069 = vpack.c.b16 %v4033, %v4031
        %v4070 = vpack.c.b16 %v4034, %v4032
        %v4071 = vpack.c.b16 %v4037, %v4035
        %v4072 = vpack.c.b16 %v4038, %v4036
        %v4073 = vpack.c.b16 %v4041, %v4039
        %v4074 = vpack.c.b16 %v4042, %v4040
        %4107 = vmatpush.bf16.msra.mxu0 %v4057
        %4108 = vmatpush.bf16.msra.mxu0 %v4055
        %4109 = vmatpush.bf16.msra.mxu0 %v4053
        %4110 = vmatpush.bf16.msra.mxu0 %v4051
        %4111 = vmatpush.bf16.msra.mxu0 %v4049
        %4112 = vmatpush.bf16.msra.mxu0 %v4047
        %4113 = vmatpush.bf16.msra.mxu0 %v4045
        %4114 = vmatpush.bf16.msra.mxu0 %v4043
        %4115 = vmatmul.bf16.gmra.mxu0 %v3889
        %v4116 = vpop.f32.mrf.mxu0
        %v4117 = vadd.f32 0.0, %v4116
        %v4118 = vpop.f32.mrf.mxu0
        %v4119 = vadd.f32 0.0, %v4118
        %4120 = vmatmul.bf16.gmra.mxu0 %v3891
        %v4121 = vpop.f32.mrf.mxu0
        %v4122 = vadd.f32 0.0, %v4121
        %v4123 = vpop.f32.mrf.mxu0
        %v4124 = vadd.f32 0.0, %v4123
        %4125 = vmatmul.bf16.gmra.mxu0 %v3893
        %v4126 = vpop.f32.mrf.mxu0
        %v4127 = vadd.f32 0.0, %v4126
        %v4128 = vpop.f32.mrf.mxu0
        %v4129 = vadd.f32 0.0, %v4128
        %4130 = vmatmul.bf16.gmra.mxu0 %v3895
        %v4131 = vpop.f32.mrf.mxu0
        %v4132 = vadd.f32 0.0, %v4131
        %v4133 = vpop.f32.mrf.mxu0
        %v4134 = vadd.f32 0.0, %v4133
        %4135 = vmatmul.bf16.gmra.mxu0 %v3897
        %v4136 = vpop.f32.mrf.mxu0
        %v4137 = vadd.f32 0.0, %v4136
        %v4138 = vpop.f32.mrf.mxu0
        %v4139 = vadd.f32 0.0, %v4138
        %4140 = vmatmul.bf16.gmra.mxu0 %v3899
        %v4141 = vpop.f32.mrf.mxu0
        %v4142 = vadd.f32 0.0, %v4141
        %v4143 = vpop.f32.mrf.mxu0
        %v4144 = vadd.f32 0.0, %v4143
        %4145 = vmatmul.bf16.gmra.mxu0 %v3901
        %v4146 = vpop.f32.mrf.mxu0
        %v4147 = vadd.f32 0.0, %v4146
        %v4148 = vpop.f32.mrf.mxu0
        %v4149 = vadd.f32 0.0, %v4148
        %4150 = vmatmul.bf16.gmra.mxu0 %v3903
        %v4151 = vpop.f32.mrf.mxu0
        %v4152 = vadd.f32 0.0, %v4151
        %v4153 = vpop.f32.mrf.mxu0
        %v4154 = vadd.f32 0.0, %v4153
        %4155 = vmatmul.bf16.gmra.mxu0 %v3905
        %v4156 = vpop.f32.mrf.mxu0
        %v4157 = vadd.f32 0.0, %v4156
        %v4158 = vpop.f32.mrf.mxu0
        %v4159 = vadd.f32 0.0, %v4158
        %4160 = vmatmul.bf16.gmra.mxu0 %v3907
        %v4161 = vpop.f32.mrf.mxu0
        %v4162 = vadd.f32 0.0, %v4161
        %v4163 = vpop.f32.mrf.mxu0
        %v4164 = vadd.f32 0.0, %v4163
        %4165 = vmatmul.bf16.gmra.mxu0 %v3909
        %v4166 = vpop.f32.mrf.mxu0
        %v4167 = vadd.f32 0.0, %v4166
        %v4168 = vpop.f32.mrf.mxu0
        %v4169 = vadd.f32 0.0, %v4168
        %4170 = vmatmul.bf16.gmra.mxu0 %v3911
        %v4171 = vpop.f32.mrf.mxu0
        %v4172 = vadd.f32 0.0, %v4171
        %v4173 = vpop.f32.mrf.mxu0
        %v4174 = vadd.f32 0.0, %v4173
        %4175 = vmatmul.bf16.gmra.mxu0 %v3913
        %v4176 = vpop.f32.mrf.mxu0
        %v4177 = vadd.f32 0.0, %v4176
        %v4178 = vpop.f32.mrf.mxu0
        %4179 = vdwg.mxu0
        %4180 = vmatpush.bf16.msra.mxu0 %v4073
        %4181 = vmatpush.bf16.msra.mxu0 %v4071
        %4182 = vmatpush.bf16.msra.mxu0 %v4069
        %4183 = vmatpush.bf16.msra.mxu0 %v4067
        %4184 = vmatpush.bf16.msra.mxu0 %v4065
        %4185 = vmatpush.bf16.msra.mxu0 %v4063
        %4186 = vmatpush.bf16.msra.mxu0 %v4061
        %4187 = vmatpush.bf16.msra.mxu0 %v4059
        %4188 = vmatmul.bf16.gmra.mxu0 %v3890
        %v4189 = vpop.f32.mrf.mxu0
        %v4190 = vadd.f32 %v4117, %v4189
        %v4191 = vpop.f32.mrf.mxu0
        %v4192 = vadd.f32 %v4119, %v4191
        %4193 = vmatmul.bf16.gmra.mxu0 %v3892
        %v4194 = vpop.f32.mrf.mxu0
        %v4195 = vadd.f32 %v4122, %v4194
        %v4196 = vpop.f32.mrf.mxu0
        %v4197 = vadd.f32 %v4124, %v4196
        %4198 = vmatmul.bf16.gmra.mxu0 %v3894
        %v4199 = vpop.f32.mrf.mxu0
        %v4200 = vadd.f32 %v4127, %v4199
        %v4201 = vpop.f32.mrf.mxu0
        %v4202 = vadd.f32 %v4129, %v4201
        %4203 = vmatmul.bf16.gmra.mxu0 %v3896
        %v4204 = vpop.f32.mrf.mxu0
        %v4205 = vadd.f32 %v4132, %v4204
        %v4206 = vpop.f32.mrf.mxu0
        %v4207 = vadd.f32 %v4134, %v4206
        %4208 = vmatmul.bf16.gmra.mxu0 %v3898
        %v4209 = vpop.f32.mrf.mxu0
        %v4210 = vadd.f32 %v4137, %v4209
        %v4211 = vpop.f32.mrf.mxu0
        %v4212 = vadd.f32 %v4139, %v4211
        %4213 = vmatmul.bf16.gmra.mxu0 %v3900
        %v4214 = vpop.f32.mrf.mxu0
        %v4215 = vadd.f32 %v4142, %v4214
        %v4216 = vpop.f32.mrf.mxu0
        %v4217 = vadd.f32 %v4144, %v4216
        %4218 = vmatmul.bf16.gmra.mxu0 %v3902
        %v4219 = vpop.f32.mrf.mxu0
        %v4220 = vadd.f32 %v4147, %v4219
        %v4221 = vpop.f32.mrf.mxu0
        %v4222 = vadd.f32 %v4149, %v4221
        %4223 = vmatmul.bf16.gmra.mxu0 %v3904
        %v4224 = vpop.f32.mrf.mxu0
        %v4225 = vadd.f32 %v4152, %v4224
        %v4226 = vpop.f32.mrf.mxu0
        %v4227 = vadd.f32 %v4154, %v4226
        %4228 = vmatmul.bf16.gmra.mxu0 %v3906
        %v4229 = vpop.f32.mrf.mxu0
        %v4230 = vadd.f32 %v4157, %v4229
        %v4231 = vpop.f32.mrf.mxu0
        %v4232 = vadd.f32 %v4159, %v4231
        %4233 = vmatmul.bf16.gmra.mxu0 %v3908
        %v4234 = vpop.f32.mrf.mxu0
        %v4235 = vadd.f32 %v4162, %v4234
        %v4236 = vpop.f32.mrf.mxu0
        %v4237 = vadd.f32 %v4164, %v4236
        %4238 = vmatmul.bf16.gmra.mxu0 %v3910
        %v4239 = vpop.f32.mrf.mxu0
        %v4240 = vadd.f32 %v4167, %v4239
        %v4241 = vpop.f32.mrf.mxu0
        %v4242 = vadd.f32 %v4169, %v4241
        %4243 = vmatmul.bf16.gmra.mxu0 %v3912
        %v4244 = vpop.f32.mrf.mxu0
        %v4245 = vadd.f32 %v4172, %v4244
        %v4246 = vpop.f32.mrf.mxu0
        %v4247 = vadd.f32 %v4174, %v4246
        %4248 = vmatmul.bf16.gmra.mxu0 %v3914
        %v4249 = vpop.f32.mrf.mxu0
        %v4250 = vadd.f32 %v4177, %v4249
        %v4251 = vpop.f32.mrf.mxu0
        %4252 = vdwg.mxu0
        %4253 = vmatpush.bf16.msra.mxu0 %v4058
        %4254 = vmatpush.bf16.msra.mxu0 %v4056
        %4255 = vmatpush.bf16.msra.mxu0 %v4054
        %4256 = vmatpush.bf16.msra.mxu0 %v4052
        %4257 = vmatpush.bf16.msra.mxu0 %v4050
        %4258 = vmatpush.bf16.msra.mxu0 %v4048
        %4259 = vmatpush.bf16.msra.mxu0 %v4046
        %4260 = vmatpush.bf16.msra.mxu0 %v4044
        %4261 = vmatmul.bf16.gmra.mxu0 %v3889
        %v4262 = vpop.f32.mrf.mxu0
        %v4263 = vadd.f32 0.0, %v4262
        %v4264 = vpop.f32.mrf.mxu0
        %v4265 = vadd.f32 0.0, %v4264
        %4266 = vmatmul.bf16.gmra.mxu0 %v3891
        %v4267 = vpop.f32.mrf.mxu0
        %v4268 = vadd.f32 0.0, %v4267
        %v4269 = vpop.f32.mrf.mxu0
        %v4270 = vadd.f32 0.0, %v4269
        %4271 = vmatmul.bf16.gmra.mxu0 %v3893
        %v4272 = vpop.f32.mrf.mxu0
        %v4273 = vadd.f32 0.0, %v4272
        %v4274 = vpop.f32.mrf.mxu0
        %v4275 = vadd.f32 0.0, %v4274
        %4276 = vmatmul.bf16.gmra.mxu0 %v3895
        %v4277 = vpop.f32.mrf.mxu0
        %v4278 = vadd.f32 0.0, %v4277
        %v4279 = vpop.f32.mrf.mxu0
        %v4280 = vadd.f32 0.0, %v4279
        %4281 = vmatmul.bf16.gmra.mxu0 %v3897
        %v4282 = vpop.f32.mrf.mxu0
        %v4283 = vadd.f32 0.0, %v4282
        %v4284 = vpop.f32.mrf.mxu0
        %v4285 = vadd.f32 0.0, %v4284
        %4286 = vmatmul.bf16.gmra.mxu0 %v3899
        %v4287 = vpop.f32.mrf.mxu0
        %v4288 = vadd.f32 0.0, %v4287
        %v4289 = vpop.f32.mrf.mxu0
        %v4290 = vadd.f32 0.0, %v4289
        %4291 = vmatmul.bf16.gmra.mxu0 %v3901
        %v4292 = vpop.f32.mrf.mxu0
        %v4293 = vadd.f32 0.0, %v4292
        %v4294 = vpop.f32.mrf.mxu0
        %v4295 = vadd.f32 0.0, %v4294
        %4296 = vmatmul.bf16.gmra.mxu0 %v3903
        %v4297 = vpop.f32.mrf.mxu0
        %v4298 = vadd.f32 0.0, %v4297
        %v4299 = vpop.f32.mrf.mxu0
        %v4300 = vadd.f32 0.0, %v4299
        %4301 = vmatmul.bf16.gmra.mxu0 %v3905
        %v4302 = vpop.f32.mrf.mxu0
        %v4303 = vadd.f32 0.0, %v4302
        %v4304 = vpop.f32.mrf.mxu0
        %v4305 = vadd.f32 0.0, %v4304
        %4306 = vmatmul.bf16.gmra.mxu0 %v3907
        %v4307 = vpop.f32.mrf.mxu0
        %v4308 = vadd.f32 0.0, %v4307
        %v4309 = vpop.f32.mrf.mxu0
        %v4310 = vadd.f32 0.0, %v4309
        %4311 = vmatmul.bf16.gmra.mxu0 %v3909
        %v4312 = vpop.f32.mrf.mxu0
        %v4313 = vadd.f32 0.0, %v4312
        %v4314 = vpop.f32.mrf.mxu0
        %v4315 = vadd.f32 0.0, %v4314
        %4316 = vmatmul.bf16.gmra.mxu0 %v3911
        %v4317 = vpop.f32.mrf.mxu0
        %v4318 = vadd.f32 0.0, %v4317
        %v4319 = vpop.f32.mrf.mxu0
        %v4320 = vadd.f32 0.0, %v4319
        %4321 = vmatmul.bf16.gmra.mxu0 %v3913
        %v4322 = vpop.f32.mrf.mxu0
        %v4323 = vadd.f32 0.0, %v4322
        %v4324 = vpop.f32.mrf.mxu0
        %4325 = vdwg.mxu0
        %4326 = vmatpush.bf16.msra.mxu0 %v4074
        %4327 = vmatpush.bf16.msra.mxu0 %v4072
        %4328 = vmatpush.bf16.msra.mxu0 %v4070
        %4329 = vmatpush.bf16.msra.mxu0 %v4068
        %4330 = vmatpush.bf16.msra.mxu0 %v4066
        %4331 = vmatpush.bf16.msra.mxu0 %v4064
        %4332 = vmatpush.bf16.msra.mxu0 %v4062
        %4333 = vmatpush.bf16.msra.mxu0 %v4060
        %4334 = vmatmul.bf16.gmra.mxu0 %v3890
        %v4335 = vpop.f32.mrf.mxu0
        %v4336 = vadd.f32 %v4263, %v4335
        %v4337 = vpop.f32.mrf.mxu0
        %v4338 = vadd.f32 %v4265, %v4337
        %4339 = vmatmul.bf16.gmra.mxu0 %v3892
        %v4340 = vpop.f32.mrf.mxu0
        %v4341 = vadd.f32 %v4268, %v4340
        %v4342 = vpop.f32.mrf.mxu0
        %v4343 = vadd.f32 %v4270, %v4342
        %4344 = vmatmul.bf16.gmra.mxu0 %v3894
        %v4345 = vpop.f32.mrf.mxu0
        %v4346 = vadd.f32 %v4273, %v4345
        %v4347 = vpop.f32.mrf.mxu0
        %v4348 = vadd.f32 %v4275, %v4347
        %4349 = vmatmul.bf16.gmra.mxu0 %v3896
        %v4350 = vpop.f32.mrf.mxu0
        %v4351 = vadd.f32 %v4278, %v4350
        %v4352 = vpop.f32.mrf.mxu0
        %v4353 = vadd.f32 %v4280, %v4352
        %4354 = vmatmul.bf16.gmra.mxu0 %v3898
        %v4355 = vpop.f32.mrf.mxu0
        %v4356 = vadd.f32 %v4283, %v4355
        %v4357 = vpop.f32.mrf.mxu0
        %v4358 = vadd.f32 %v4285, %v4357
        %4359 = vmatmul.bf16.gmra.mxu0 %v3900
        %v4360 = vpop.f32.mrf.mxu0
        %v4361 = vadd.f32 %v4288, %v4360
        %v4362 = vpop.f32.mrf.mxu0
        %v4363 = vadd.f32 %v4290, %v4362
        %4364 = vmatmul.bf16.gmra.mxu0 %v3902
        %v4365 = vpop.f32.mrf.mxu0
        %v4366 = vadd.f32 %v4293, %v4365
        %v4367 = vpop.f32.mrf.mxu0
        %v4368 = vadd.f32 %v4295, %v4367
        %4369 = vmatmul.bf16.gmra.mxu0 %v3904
        %v4370 = vpop.f32.mrf.mxu0
        %v4371 = vadd.f32 %v4298, %v4370
        %v4372 = vpop.f32.mrf.mxu0
        %v4373 = vadd.f32 %v4300, %v4372
        %4374 = vmatmul.bf16.gmra.mxu0 %v3906
        %v4375 = vpop.f32.mrf.mxu0
        %v4376 = vadd.f32 %v4303, %v4375
        %v4377 = vpop.f32.mrf.mxu0
        %v4378 = vadd.f32 %v4305, %v4377
        %4379 = vmatmul.bf16.gmra.mxu0 %v3908
        %v4380 = vpop.f32.mrf.mxu0
        %v4381 = vadd.f32 %v4308, %v4380
        %v4382 = vpop.f32.mrf.mxu0
        %v4383 = vadd.f32 %v4310, %v4382
        %4384 = vmatmul.bf16.gmra.mxu0 %v3910
        %v4385 = vpop.f32.mrf.mxu0
        %v4386 = vadd.f32 %v4313, %v4385
        %v4387 = vpop.f32.mrf.mxu0
        %v4388 = vadd.f32 %v4315, %v4387
        %4389 = vmatmul.bf16.gmra.mxu0 %v3912
        %v4390 = vpop.f32.mrf.mxu0
        %v4391 = vadd.f32 %v4318, %v4390
        %v4392 = vpop.f32.mrf.mxu0
        %v4393 = vadd.f32 %v4320, %v4392
        %4394 = vmatmul.bf16.gmra.mxu0 %v3914
        %v4395 = vpop.f32.mrf.mxu0
        %v4396 = vadd.f32 %v4323, %v4395
        %v4397 = vpop.f32.mrf.mxu0
        %4398 = vdwg.mxu0
        %v4399 = vadd.f32 %v3839, %v4190
        %v4400 = vadd.f32 %v3840, %v4336
        %v4401 = vadd.f32 %v3841, %v4192
        %v4402 = vadd.f32 %v3842, %v4338
        %v4403 = vadd.f32 %v3843, %v4195
        %v4404 = vadd.f32 %v3844, %v4341
        %v4405 = vadd.f32 %v3845, %v4197
        %v4406 = vadd.f32 %v3846, %v4343
        %v4407 = vadd.f32 %v3847, %v4200
        %v4408 = vadd.f32 %v3848, %v4346
        %v4409 = vadd.f32 %v3849, %v4202
        %v4410 = vadd.f32 %v3850, %v4348
        %v4411 = vadd.f32 %v3851, %v4205
        %v4412 = vadd.f32 %v3852, %v4351
        %v4413 = vadd.f32 %v3853, %v4207
        %v4414 = vadd.f32 %v3854, %v4353
        %v4415 = vadd.f32 %v3855, %v4210
        %v4416 = vadd.f32 %v3856, %v4356
        %v4417 = vadd.f32 %v3857, %v4212
        %v4418 = vadd.f32 %v3858, %v4358
        %v4419 = vadd.f32 %v3859, %v4215
        %v4420 = vadd.f32 %v3860, %v4361
        %v4421 = vadd.f32 %v3861, %v4217
        %v4422 = vadd.f32 %v3862, %v4363
        %v4423 = vadd.f32 %v3863, %v4220
        %v4424 = vadd.f32 %v3864, %v4366
        %v4425 = vadd.f32 %v3865, %v4222
        %v4426 = vadd.f32 %v3866, %v4368
        %v4427 = vadd.f32 %v3867, %v4225
        %v4428 = vadd.f32 %v3868, %v4371
        %v4429 = vadd.f32 %v3869, %v4227
        %v4430 = vadd.f32 %v3870, %v4373
        %v4431 = vadd.f32 %v3871, %v4230
        %v4432 = vadd.f32 %v3872, %v4376
        %v4433 = vadd.f32 %v3873, %v4232
        %v4434 = vadd.f32 %v3874, %v4378
        %v4435 = vadd.f32 %v3875, %v4235
        %v4436 = vadd.f32 %v3876, %v4381
        %v4437 = vadd.f32 %v3877, %v4237
        %v4438 = vadd.f32 %v3878, %v4383
        %v4439 = vadd.f32 %v3879, %v4240
        %v4440 = vadd.f32 %v3880, %v4386
        %v4441 = vadd.f32 %v3881, %v4242
        %v4442 = vadd.f32 %v3882, %v4388
        %v4443 = vadd.f32 %v3883, %v4245
        %v4444 = vadd.f32 %v3884, %v4391
        %v4445 = vadd.f32 %v3885, %v4247
        %v4446 = vadd.f32 %v3886, %v4393
        %v4447 = vadd.f32 %v3887, %v4250
        %v4448 = vadd.f32 %v3888, %v4396
        %4449 = vst [vmem:[#allocation2] sm:$0xff] %v4399
        %4450 = vst [vmem:[#allocation2 + $0x8] sm:$0xff] %v4400
        %4451 = vst [vmem:[#allocation2 + $0x10] sm:$0xff] %v4401
        %4452 = vst [vmem:[#allocation2 + $0x18] sm:$0xff] %v4402
        %4453 = vst [vmem:[#allocation2 + $0x20] sm:$0xff] %v4403
        %4454 = vst [vmem:[#allocation2 + $0x28] sm:$0xff] %v4404
        %4455 = vst [vmem:[#allocation2 + $0x30] sm:$0xff] %v4405
        %4456 = vst [vmem:[#allocation2 + $0x38] sm:$0xff] %v4406
        %4457 = vst [vmem:[#allocation2 + $0x40] sm:$0xff] %v4407
        %4458 = vst [vmem:[#allocation2 + $0x48] sm:$0xff] %v4408
        %4459 = vst [vmem:[#allocation2 + $0x50] sm:$0xff] %v4409
        %4460 = vst [vmem:[#allocation2 + $0x58] sm:$0xff] %v4410
        %4461 = vst [vmem:[#allocation2 + $0x60] sm:$0xff] %v4411
        %4462 = vst [vmem:[#allocation2 + $0x68] sm:$0xff] %v4412
        %4463 = vst [vmem:[#allocation2 + $0x70] sm:$0xff] %v4413
        %4464 = vst [vmem:[#allocation2 + $0x78] sm:$0xff] %v4414
        %4465 = vst [vmem:[#allocation2 + $0x80] sm:$0xff] %v4415
        %4466 = vst [vmem:[#allocation2 + $0x88] sm:$0xff] %v4416
        %4467 = vst [vmem:[#allocation2 + $0x90] sm:$0xff] %v4417
        %4468 = vst [vmem:[#allocation2 + $0x98] sm:$0xff] %v4418
        %4469 = vst [vmem:[#allocation2 + $0xa0] sm:$0xff] %v4419
        %4470 = vst [vmem:[#allocation2 + $0xa8] sm:$0xff] %v4420
        %4471 = vst [vmem:[#allocation2 + $0xb0] sm:$0xff] %v4421
        %4472 = vst [vmem:[#allocation2 + $0xb8] sm:$0xff] %v4422
        %4473 = vst [vmem:[#allocation2 + $0xc0] sm:$0xff] %v4423
        %4474 = vst [vmem:[#allocation2 + $0xc8] sm:$0xff] %v4424
        %4475 = vst [vmem:[#allocation2 + $0xd0] sm:$0xff] %v4425
        %4476 = vst [vmem:[#allocation2 + $0xd8] sm:$0xff] %v4426
        %4477 = vst [vmem:[#allocation2 + $0xe0] sm:$0xff] %v4427
        %4478 = vst [vmem:[#allocation2 + $0xe8] sm:$0xff] %v4428
        %4479 = vst [vmem:[#allocation2 + $0xf0] sm:$0xff] %v4429
        %4480 = vst [vmem:[#allocation2 + $0xf8] sm:$0xff] %v4430
        %4481 = vst [vmem:[#allocation2 + $0x100] sm:$0xff] %v4431
        %4482 = vst [vmem:[#allocation2 + $0x108] sm:$0xff] %v4432
        %4483 = vst [vmem:[#allocation2 + $0x110] sm:$0xff] %v4433
        %4484 = vst [vmem:[#allocation2 + $0x118] sm:$0xff] %v4434
        %4485 = vst [vmem:[#allocation2 + $0x120] sm:$0xff] %v4435
        %4486 = vst [vmem:[#allocation2 + $0x128] sm:$0xff] %v4436
        %4487 = vst [vmem:[#allocation2 + $0x130] sm:$0xff] %v4437
        %4488 = vst [vmem:[#allocation2 + $0x138] sm:$0xff] %v4438
        %4489 = vst [vmem:[#allocation2 + $0x140] sm:$0xff] %v4439
        %4490 = vst [vmem:[#allocation2 + $0x148] sm:$0xff] %v4440
        %4491 = vst [vmem:[#allocation2 + $0x150] sm:$0xff] %v4441
        %4492 = vst [vmem:[#allocation2 + $0x158] sm:$0xff] %v4442
        %4493 = vst [vmem:[#allocation2 + $0x160] sm:$0xff] %v4443
        %4494 = vst [vmem:[#allocation2 + $0x168] sm:$0xff] %v4444
        %4495 = vst [vmem:[#allocation2 + $0x170] sm:$0xff] %v4445
        %4496 = vst [vmem:[#allocation2 + $0x178] sm:$0xff] %v4446
        %4497 = vst [vmem:[#allocation2 + $0x180] sm:$0xff] %v4447
        %4498 = vst [vmem:[#allocation2 + $0x188] sm:$0xff] %v4448
        %v4499 = vld [vmem:[#allocation9 + $0x10] sm:$0xff]
        %v4500 = vld [vmem:[#allocation9 + $0x28] sm:$0xff]
        %v4501 = vld [vmem:[#allocation9 + $0x40] sm:$0xff]
        %v4502 = vld [vmem:[#allocation9 + $0x58] sm:$0xff]
        %v4503 = vld [vmem:[#allocation9 + $0x70] sm:$0xff]
        %v4504 = vld [vmem:[#allocation9 + $0x88] sm:$0xff]
        %v4505 = vld [vmem:[#allocation9 + $0xa0] sm:$0xff]
        %v4506 = vld [vmem:[#allocation9 + $0xb8] sm:$0xff]
        %v4507 = vld [vmem:[#allocation9 + $0xd0] sm:$0xff]
        %v4508 = vld [vmem:[#allocation9 + $0xe8] sm:$0xff]
        %v4509 = vld [vmem:[#allocation9 + $0x100] sm:$0xff]
        %v4510 = vld [vmem:[#allocation9 + $0x118] sm:$0xff]
        %v4511 = vld [vmem:[#allocation9 + $0x130] sm:$0xff]
        %v4512 = vld [vmem:[#allocation9 + $0x148] sm:$0xff]
        %v4513 = vld [vmem:[#allocation9 + $0x160] sm:$0xff]
        %v4514 = vld [vmem:[#allocation9 + $0x178] sm:$0xff]
        %v4515 = vld [vmem:[#allocation9 + $0x190] sm:$0xff]
        %v4516 = vld [vmem:[#allocation9 + $0x1a8] sm:$0xff]
        %v4517 = vld [vmem:[#allocation9 + $0x1c0] sm:$0xff]
        %v4518 = vld [vmem:[#allocation9 + $0x1d8] sm:$0xff]
        %v4519 = vld [vmem:[#allocation9 + $0x1f0] sm:$0xff]
        %v4520 = vld [vmem:[#allocation9 + $0x208] sm:$0xff]
        %v4521 = vld [vmem:[#allocation9 + $0x220] sm:$0xff]
        %v4522 = vld [vmem:[#allocation9 + $0x238] sm:$0xff]
        %v4523 = vld [vmem:[#allocation9 + $0x250] sm:$0xff]
        %v4524 = vld [vmem:[#allocation9 + $0x268] sm:$0xff]
        %v4525 = vld [vmem:[#allocation9 + $0x280] sm:$0xff]
        %v4526 = vld [vmem:[#allocation9 + $0x298] sm:$0xff]
        %v4527 = vld [vmem:[#allocation9 + $0x2b0] sm:$0xff]
        %v4528 = vld [vmem:[#allocation9 + $0x2c8] sm:$0xff]
        %v4529 = vld [vmem:[#allocation9 + $0x2e0] sm:$0xff]
        %v4530 = vld [vmem:[#allocation9 + $0x2f8] sm:$0xff]
        %v4531 = vld [vmem:[#allocation11 + $0x4] sm:$0x3]
        %v4533 = vperm.slane %v4531, 0
        %v4534 = vperm.slane %v4531, 1
        %v4569 = vunpack.c.l.b16 %v4499
        %v4570 = vunpack.c.h.b16 %v4499
        %v4571 = vunpack.c.l.b16 %v4500
        %v4572 = vunpack.c.h.b16 %v4500
        %v4573 = vunpack.c.l.b16 %v4501
        %v4574 = vunpack.c.h.b16 %v4501
        %v4575 = vunpack.c.l.b16 %v4502
        %v4576 = vunpack.c.h.b16 %v4502
        %v4577 = vunpack.c.l.b16 %v4503
        %v4578 = vunpack.c.h.b16 %v4503
        %v4579 = vunpack.c.l.b16 %v4504
        %v4580 = vunpack.c.h.b16 %v4504
        %v4581 = vunpack.c.l.b16 %v4505
        %v4582 = vunpack.c.h.b16 %v4505
        %v4583 = vunpack.c.l.b16 %v4506
        %v4584 = vunpack.c.h.b16 %v4506
        %v4585 = vunpack.c.l.b16 %v4507
        %v4586 = vunpack.c.h.b16 %v4507
        %v4587 = vunpack.c.l.b16 %v4508
        %v4588 = vunpack.c.h.b16 %v4508
        %v4589 = vunpack.c.l.b16 %v4509
        %v4590 = vunpack.c.h.b16 %v4509
        %v4591 = vunpack.c.l.b16 %v4510
        %v4592 = vunpack.c.h.b16 %v4510
        %v4593 = vunpack.c.l.b16 %v4511
        %v4594 = vunpack.c.h.b16 %v4511
        %v4595 = vunpack.c.l.b16 %v4512
        %v4596 = vunpack.c.h.b16 %v4512
        %v4597 = vunpack.c.l.b16 %v4513
        %v4598 = vunpack.c.h.b16 %v4513
        %v4599 = vunpack.c.l.b16 %v4514
        %v4600 = vunpack.c.h.b16 %v4514
        %v4601 = vunpack.c.l.b16 %v4515
        %v4602 = vunpack.c.h.b16 %v4515
        %v4603 = vunpack.c.l.b16 %v4516
        %v4604 = vunpack.c.h.b16 %v4516
        %v4605 = vunpack.c.l.b16 %v4517
        %v4606 = vunpack.c.h.b16 %v4517
        %v4607 = vunpack.c.l.b16 %v4518
        %v4608 = vunpack.c.h.b16 %v4518
        %v4609 = vunpack.c.l.b16 %v4519
        %v4610 = vunpack.c.h.b16 %v4519
        %v4611 = vunpack.c.l.b16 %v4520
        %v4612 = vunpack.c.h.b16 %v4520
        %v4613 = vunpack.c.l.b16 %v4521
        %v4614 = vunpack.c.h.b16 %v4521
        %v4615 = vunpack.c.l.b16 %v4522
        %v4616 = vunpack.c.h.b16 %v4522
        %v4617 = vunpack.c.l.b16 %v4523
        %v4618 = vunpack.c.h.b16 %v4523
        %v4619 = vunpack.c.l.b16 %v4524
        %v4620 = vunpack.c.h.b16 %v4524
        %v4621 = vunpack.c.l.b16 %v4525
        %v4622 = vunpack.c.h.b16 %v4525
        %v4623 = vunpack.c.l.b16 %v4526
        %v4624 = vunpack.c.h.b16 %v4526
        %v4625 = vunpack.c.l.b16 %v4527
        %v4626 = vunpack.c.h.b16 %v4527
        %v4627 = vunpack.c.l.b16 %v4528
        %v4628 = vunpack.c.h.b16 %v4528
        %v4629 = vunpack.c.l.b16 %v4529
        %v4630 = vunpack.c.h.b16 %v4529
        %v4631 = vunpack.c.l.b16 %v4530
        %v4632 = vunpack.c.h.b16 %v4530
        %v4633 = vpack.c.b16 %v4571, %v4569
        %v4634 = vpack.c.b16 %v4572, %v4570
        %v4635 = vpack.c.b16 %v4575, %v4573
        %v4636 = vpack.c.b16 %v4576, %v4574
        %v4637 = vpack.c.b16 %v4579, %v4577
        %v4638 = vpack.c.b16 %v4580, %v4578
        %v4639 = vpack.c.b16 %v4583, %v4581
        %v4640 = vpack.c.b16 %v4584, %v4582
        %v4641 = vpack.c.b16 %v4587, %v4585
        %v4642 = vpack.c.b16 %v4588, %v4586
        %v4643 = vpack.c.b16 %v4591, %v4589
        %v4644 = vpack.c.b16 %v4592, %v4590
        %v4645 = vpack.c.b16 %v4595, %v4593
        %v4646 = vpack.c.b16 %v4596, %v4594
        %v4647 = vpack.c.b16 %v4599, %v4597
        %v4648 = vpack.c.b16 %v4600, %v4598
        %v4649 = vpack.c.b16 %v4603, %v4601
        %v4650 = vpack.c.b16 %v4604, %v4602
        %v4651 = vpack.c.b16 %v4607, %v4605
        %v4652 = vpack.c.b16 %v4608, %v4606
        %v4653 = vpack.c.b16 %v4611, %v4609
        %v4654 = vpack.c.b16 %v4612, %v4610
        %v4655 = vpack.c.b16 %v4615, %v4613
        %v4656 = vpack.c.b16 %v4616, %v4614
        %v4657 = vpack.c.b16 %v4619, %v4617
        %v4658 = vpack.c.b16 %v4620, %v4618
        %v4659 = vpack.c.b16 %v4623, %v4621
        %v4660 = vpack.c.b16 %v4624, %v4622
        %v4661 = vpack.c.b16 %v4627, %v4625
        %v4662 = vpack.c.b16 %v4628, %v4626
        %v4663 = vpack.c.b16 %v4631, %v4629
        %v4664 = vpack.c.b16 %v4632, %v4630
        %4697 = vmatpush.bf16.msra.mxu0 %v4647
        %4698 = vmatpush.bf16.msra.mxu0 %v4645
        %4699 = vmatpush.bf16.msra.mxu0 %v4643
        %4700 = vmatpush.bf16.msra.mxu0 %v4641
        %4701 = vmatpush.bf16.msra.mxu0 %v4639
        %4702 = vmatpush.bf16.msra.mxu0 %v4637
        %4703 = vmatpush.bf16.msra.mxu0 %v4635
        %4704 = vmatpush.bf16.msra.mxu0 %v4633
        %4705 = vmatmul.bf16.gmra.mxu0 %v1223
        %v4706 = vpop.f32.mrf.mxu0
        %v4707 = vadd.f32 %v4533, %v4706
        %v4708 = vpop.f32.mrf.mxu0
        %v4709 = vadd.f32 %v4533, %v4708
        %4710 = vmatmul.bf16.gmra.mxu0 %v1225
        %v4711 = vpop.f32.mrf.mxu0
        %v4712 = vadd.f32 %v4533, %v4711
        %v4713 = vpop.f32.mrf.mxu0
        %v4714 = vadd.f32 %v4533, %v4713
        %4715 = vmatmul.bf16.gmra.mxu0 %v1227
        %v4716 = vpop.f32.mrf.mxu0
        %v4717 = vadd.f32 %v4533, %v4716
        %v4718 = vpop.f32.mrf.mxu0
        %v4719 = vadd.f32 %v4533, %v4718
        %4720 = vmatmul.bf16.gmra.mxu0 %v1229
        %v4721 = vpop.f32.mrf.mxu0
        %v4722 = vadd.f32 %v4533, %v4721
        %v4723 = vpop.f32.mrf.mxu0
        %v4724 = vadd.f32 %v4533, %v4723
        %4725 = vmatmul.bf16.gmra.mxu0 %v1231
        %v4726 = vpop.f32.mrf.mxu0
        %v4727 = vadd.f32 %v4533, %v4726
        %v4728 = vpop.f32.mrf.mxu0
        %v4729 = vadd.f32 %v4533, %v4728
        %4730 = vmatmul.bf16.gmra.mxu0 %v1233
        %v4731 = vpop.f32.mrf.mxu0
        %v4732 = vadd.f32 %v4533, %v4731
        %v4733 = vpop.f32.mrf.mxu0
        %v4734 = vadd.f32 %v4533, %v4733
        %4735 = vmatmul.bf16.gmra.mxu0 %v1235
        %v4736 = vpop.f32.mrf.mxu0
        %v4737 = vadd.f32 %v4533, %v4736
        %v4738 = vpop.f32.mrf.mxu0
        %v4739 = vadd.f32 %v4533, %v4738
        %4740 = vmatmul.bf16.gmra.mxu0 %v1237
        %v4741 = vpop.f32.mrf.mxu0
        %v4742 = vadd.f32 %v4533, %v4741
        %v4743 = vpop.f32.mrf.mxu0
        %v4744 = vadd.f32 %v4533, %v4743
        %4745 = vmatmul.bf16.gmra.mxu0 %v1239
        %v4746 = vpop.f32.mrf.mxu0
        %v4747 = vadd.f32 %v4533, %v4746
        %v4748 = vpop.f32.mrf.mxu0
        %v4749 = vadd.f32 %v4533, %v4748
        %4750 = vmatmul.bf16.gmra.mxu0 %v1241
        %v4751 = vpop.f32.mrf.mxu0
        %v4752 = vadd.f32 %v4533, %v4751
        %v4753 = vpop.f32.mrf.mxu0
        %v4754 = vadd.f32 %v4533, %v4753
        %4755 = vmatmul.bf16.gmra.mxu0 %v1243
        %v4756 = vpop.f32.mrf.mxu0
        %v4757 = vadd.f32 %v4533, %v4756
        %v4758 = vpop.f32.mrf.mxu0
        %v4759 = vadd.f32 %v4533, %v4758
        %4760 = vmatmul.bf16.gmra.mxu0 %v1245
        %v4761 = vpop.f32.mrf.mxu0
        %v4762 = vadd.f32 %v4533, %v4761
        %v4763 = vpop.f32.mrf.mxu0
        %v4764 = vadd.f32 %v4533, %v4763
        %4765 = vmatmul.bf16.gmra.mxu0 %v1247
        %v4766 = vpop.f32.mrf.mxu0
        %v4767 = vadd.f32 %v4533, %v4766
        %v4768 = vpop.f32.mrf.mxu0
        %4769 = vdwg.mxu0
        %4770 = vmatpush.bf16.msra.mxu0 %v4663
        %4771 = vmatpush.bf16.msra.mxu0 %v4661
        %4772 = vmatpush.bf16.msra.mxu0 %v4659
        %4773 = vmatpush.bf16.msra.mxu0 %v4657
        %4774 = vmatpush.bf16.msra.mxu0 %v4655
        %4775 = vmatpush.bf16.msra.mxu0 %v4653
        %4776 = vmatpush.bf16.msra.mxu0 %v4651
        %4777 = vmatpush.bf16.msra.mxu0 %v4649
        %4778 = vmatmul.bf16.gmra.mxu0 %v1224
        %v4779 = vpop.f32.mrf.mxu0
        %v4780 = vadd.f32 %v4707, %v4779
        %v4781 = vpop.f32.mrf.mxu0
        %v4782 = vadd.f32 %v4709, %v4781
        %4783 = vmatmul.bf16.gmra.mxu0 %v1226
        %v4784 = vpop.f32.mrf.mxu0
        %v4785 = vadd.f32 %v4712, %v4784
        %v4786 = vpop.f32.mrf.mxu0
        %v4787 = vadd.f32 %v4714, %v4786
        %4788 = vmatmul.bf16.gmra.mxu0 %v1228
        %v4789 = vpop.f32.mrf.mxu0
        %v4790 = vadd.f32 %v4717, %v4789
        %v4791 = vpop.f32.mrf.mxu0
        %v4792 = vadd.f32 %v4719, %v4791
        %4793 = vmatmul.bf16.gmra.mxu0 %v1230
        %v4794 = vpop.f32.mrf.mxu0
        %v4795 = vadd.f32 %v4722, %v4794
        %v4796 = vpop.f32.mrf.mxu0
        %v4797 = vadd.f32 %v4724, %v4796
        %4798 = vmatmul.bf16.gmra.mxu0 %v1232
        %v4799 = vpop.f32.mrf.mxu0
        %v4800 = vadd.f32 %v4727, %v4799
        %v4801 = vpop.f32.mrf.mxu0
        %v4802 = vadd.f32 %v4729, %v4801
        %4803 = vmatmul.bf16.gmra.mxu0 %v1234
        %v4804 = vpop.f32.mrf.mxu0
        %v4805 = vadd.f32 %v4732, %v4804
        %v4806 = vpop.f32.mrf.mxu0
        %v4807 = vadd.f32 %v4734, %v4806
        %4808 = vmatmul.bf16.gmra.mxu0 %v1236
        %v4809 = vpop.f32.mrf.mxu0
        %v4810 = vadd.f32 %v4737, %v4809
        %v4811 = vpop.f32.mrf.mxu0
        %v4812 = vadd.f32 %v4739, %v4811
        %4813 = vmatmul.bf16.gmra.mxu0 %v1238
        %v4814 = vpop.f32.mrf.mxu0
        %v4815 = vadd.f32 %v4742, %v4814
        %v4816 = vpop.f32.mrf.mxu0
        %v4817 = vadd.f32 %v4744, %v4816
        %4818 = vmatmul.bf16.gmra.mxu0 %v1240
        %v4819 = vpop.f32.mrf.mxu0
        %v4820 = vadd.f32 %v4747, %v4819
        %v4821 = vpop.f32.mrf.mxu0
        %v4822 = vadd.f32 %v4749, %v4821
        %4823 = vmatmul.bf16.gmra.mxu0 %v1242
        %v4824 = vpop.f32.mrf.mxu0
        %v4825 = vadd.f32 %v4752, %v4824
        %v4826 = vpop.f32.mrf.mxu0
        %v4827 = vadd.f32 %v4754, %v4826
        %4828 = vmatmul.bf16.gmra.mxu0 %v1244
        %v4829 = vpop.f32.mrf.mxu0
        %v4830 = vadd.f32 %v4757, %v4829
        %v4831 = vpop.f32.mrf.mxu0
        %v4832 = vadd.f32 %v4759, %v4831
        %4833 = vmatmul.bf16.gmra.mxu0 %v1246
        %v4834 = vpop.f32.mrf.mxu0
        %v4835 = vadd.f32 %v4762, %v4834
        %v4836 = vpop.f32.mrf.mxu0
        %v4837 = vadd.f32 %v4764, %v4836
        %4838 = vmatmul.bf16.gmra.mxu0 %v1248
        %v4839 = vpop.f32.mrf.mxu0
        %v4840 = vadd.f32 %v4767, %v4839
        %v4841 = vpop.f32.mrf.mxu0
        %4842 = vdwg.mxu0
        %4843 = vmatpush.bf16.msra.mxu0 %v4648
        %4844 = vmatpush.bf16.msra.mxu0 %v4646
        %4845 = vmatpush.bf16.msra.mxu0 %v4644
        %4846 = vmatpush.bf16.msra.mxu0 %v4642
        %4847 = vmatpush.bf16.msra.mxu0 %v4640
        %4848 = vmatpush.bf16.msra.mxu0 %v4638
        %4849 = vmatpush.bf16.msra.mxu0 %v4636
        %4850 = vmatpush.bf16.msra.mxu0 %v4634
        %4851 = vmatmul.bf16.gmra.mxu0 %v1223
        %v4852 = vpop.f32.mrf.mxu0
        %v4853 = vadd.f32 %v4534, %v4852
        %v4854 = vpop.f32.mrf.mxu0
        %v4855 = vadd.f32 %v4534, %v4854
        %4856 = vmatmul.bf16.gmra.mxu0 %v1225
        %v4857 = vpop.f32.mrf.mxu0
        %v4858 = vadd.f32 %v4534, %v4857
        %v4859 = vpop.f32.mrf.mxu0
        %v4860 = vadd.f32 %v4534, %v4859
        %4861 = vmatmul.bf16.gmra.mxu0 %v1227
        %v4862 = vpop.f32.mrf.mxu0
        %v4863 = vadd.f32 %v4534, %v4862
        %v4864 = vpop.f32.mrf.mxu0
        %v4865 = vadd.f32 %v4534, %v4864
        %4866 = vmatmul.bf16.gmra.mxu0 %v1229
        %v4867 = vpop.f32.mrf.mxu0
        %v4868 = vadd.f32 %v4534, %v4867
        %v4869 = vpop.f32.mrf.mxu0
        %v4870 = vadd.f32 %v4534, %v4869
        %4871 = vmatmul.bf16.gmra.mxu0 %v1231
        %v4872 = vpop.f32.mrf.mxu0
        %v4873 = vadd.f32 %v4534, %v4872
        %v4874 = vpop.f32.mrf.mxu0
        %v4875 = vadd.f32 %v4534, %v4874
        %4876 = vmatmul.bf16.gmra.mxu0 %v1233
        %v4877 = vpop.f32.mrf.mxu0
        %v4878 = vadd.f32 %v4534, %v4877
        %v4879 = vpop.f32.mrf.mxu0
        %v4880 = vadd.f32 %v4534, %v4879
        %4881 = vmatmul.bf16.gmra.mxu0 %v1235
        %v4882 = vpop.f32.mrf.mxu0
        %v4883 = vadd.f32 %v4534, %v4882
        %v4884 = vpop.f32.mrf.mxu0
        %v4885 = vadd.f32 %v4534, %v4884
        %4886 = vmatmul.bf16.gmra.mxu0 %v1237
        %v4887 = vpop.f32.mrf.mxu0
        %v4888 = vadd.f32 %v4534, %v4887
        %v4889 = vpop.f32.mrf.mxu0
        %v4890 = vadd.f32 %v4534, %v4889
        %4891 = vmatmul.bf16.gmra.mxu0 %v1239
        %v4892 = vpop.f32.mrf.mxu0
        %v4893 = vadd.f32 %v4534, %v4892
        %v4894 = vpop.f32.mrf.mxu0
        %v4895 = vadd.f32 %v4534, %v4894
        %4896 = vmatmul.bf16.gmra.mxu0 %v1241
        %v4897 = vpop.f32.mrf.mxu0
        %v4898 = vadd.f32 %v4534, %v4897
        %v4899 = vpop.f32.mrf.mxu0
        %v4900 = vadd.f32 %v4534, %v4899
        %4901 = vmatmul.bf16.gmra.mxu0 %v1243
        %v4902 = vpop.f32.mrf.mxu0
        %v4903 = vadd.f32 %v4534, %v4902
        %v4904 = vpop.f32.mrf.mxu0
        %v4905 = vadd.f32 %v4534, %v4904
        %4906 = vmatmul.bf16.gmra.mxu0 %v1245
        %v4907 = vpop.f32.mrf.mxu0
        %v4908 = vadd.f32 %v4534, %v4907
        %v4909 = vpop.f32.mrf.mxu0
        %v4910 = vadd.f32 %v4534, %v4909
        %4911 = vmatmul.bf16.gmra.mxu0 %v1247
        %v4912 = vpop.f32.mrf.mxu0
        %v4913 = vadd.f32 %v4534, %v4912
        %v4914 = vpop.f32.mrf.mxu0
        %4915 = vdwg.mxu0
        %4916 = vmatpush.bf16.msra.mxu0 %v4664
        %4917 = vmatpush.bf16.msra.mxu0 %v4662
        %4918 = vmatpush.bf16.msra.mxu0 %v4660
        %4919 = vmatpush.bf16.msra.mxu0 %v4658
        %4920 = vmatpush.bf16.msra.mxu0 %v4656
        %4921 = vmatpush.bf16.msra.mxu0 %v4654
        %4922 = vmatpush.bf16.msra.mxu0 %v4652
        %4923 = vmatpush.bf16.msra.mxu0 %v4650
        %4924 = vmatmul.bf16.gmra.mxu0 %v1224
        %v4925 = vpop.f32.mrf.mxu0
        %v4926 = vadd.f32 %v4853, %v4925
        %v4927 = vpop.f32.mrf.mxu0
        %v4928 = vadd.f32 %v4855, %v4927
        %4929 = vmatmul.bf16.gmra.mxu0 %v1226
        %v4930 = vpop.f32.mrf.mxu0
        %v4931 = vadd.f32 %v4858, %v4930
        %v4932 = vpop.f32.mrf.mxu0
        %v4933 = vadd.f32 %v4860, %v4932
        %4934 = vmatmul.bf16.gmra.mxu0 %v1228
        %v4935 = vpop.f32.mrf.mxu0
        %v4936 = vadd.f32 %v4863, %v4935
        %v4937 = vpop.f32.mrf.mxu0
        %v4938 = vadd.f32 %v4865, %v4937
        %4939 = vmatmul.bf16.gmra.mxu0 %v1230
        %v4940 = vpop.f32.mrf.mxu0
        %v4941 = vadd.f32 %v4868, %v4940
        %v4942 = vpop.f32.mrf.mxu0
        %v4943 = vadd.f32 %v4870, %v4942
        %4944 = vmatmul.bf16.gmra.mxu0 %v1232
        %v4945 = vpop.f32.mrf.mxu0
        %v4946 = vadd.f32 %v4873, %v4945
        %v4947 = vpop.f32.mrf.mxu0
        %v4948 = vadd.f32 %v4875, %v4947
        %4949 = vmatmul.bf16.gmra.mxu0 %v1234
        %v4950 = vpop.f32.mrf.mxu0
        %v4951 = vadd.f32 %v4878, %v4950
        %v4952 = vpop.f32.mrf.mxu0
        %v4953 = vadd.f32 %v4880, %v4952
        %4954 = vmatmul.bf16.gmra.mxu0 %v1236
        %v4955 = vpop.f32.mrf.mxu0
        %v4956 = vadd.f32 %v4883, %v4955
        %v4957 = vpop.f32.mrf.mxu0
        %v4958 = vadd.f32 %v4885, %v4957
        %4959 = vmatmul.bf16.gmra.mxu0 %v1238
        %v4960 = vpop.f32.mrf.mxu0
        %v4961 = vadd.f32 %v4888, %v4960
        %v4962 = vpop.f32.mrf.mxu0
        %v4963 = vadd.f32 %v4890, %v4962
        %4964 = vmatmul.bf16.gmra.mxu0 %v1240
        %v4965 = vpop.f32.mrf.mxu0
        %v4966 = vadd.f32 %v4893, %v4965
        %v4967 = vpop.f32.mrf.mxu0
        %v4968 = vadd.f32 %v4895, %v4967
        %4969 = vmatmul.bf16.gmra.mxu0 %v1242
        %v4970 = vpop.f32.mrf.mxu0
        %v4971 = vadd.f32 %v4898, %v4970
        %v4972 = vpop.f32.mrf.mxu0
        %v4973 = vadd.f32 %v4900, %v4972
        %4974 = vmatmul.bf16.gmra.mxu0 %v1244
        %v4975 = vpop.f32.mrf.mxu0
        %v4976 = vadd.f32 %v4903, %v4975
        %v4977 = vpop.f32.mrf.mxu0
        %v4978 = vadd.f32 %v4905, %v4977
        %4979 = vmatmul.bf16.gmra.mxu0 %v1246
        %v4980 = vpop.f32.mrf.mxu0
        %v4981 = vadd.f32 %v4908, %v4980
        %v4982 = vpop.f32.mrf.mxu0
        %v4983 = vadd.f32 %v4910, %v4982
        %4984 = vmatmul.bf16.gmra.mxu0 %v1248
        %v4985 = vpop.f32.mrf.mxu0
        %v4986 = vadd.f32 %v4913, %v4985
        %v4987 = vpop.f32.mrf.mxu0
        %4988 = vdwg.mxu0
        %v4989 = vmul.f32 %v4780, 0.5
        %v4990 = vmul.f32 %v4926, 0.5
        %v4991 = vmul.f32 %v4782, 0.5
        %v4992 = vmul.f32 %v4928, 0.5
        %v4993 = vmul.f32 %v4785, 0.5
        %v4994 = vmul.f32 %v4931, 0.5
        %v4995 = vmul.f32 %v4787, 0.5
        %v4996 = vmul.f32 %v4933, 0.5
        %v4997 = vmul.f32 %v4790, 0.5
        %v4998 = vmul.f32 %v4936, 0.5
        %v4999 = vmul.f32 %v4792, 0.5
        %v5000 = vmul.f32 %v4938, 0.5
        %v5001 = vmul.f32 %v4795, 0.5
        %v5002 = vmul.f32 %v4941, 0.5
        %v5003 = vmul.f32 %v4797, 0.5
        %v5004 = vmul.f32 %v4943, 0.5
        %v5005 = vmul.f32 %v4800, 0.5
        %v5006 = vmul.f32 %v4946, 0.5
        %v5007 = vmul.f32 %v4802, 0.5
        %v5008 = vmul.f32 %v4948, 0.5
        %v5009 = vmul.f32 %v4805, 0.5
        %v5010 = vmul.f32 %v4951, 0.5
        %v5011 = vmul.f32 %v4807, 0.5
        %v5012 = vmul.f32 %v4953, 0.5
        %v5013 = vmul.f32 %v4810, 0.5
        %v5014 = vmul.f32 %v4956, 0.5
        %v5015 = vmul.f32 %v4812, 0.5
        %v5016 = vmul.f32 %v4958, 0.5
        %v5017 = vmul.f32 %v4815, 0.5
        %v5018 = vmul.f32 %v4961, 0.5
        %v5019 = vmul.f32 %v4817, 0.5
        %v5020 = vmul.f32 %v4963, 0.5
        %v5021 = vmul.f32 %v4820, 0.5
        %v5022 = vmul.f32 %v4966, 0.5
        %v5023 = vmul.f32 %v4822, 0.5
        %v5024 = vmul.f32 %v4968, 0.5
        %v5025 = vmul.f32 %v4825, 0.5
        %v5026 = vmul.f32 %v4971, 0.5
        %v5027 = vmul.f32 %v4827, 0.5
        %v5028 = vmul.f32 %v4973, 0.5
        %v5029 = vmul.f32 %v4830, 0.5
        %v5030 = vmul.f32 %v4976, 0.5
        %v5031 = vmul.f32 %v4832, 0.5
        %v5032 = vmul.f32 %v4978, 0.5
        %v5033 = vmul.f32 %v4835, 0.5
        %v5034 = vmul.f32 %v4981, 0.5
        %v5035 = vmul.f32 %v4837, 0.5
        %v5036 = vmul.f32 %v4983, 0.5
        %v5037 = vmul.f32 %v4840, 0.5
        %v5038 = vmul.f32 %v4986, 0.5
        %v5039 = vmul.f32 %v4780, 0.044715
        %v5040 = vmul.f32 %v4926, 0.044715
        %v5041 = vmul.f32 %v4782, 0.044715
        %v5042 = vmul.f32 %v4928, 0.044715
        %v5043 = vmul.f32 %v4785, 0.044715
        %v5044 = vmul.f32 %v4931, 0.044715
        %v5045 = vmul.f32 %v4787, 0.044715
        %v5046 = vmul.f32 %v4933, 0.044715
        %v5047 = vmul.f32 %v4790, 0.044715
        %v5048 = vmul.f32 %v4936, 0.044715
        %v5049 = vmul.f32 %v4792, 0.044715
        %v5050 = vmul.f32 %v4938, 0.044715
        %v5051 = vmul.f32 %v4795, 0.044715
        %v5052 = vmul.f32 %v4941, 0.044715
        %v5053 = vmul.f32 %v4797, 0.044715
        %v5054 = vmul.f32 %v4943, 0.044715
        %v5055 = vmul.f32 %v4800, 0.044715
        %v5056 = vmul.f32 %v4946, 0.044715
        %v5057 = vmul.f32 %v4802, 0.044715
        %v5058 = vmul.f32 %v4948, 0.044715
        %v5059 = vmul.f32 %v4805, 0.044715
        %v5060 = vmul.f32 %v4951, 0.044715
        %v5061 = vmul.f32 %v4807, 0.044715
        %v5062 = vmul.f32 %v4953, 0.044715
        %v5063 = vmul.f32 %v4810, 0.044715
        %v5064 = vmul.f32 %v4956, 0.044715
        %v5065 = vmul.f32 %v4812, 0.044715
        %v5066 = vmul.f32 %v4958, 0.044715
        %v5067 = vmul.f32 %v4815, 0.044715
        %v5068 = vmul.f32 %v4961, 0.044715
        %v5069 = vmul.f32 %v4817, 0.044715
        %v5070 = vmul.f32 %v4963, 0.044715
        %v5071 = vmul.f32 %v4820, 0.044715
        %v5072 = vmul.f32 %v4966, 0.044715
        %v5073 = vmul.f32 %v4822, 0.044715
        %v5074 = vmul.f32 %v4968, 0.044715
        %v5075 = vmul.f32 %v4825, 0.044715
        %v5076 = vmul.f32 %v4971, 0.044715
        %v5077 = vmul.f32 %v4827, 0.044715
        %v5078 = vmul.f32 %v4973, 0.044715
        %v5079 = vmul.f32 %v4830, 0.044715
        %v5080 = vmul.f32 %v4976, 0.044715
        %v5081 = vmul.f32 %v4832, 0.044715
        %v5082 = vmul.f32 %v4978, 0.044715
        %v5083 = vmul.f32 %v4835, 0.044715
        %v5084 = vmul.f32 %v4981, 0.044715
        %v5085 = vmul.f32 %v4837, 0.044715
        %v5086 = vmul.f32 %v4983, 0.044715
        %v5087 = vmul.f32 %v4840, 0.044715
        %v5088 = vmul.f32 %v4986, 0.044715
        %v5089 = vmul.f32 %v5039, %v4780
        %v5090 = vmul.f32 %v5040, %v4926
        %v5091 = vmul.f32 %v5041, %v4782
        %v5092 = vmul.f32 %v5042, %v4928
        %v5093 = vmul.f32 %v5043, %v4785
        %v5094 = vmul.f32 %v5044, %v4931
        %v5095 = vmul.f32 %v5045, %v4787
        %v5096 = vmul.f32 %v5046, %v4933
        %v5097 = vmul.f32 %v5047, %v4790
        %v5098 = vmul.f32 %v5048, %v4936
        %v5099 = vmul.f32 %v5049, %v4792
        %v5100 = vmul.f32 %v5050, %v4938
        %v5101 = vmul.f32 %v5051, %v4795
        %v5102 = vmul.f32 %v5052, %v4941
        %v5103 = vmul.f32 %v5053, %v4797
        %v5104 = vmul.f32 %v5054, %v4943
        %v5105 = vmul.f32 %v5055, %v4800
        %v5106 = vmul.f32 %v5056, %v4946
        %v5107 = vmul.f32 %v5057, %v4802
        %v5108 = vmul.f32 %v5058, %v4948
        %v5109 = vmul.f32 %v5059, %v4805
        %v5110 = vmul.f32 %v5060, %v4951
        %v5111 = vmul.f32 %v5061, %v4807
        %v5112 = vmul.f32 %v5062, %v4953
        %v5113 = vmul.f32 %v5063, %v4810
        %v5114 = vmul.f32 %v5064, %v4956
        %v5115 = vmul.f32 %v5065, %v4812
        %v5116 = vmul.f32 %v5066, %v4958
        %v5117 = vmul.f32 %v5067, %v4815
        %v5118 = vmul.f32 %v5068, %v4961
        %v5119 = vmul.f32 %v5069, %v4817
        %v5120 = vmul.f32 %v5070, %v4963
        %v5121 = vmul.f32 %v5071, %v4820
        %v5122 = vmul.f32 %v5072, %v4966
        %v5123 = vmul.f32 %v5073, %v4822
        %v5124 = vmul.f32 %v5074, %v4968
        %v5125 = vmul.f32 %v5075, %v4825
        %v5126 = vmul.f32 %v5076, %v4971
        %v5127 = vmul.f32 %v5077, %v4827
        %v5128 = vmul.f32 %v5078, %v4973
        %v5129 = vmul.f32 %v5079, %v4830
        %v5130 = vmul.f32 %v5080, %v4976
        %v5131 = vmul.f32 %v5081, %v4832
        %v5132 = vmul.f32 %v5082, %v4978
        %v5133 = vmul.f32 %v5083, %v4835
        %v5134 = vmul.f32 %v5084, %v4981
        %v5135 = vmul.f32 %v5085, %v4837
        %v5136 = vmul.f32 %v5086, %v4983
        %v5137 = vmul.f32 %v5087, %v4840
        %v5138 = vmul.f32 %v5088, %v4986
        %v5139 = vmul.f32 %v5089, %v4780
        %v5140 = vmul.f32 %v5090, %v4926
        %v5141 = vmul.f32 %v5091, %v4782
        %v5142 = vmul.f32 %v5092, %v4928
        %v5143 = vmul.f32 %v5093, %v4785
        %v5144 = vmul.f32 %v5094, %v4931
        %v5145 = vmul.f32 %v5095, %v4787
        %v5146 = vmul.f32 %v5096, %v4933
        %v5147 = vmul.f32 %v5097, %v4790
        %v5148 = vmul.f32 %v5098, %v4936
        %v5149 = vmul.f32 %v5099, %v4792
        %v5150 = vmul.f32 %v5100, %v4938
        %v5151 = vmul.f32 %v5101, %v4795
        %v5152 = vmul.f32 %v5102, %v4941
        %v5153 = vmul.f32 %v5103, %v4797
        %v5154 = vmul.f32 %v5104, %v4943
        %v5155 = vmul.f32 %v5105, %v4800
        %v5156 = vmul.f32 %v5106, %v4946
        %v5157 = vmul.f32 %v5107, %v4802
        %v5158 = vmul.f32 %v5108, %v4948
        %v5159 = vmul.f32 %v5109, %v4805
        %v5160 = vmul.f32 %v5110, %v4951
        %v5161 = vmul.f32 %v5111, %v4807
        %v5162 = vmul.f32 %v5112, %v4953
        %v5163 = vmul.f32 %v5113, %v4810
        %v5164 = vmul.f32 %v5114, %v4956
        %v5165 = vmul.f32 %v5115, %v4812
        %v5166 = vmul.f32 %v5116, %v4958
        %v5167 = vmul.f32 %v5117, %v4815
        %v5168 = vmul.f32 %v5118, %v4961
        %v5169 = vmul.f32 %v5119, %v4817
        %v5170 = vmul.f32 %v5120, %v4963
        %v5171 = vmul.f32 %v5121, %v4820
        %v5172 = vmul.f32 %v5122, %v4966
        %v5173 = vmul.f32 %v5123, %v4822
        %v5174 = vmul.f32 %v5124, %v4968
        %v5175 = vmul.f32 %v5125, %v4825
        %v5176 = vmul.f32 %v5126, %v4971
        %v5177 = vmul.f32 %v5127, %v4827
        %v5178 = vmul.f32 %v5128, %v4973
        %v5179 = vmul.f32 %v5129, %v4830
        %v5180 = vmul.f32 %v5130, %v4976
        %v5181 = vmul.f32 %v5131, %v4832
        %v5182 = vmul.f32 %v5132, %v4978
        %v5183 = vmul.f32 %v5133, %v4835
        %v5184 = vmul.f32 %v5134, %v4981
        %v5185 = vmul.f32 %v5135, %v4837
        %v5186 = vmul.f32 %v5136, %v4983
        %v5187 = vmul.f32 %v5137, %v4840
        %v5188 = vmul.f32 %v5138, %v4986
        %v5189 = vadd.f32 %v4780, %v5139
        %v5190 = vadd.f32 %v4926, %v5140
        %v5191 = vadd.f32 %v4782, %v5141
        %v5192 = vadd.f32 %v4928, %v5142
        %v5193 = vadd.f32 %v4785, %v5143
        %v5194 = vadd.f32 %v4931, %v5144
        %v5195 = vadd.f32 %v4787, %v5145
        %v5196 = vadd.f32 %v4933, %v5146
        %v5197 = vadd.f32 %v4790, %v5147
        %v5198 = vadd.f32 %v4936, %v5148
        %v5199 = vadd.f32 %v4792, %v5149
        %v5200 = vadd.f32 %v4938, %v5150
        %v5201 = vadd.f32 %v4795, %v5151
        %v5202 = vadd.f32 %v4941, %v5152
        %v5203 = vadd.f32 %v4797, %v5153
        %v5204 = vadd.f32 %v4943, %v5154
        %v5205 = vadd.f32 %v4800, %v5155
        %v5206 = vadd.f32 %v4946, %v5156
        %v5207 = vadd.f32 %v4802, %v5157
        %v5208 = vadd.f32 %v4948, %v5158
        %v5209 = vadd.f32 %v4805, %v5159
        %v5210 = vadd.f32 %v4951, %v5160
        %v5211 = vadd.f32 %v4807, %v5161
        %v5212 = vadd.f32 %v4953, %v5162
        %v5213 = vadd.f32 %v4810, %v5163
        %v5214 = vadd.f32 %v4956, %v5164
        %v5215 = vadd.f32 %v4812, %v5165
        %v5216 = vadd.f32 %v4958, %v5166
        %v5217 = vadd.f32 %v4815, %v5167
        %v5218 = vadd.f32 %v4961, %v5168
        %v5219 = vadd.f32 %v4817, %v5169
        %v5220 = vadd.f32 %v4963, %v5170
        %v5221 = vadd.f32 %v4820, %v5171
        %v5222 = vadd.f32 %v4966, %v5172
        %v5223 = vadd.f32 %v4822, %v5173
        %v5224 = vadd.f32 %v4968, %v5174
        %v5225 = vadd.f32 %v4825, %v5175
        %v5226 = vadd.f32 %v4971, %v5176
        %v5227 = vadd.f32 %v4827, %v5177
        %v5228 = vadd.f32 %v4973, %v5178
        %v5229 = vadd.f32 %v4830, %v5179
        %v5230 = vadd.f32 %v4976, %v5180
        %v5231 = vadd.f32 %v4832, %v5181
        %v5232 = vadd.f32 %v4978, %v5182
        %v5233 = vadd.f32 %v4835, %v5183
        %v5234 = vadd.f32 %v4981, %v5184
        %v5235 = vadd.f32 %v4837, %v5185
        %v5236 = vadd.f32 %v4983, %v5186
        %v5237 = vadd.f32 %v4840, %v5187
        %v5238 = vadd.f32 %v4986, %v5188
        %v5239 = vmul.f32 %v5189, 0.7978846
        %v5240 = vmul.f32 %v5190, 0.7978846
        %v5241 = vmul.f32 %v5191, 0.7978846
        %v5242 = vmul.f32 %v5192, 0.7978846
        %v5243 = vmul.f32 %v5193, 0.7978846
        %v5244 = vmul.f32 %v5194, 0.7978846
        %v5245 = vmul.f32 %v5195, 0.7978846
        %v5246 = vmul.f32 %v5196, 0.7978846
        %v5247 = vmul.f32 %v5197, 0.7978846
        %v5248 = vmul.f32 %v5198, 0.7978846
        %v5249 = vmul.f32 %v5199, 0.7978846
        %v5250 = vmul.f32 %v5200, 0.7978846
        %v5251 = vmul.f32 %v5201, 0.7978846
        %v5252 = vmul.f32 %v5202, 0.7978846
        %v5253 = vmul.f32 %v5203, 0.7978846
        %v5254 = vmul.f32 %v5204, 0.7978846
        %v5255 = vmul.f32 %v5205, 0.7978846
        %v5256 = vmul.f32 %v5206, 0.7978846
        %v5257 = vmul.f32 %v5207, 0.7978846
        %v5258 = vmul.f32 %v5208, 0.7978846
        %v5259 = vmul.f32 %v5209, 0.7978846
        %v5260 = vmul.f32 %v5210, 0.7978846
        %v5261 = vmul.f32 %v5211, 0.7978846
        %v5262 = vmul.f32 %v5212, 0.7978846
        %v5263 = vmul.f32 %v5213, 0.7978846
        %v5264 = vmul.f32 %v5214, 0.7978846
        %v5265 = vmul.f32 %v5215, 0.7978846
        %v5266 = vmul.f32 %v5216, 0.7978846
        %v5267 = vmul.f32 %v5217, 0.7978846
        %v5268 = vmul.f32 %v5218, 0.7978846
        %v5269 = vmul.f32 %v5219, 0.7978846
        %v5270 = vmul.f32 %v5220, 0.7978846
        %v5271 = vmul.f32 %v5221, 0.7978846
        %v5272 = vmul.f32 %v5222, 0.7978846
        %v5273 = vmul.f32 %v5223, 0.7978846
        %v5274 = vmul.f32 %v5224, 0.7978846
        %v5275 = vmul.f32 %v5225, 0.7978846
        %v5276 = vmul.f32 %v5226, 0.7978846
        %v5277 = vmul.f32 %v5227, 0.7978846
        %v5278 = vmul.f32 %v5228, 0.7978846
        %v5279 = vmul.f32 %v5229, 0.7978846
        %v5280 = vmul.f32 %v5230, 0.7978846
        %v5281 = vmul.f32 %v5231, 0.7978846
        %v5282 = vmul.f32 %v5232, 0.7978846
        %v5283 = vmul.f32 %v5233, 0.7978846
        %v5284 = vmul.f32 %v5234, 0.7978846
        %v5285 = vmul.f32 %v5235, 0.7978846
        %v5286 = vmul.f32 %v5236, 0.7978846
        %v5287 = vmul.f32 %v5237, 0.7978846
        %v5288 = vmul.f32 %v5238, 0.7978846
        %v5289 = vtanh.pop %v5239
        %v5290 = vtanh.pop %v5240
        %v5291 = vtanh.pop %v5241
        %v5292 = vtanh.pop %v5242
        %v5293 = vtanh.pop %v5243
        %v5294 = vtanh.pop %v5244
        %v5295 = vtanh.pop %v5245
        %v5296 = vtanh.pop %v5246
        %v5297 = vtanh.pop %v5247
        %v5298 = vtanh.pop %v5248
        %v5299 = vtanh.pop %v5249
        %v5300 = vtanh.pop %v5250
        %v5301 = vtanh.pop %v5251
        %v5302 = vtanh.pop %v5252
        %v5303 = vtanh.pop %v5253
        %v5304 = vtanh.pop %v5254
        %v5305 = vtanh.pop %v5255
        %v5306 = vtanh.pop %v5256
        %v5307 = vtanh.pop %v5257
        %v5308 = vtanh.pop %v5258
        %v5309 = vtanh.pop %v5259
        %v5310 = vtanh.pop %v5260
        %v5311 = vtanh.pop %v5261
        %v5312 = vtanh.pop %v5262
        %v5313 = vtanh.pop %v5263
        %v5314 = vtanh.pop %v5264
        %v5315 = vtanh.pop %v5265
        %v5316 = vtanh.pop %v5266
        %v5317 = vtanh.pop %v5267
        %v5318 = vtanh.pop %v5268
        %v5319 = vtanh.pop %v5269
        %v5320 = vtanh.pop %v5270
        %v5321 = vtanh.pop %v5271
        %v5322 = vtanh.pop %v5272
        %v5323 = vtanh.pop %v5273
        %v5324 = vtanh.pop %v5274
        %v5325 = vtanh.pop %v5275
        %v5326 = vtanh.pop %v5276
        %v5327 = vtanh.pop %v5277
        %v5328 = vtanh.pop %v5278
        %v5329 = vtanh.pop %v5279
        %v5330 = vtanh.pop %v5280
        %v5331 = vtanh.pop %v5281
        %v5332 = vtanh.pop %v5282
        %v5333 = vtanh.pop %v5283
        %v5334 = vtanh.pop %v5284
        %v5335 = vtanh.pop %v5285
        %v5336 = vtanh.pop %v5286
        %v5337 = vtanh.pop %v5287
        %v5338 = vtanh.pop %v5288
        %v5339 = vadd.f32 %v5289, 1.0
        %v5340 = vadd.f32 %v5290, 1.0
        %v5341 = vadd.f32 %v5291, 1.0
        %v5342 = vadd.f32 %v5292, 1.0
        %v5343 = vadd.f32 %v5293, 1.0
        %v5344 = vadd.f32 %v5294, 1.0
        %v5345 = vadd.f32 %v5295, 1.0
        %v5346 = vadd.f32 %v5296, 1.0
        %v5347 = vadd.f32 %v5297, 1.0
        %v5348 = vadd.f32 %v5298, 1.0
        %v5349 = vadd.f32 %v5299, 1.0
        %v5350 = vadd.f32 %v5300, 1.0
        %v5351 = vadd.f32 %v5301, 1.0
        %v5352 = vadd.f32 %v5302, 1.0
        %v5353 = vadd.f32 %v5303, 1.0
        %v5354 = vadd.f32 %v5304, 1.0
        %v5355 = vadd.f32 %v5305, 1.0
        %v5356 = vadd.f32 %v5306, 1.0
        %v5357 = vadd.f32 %v5307, 1.0
        %v5358 = vadd.f32 %v5308, 1.0
        %v5359 = vadd.f32 %v5309, 1.0
        %v5360 = vadd.f32 %v5310, 1.0
        %v5361 = vadd.f32 %v5311, 1.0
        %v5362 = vadd.f32 %v5312, 1.0
        %v5363 = vadd.f32 %v5313, 1.0
        %v5364 = vadd.f32 %v5314, 1.0
        %v5365 = vadd.f32 %v5315, 1.0
        %v5366 = vadd.f32 %v5316, 1.0
        %v5367 = vadd.f32 %v5317, 1.0
        %v5368 = vadd.f32 %v5318, 1.0
        %v5369 = vadd.f32 %v5319, 1.0
        %v5370 = vadd.f32 %v5320, 1.0
        %v5371 = vadd.f32 %v5321, 1.0
        %v5372 = vadd.f32 %v5322, 1.0
        %v5373 = vadd.f32 %v5323, 1.0
        %v5374 = vadd.f32 %v5324, 1.0
        %v5375 = vadd.f32 %v5325, 1.0
        %v5376 = vadd.f32 %v5326, 1.0
        %v5377 = vadd.f32 %v5327, 1.0
        %v5378 = vadd.f32 %v5328, 1.0
        %v5379 = vadd.f32 %v5329, 1.0
        %v5380 = vadd.f32 %v5330, 1.0
        %v5381 = vadd.f32 %v5331, 1.0
        %v5382 = vadd.f32 %v5332, 1.0
        %v5383 = vadd.f32 %v5333, 1.0
        %v5384 = vadd.f32 %v5334, 1.0
        %v5385 = vadd.f32 %v5335, 1.0
        %v5386 = vadd.f32 %v5336, 1.0
        %v5387 = vadd.f32 %v5337, 1.0
        %v5388 = vadd.f32 %v5338, 1.0
        %v5389 = vmul.f32 %v4989, %v5339
        %v5390 = vmul.f32 %v4990, %v5340
        %v5391 = vmul.f32 %v4991, %v5341
        %v5392 = vmul.f32 %v4992, %v5342
        %v5393 = vmul.f32 %v4993, %v5343
        %v5394 = vmul.f32 %v4994, %v5344
        %v5395 = vmul.f32 %v4995, %v5345
        %v5396 = vmul.f32 %v4996, %v5346
        %v5397 = vmul.f32 %v4997, %v5347
        %v5398 = vmul.f32 %v4998, %v5348
        %v5399 = vmul.f32 %v4999, %v5349
        %v5400 = vmul.f32 %v5000, %v5350
        %v5401 = vmul.f32 %v5001, %v5351
        %v5402 = vmul.f32 %v5002, %v5352
        %v5403 = vmul.f32 %v5003, %v5353
        %v5404 = vmul.f32 %v5004, %v5354
        %v5405 = vmul.f32 %v5005, %v5355
        %v5406 = vmul.f32 %v5006, %v5356
        %v5407 = vmul.f32 %v5007, %v5357
        %v5408 = vmul.f32 %v5008, %v5358
        %v5409 = vmul.f32 %v5009, %v5359
        %v5410 = vmul.f32 %v5010, %v5360
        %v5411 = vmul.f32 %v5011, %v5361
        %v5412 = vmul.f32 %v5012, %v5362
        %v5413 = vmul.f32 %v5013, %v5363
        %v5414 = vmul.f32 %v5014, %v5364
        %v5415 = vmul.f32 %v5015, %v5365
        %v5416 = vmul.f32 %v5016, %v5366
        %v5417 = vmul.f32 %v5017, %v5367
        %v5418 = vmul.f32 %v5018, %v5368
        %v5419 = vmul.f32 %v5019, %v5369
        %v5420 = vmul.f32 %v5020, %v5370
        %v5421 = vmul.f32 %v5021, %v5371
        %v5422 = vmul.f32 %v5022, %v5372
        %v5423 = vmul.f32 %v5023, %v5373
        %v5424 = vmul.f32 %v5024, %v5374
        %v5425 = vmul.f32 %v5025, %v5375
        %v5426 = vmul.f32 %v5026, %v5376
        %v5427 = vmul.f32 %v5027, %v5377
        %v5428 = vmul.f32 %v5028, %v5378
        %v5429 = vmul.f32 %v5029, %v5379
        %v5430 = vmul.f32 %v5030, %v5380
        %v5431 = vmul.f32 %v5031, %v5381
        %v5432 = vmul.f32 %v5032, %v5382
        %v5433 = vmul.f32 %v5033, %v5383
        %v5434 = vmul.f32 %v5034, %v5384
        %v5435 = vmul.f32 %v5035, %v5385
        %v5436 = vmul.f32 %v5036, %v5386
        %v5437 = vmul.f32 %v5037, %v5387
        %v5438 = vmul.f32 %v5038, %v5388
        %v5439 = vld [vmem:[#allocation2] sm:$0xff]
        %v5440 = vld [vmem:[#allocation2 + $0x8] sm:$0xff]
        %v5441 = vld [vmem:[#allocation2 + $0x10] sm:$0xff]
        %v5442 = vld [vmem:[#allocation2 + $0x18] sm:$0xff]
        %v5443 = vld [vmem:[#allocation2 + $0x20] sm:$0xff]
        %v5444 = vld [vmem:[#allocation2 + $0x28] sm:$0xff]
        %v5445 = vld [vmem:[#allocation2 + $0x30] sm:$0xff]
        %v5446 = vld [vmem:[#allocation2 + $0x38] sm:$0xff]
        %v5447 = vld [vmem:[#allocation2 + $0x40] sm:$0xff]
        %v5448 = vld [vmem:[#allocation2 + $0x48] sm:$0xff]
        %v5449 = vld [vmem:[#allocation2 + $0x50] sm:$0xff]
        %v5450 = vld [vmem:[#allocation2 + $0x58] sm:$0xff]
        %v5451 = vld [vmem:[#allocation2 + $0x60] sm:$0xff]
        %v5452 = vld [vmem:[#allocation2 + $0x68] sm:$0xff]
        %v5453 = vld [vmem:[#allocation2 + $0x70] sm:$0xff]
        %v5454 = vld [vmem:[#allocation2 + $0x78] sm:$0xff]
        %v5455 = vld [vmem:[#allocation2 + $0x80] sm:$0xff]
        %v5456 = vld [vmem:[#allocation2 + $0x88] sm:$0xff]
        %v5457 = vld [vmem:[#allocation2 + $0x90] sm:$0xff]
        %v5458 = vld [vmem:[#allocation2 + $0x98] sm:$0xff]
        %v5459 = vld [vmem:[#allocation2 + $0xa0] sm:$0xff]
        %v5460 = vld [vmem:[#allocation2 + $0xa8] sm:$0xff]
        %v5461 = vld [vmem:[#allocation2 + $0xb0] sm:$0xff]
        %v5462 = vld [vmem:[#allocation2 + $0xb8] sm:$0xff]
        %v5463 = vld [vmem:[#allocation2 + $0xc0] sm:$0xff]
        %v5464 = vld [vmem:[#allocation2 + $0xc8] sm:$0xff]
        %v5465 = vld [vmem:[#allocation2 + $0xd0] sm:$0xff]
        %v5466 = vld [vmem:[#allocation2 + $0xd8] sm:$0xff]
        %v5467 = vld [vmem:[#allocation2 + $0xe0] sm:$0xff]
        %v5468 = vld [vmem:[#allocation2 + $0xe8] sm:$0xff]
        %v5469 = vld [vmem:[#allocation2 + $0xf0] sm:$0xff]
        %v5470 = vld [vmem:[#allocation2 + $0xf8] sm:$0xff]
        %v5471 = vld [vmem:[#allocation2 + $0x100] sm:$0xff]
        %v5472 = vld [vmem:[#allocation2 + $0x108] sm:$0xff]
        %v5473 = vld [vmem:[#allocation2 + $0x110] sm:$0xff]
        %v5474 = vld [vmem:[#allocation2 + $0x118] sm:$0xff]
        %v5475 = vld [vmem:[#allocation2 + $0x120] sm:$0xff]
        %v5476 = vld [vmem:[#allocation2 + $0x128] sm:$0xff]
        %v5477 = vld [vmem:[#allocation2 + $0x130] sm:$0xff]
        %v5478 = vld [vmem:[#allocation2 + $0x138] sm:$0xff]
        %v5479 = vld [vmem:[#allocation2 + $0x140] sm:$0xff]
        %v5480 = vld [vmem:[#allocation2 + $0x148] sm:$0xff]
        %v5481 = vld [vmem:[#allocation2 + $0x150] sm:$0xff]
        %v5482 = vld [vmem:[#allocation2 + $0x158] sm:$0xff]
        %v5483 = vld [vmem:[#allocation2 + $0x160] sm:$0xff]
        %v5484 = vld [vmem:[#allocation2 + $0x168] sm:$0xff]
        %v5485 = vld [vmem:[#allocation2 + $0x170] sm:$0xff]
        %v5486 = vld [vmem:[#allocation2 + $0x178] sm:$0xff]
        %v5487 = vld [vmem:[#allocation2 + $0x180] sm:$0xff]
        %v5488 = vld [vmem:[#allocation2 + $0x188] sm:$0xff]
        %v5489 = vpack.c.bf16 %v5391, %v5389
        %v5490 = vpack.c.bf16 %v5392, %v5390
        %v5491 = vpack.c.bf16 %v5395, %v5393
        %v5492 = vpack.c.bf16 %v5396, %v5394
        %v5493 = vpack.c.bf16 %v5399, %v5397
        %v5494 = vpack.c.bf16 %v5400, %v5398
        %v5495 = vpack.c.bf16 %v5403, %v5401
        %v5496 = vpack.c.bf16 %v5404, %v5402
        %v5497 = vpack.c.bf16 %v5407, %v5405
        %v5498 = vpack.c.bf16 %v5408, %v5406
        %v5499 = vpack.c.bf16 %v5411, %v5409
        %v5500 = vpack.c.bf16 %v5412, %v5410
        %v5501 = vpack.c.bf16 %v5415, %v5413
        %v5502 = vpack.c.bf16 %v5416, %v5414
        %v5503 = vpack.c.bf16 %v5419, %v5417
        %v5504 = vpack.c.bf16 %v5420, %v5418
        %v5505 = vpack.c.bf16 %v5423, %v5421
        %v5506 = vpack.c.bf16 %v5424, %v5422
        %v5507 = vpack.c.bf16 %v5427, %v5425
        %v5508 = vpack.c.bf16 %v5428, %v5426
        %v5509 = vpack.c.bf16 %v5431, %v5429
        %v5510 = vpack.c.bf16 %v5432, %v5430
        %v5511 = vpack.c.bf16 %v5435, %v5433
        %v5512 = vpack.c.bf16 %v5436, %v5434
        %v5513 = vpack.c.bf16 %v5437, %v5437
        %v5514 = vpack.c.bf16 %v5438, %v5438
        %v5515 = vld [vmem:[#allocation12 + $0x200] sm:$0xff]
        %v5516 = vld [vmem:[#allocation12 + $0x208] sm:$0xff]
        %v5517 = vld [vmem:[#allocation12 + $0x210] sm:$0xff]
        %v5518 = vld [vmem:[#allocation12 + $0x218] sm:$0xff]
        %v5519 = vld [vmem:[#allocation12 + $0x220] sm:$0xff]
        %v5520 = vld [vmem:[#allocation12 + $0x228] sm:$0xff]
        %v5521 = vld [vmem:[#allocation12 + $0x230] sm:$0xff]
        %v5522 = vld [vmem:[#allocation12 + $0x238] sm:$0xff]
        %v5523 = vld [vmem:[#allocation12 + $0x240] sm:$0xff]
        %v5524 = vld [vmem:[#allocation12 + $0x248] sm:$0xff]
        %v5525 = vld [vmem:[#allocation12 + $0x250] sm:$0xff]
        %v5526 = vld [vmem:[#allocation12 + $0x258] sm:$0xff]
        %v5527 = vld [vmem:[#allocation12 + $0x260] sm:$0xff]
        %v5528 = vld [vmem:[#allocation12 + $0x268] sm:$0xff]
        %v5529 = vld [vmem:[#allocation12 + $0x270] sm:$0xff]
        %v5530 = vld [vmem:[#allocation12 + $0x278] sm:$0xff]
        %v5531 = vld [vmem:[#allocation12 + $0x280] sm:$0xff]
        %v5532 = vld [vmem:[#allocation12 + $0x288] sm:$0xff]
        %v5533 = vld [vmem:[#allocation12 + $0x290] sm:$0xff]
        %v5534 = vld [vmem:[#allocation12 + $0x298] sm:$0xff]
        %v5535 = vld [vmem:[#allocation12 + $0x2a0] sm:$0xff]
        %v5536 = vld [vmem:[#allocation12 + $0x2a8] sm:$0xff]
        %v5537 = vld [vmem:[#allocation12 + $0x2b0] sm:$0xff]
        %v5538 = vld [vmem:[#allocation12 + $0x2b8] sm:$0xff]
        %v5539 = vld [vmem:[#allocation12 + $0x2c0] sm:$0xff]
        %v5540 = vld [vmem:[#allocation12 + $0x2c8] sm:$0xff]
        %v5541 = vld [vmem:[#allocation12 + $0x2d0] sm:$0xff]
        %v5542 = vld [vmem:[#allocation12 + $0x2d8] sm:$0xff]
        %v5543 = vld [vmem:[#allocation12 + $0x2e0] sm:$0xff]
        %v5544 = vld [vmem:[#allocation12 + $0x2e8] sm:$0xff]
        %v5545 = vld [vmem:[#allocation12 + $0x2f0] sm:$0xff]
        %v5546 = vld [vmem:[#allocation12 + $0x2f8] sm:$0xff]
        %v5579 = vunpack.c.l.b16 %v5515
        %v5580 = vunpack.c.h.b16 %v5515
        %v5581 = vunpack.c.l.b16 %v5516
        %v5582 = vunpack.c.h.b16 %v5516
        %v5583 = vunpack.c.l.b16 %v5517
        %v5584 = vunpack.c.h.b16 %v5517
        %v5585 = vunpack.c.l.b16 %v5518
        %v5586 = vunpack.c.h.b16 %v5518
        %v5587 = vunpack.c.l.b16 %v5519
        %v5588 = vunpack.c.h.b16 %v5519
        %v5589 = vunpack.c.l.b16 %v5520
        %v5590 = vunpack.c.h.b16 %v5520
        %v5591 = vunpack.c.l.b16 %v5521
        %v5592 = vunpack.c.h.b16 %v5521
        %v5593 = vunpack.c.l.b16 %v5522
        %v5594 = vunpack.c.h.b16 %v5522
        %v5595 = vunpack.c.l.b16 %v5523
        %v5596 = vunpack.c.h.b16 %v5523
        %v5597 = vunpack.c.l.b16 %v5524
        %v5598 = vunpack.c.h.b16 %v5524
        %v5599 = vunpack.c.l.b16 %v5525
        %v5600 = vunpack.c.h.b16 %v5525
        %v5601 = vunpack.c.l.b16 %v5526
        %v5602 = vunpack.c.h.b16 %v5526
        %v5603 = vunpack.c.l.b16 %v5527
        %v5604 = vunpack.c.h.b16 %v5527
        %v5605 = vunpack.c.l.b16 %v5528
        %v5606 = vunpack.c.h.b16 %v5528
        %v5607 = vunpack.c.l.b16 %v5529
        %v5608 = vunpack.c.h.b16 %v5529
        %v5609 = vunpack.c.l.b16 %v5530
        %v5610 = vunpack.c.h.b16 %v5530
        %v5611 = vunpack.c.l.b16 %v5531
        %v5612 = vunpack.c.h.b16 %v5531
        %v5613 = vunpack.c.l.b16 %v5532
        %v5614 = vunpack.c.h.b16 %v5532
        %v5615 = vunpack.c.l.b16 %v5533
        %v5616 = vunpack.c.h.b16 %v5533
        %v5617 = vunpack.c.l.b16 %v5534
        %v5618 = vunpack.c.h.b16 %v5534
        %v5619 = vunpack.c.l.b16 %v5535
        %v5620 = vunpack.c.h.b16 %v5535
        %v5621 = vunpack.c.l.b16 %v5536
        %v5622 = vunpack.c.h.b16 %v5536
        %v5623 = vunpack.c.l.b16 %v5537
        %v5624 = vunpack.c.h.b16 %v5537
        %v5625 = vunpack.c.l.b16 %v5538
        %v5626 = vunpack.c.h.b16 %v5538
        %v5627 = vunpack.c.l.b16 %v5539
        %v5628 = vunpack.c.h.b16 %v5539
        %v5629 = vunpack.c.l.b16 %v5540
        %v5630 = vunpack.c.h.b16 %v5540
        %v5631 = vunpack.c.l.b16 %v5541
        %v5632 = vunpack.c.h.b16 %v5541
        %v5633 = vunpack.c.l.b16 %v5542
        %v5634 = vunpack.c.h.b16 %v5542
        %v5635 = vunpack.c.l.b16 %v5543
        %v5636 = vunpack.c.h.b16 %v5543
        %v5637 = vunpack.c.l.b16 %v5544
        %v5638 = vunpack.c.h.b16 %v5544
        %v5639 = vunpack.c.l.b16 %v5545
        %v5640 = vunpack.c.h.b16 %v5545
        %v5641 = vunpack.c.l.b16 %v5546
        %v5642 = vunpack.c.h.b16 %v5546
        %v5643 = vpack.c.b16 %v5581, %v5579
        %v5644 = vpack.c.b16 %v5582, %v5580
        %v5645 = vpack.c.b16 %v5585, %v5583
        %v5646 = vpack.c.b16 %v5586, %v5584
        %v5647 = vpack.c.b16 %v5589, %v5587
        %v5648 = vpack.c.b16 %v5590, %v5588
        %v5649 = vpack.c.b16 %v5593, %v5591
        %v5650 = vpack.c.b16 %v5594, %v5592
        %v5651 = vpack.c.b16 %v5597, %v5595
        %v5652 = vpack.c.b16 %v5598, %v5596
        %v5653 = vpack.c.b16 %v5601, %v5599
        %v5654 = vpack.c.b16 %v5602, %v5600
        %v5655 = vpack.c.b16 %v5605, %v5603
        %v5656 = vpack.c.b16 %v5606, %v5604
        %v5657 = vpack.c.b16 %v5609, %v5607
        %v5658 = vpack.c.b16 %v5610, %v5608
        %v5659 = vpack.c.b16 %v5613, %v5611
        %v5660 = vpack.c.b16 %v5614, %v5612
        %v5661 = vpack.c.b16 %v5617, %v5615
        %v5662 = vpack.c.b16 %v5618, %v5616
        %v5663 = vpack.c.b16 %v5621, %v5619
        %v5664 = vpack.c.b16 %v5622, %v5620
        %v5665 = vpack.c.b16 %v5625, %v5623
        %v5666 = vpack.c.b16 %v5626, %v5624
        %v5667 = vpack.c.b16 %v5629, %v5627
        %v5668 = vpack.c.b16 %v5630, %v5628
        %v5669 = vpack.c.b16 %v5633, %v5631
        %v5670 = vpack.c.b16 %v5634, %v5632
        %v5671 = vpack.c.b16 %v5637, %v5635
        %v5672 = vpack.c.b16 %v5638, %v5636
        %v5673 = vpack.c.b16 %v5641, %v5639
        %v5674 = vpack.c.b16 %v5642, %v5640
        %5707 = vmatpush.bf16.msra.mxu0 %v5657
        %5708 = vmatpush.bf16.msra.mxu0 %v5655
        %5709 = vmatpush.bf16.msra.mxu0 %v5653
        %5710 = vmatpush.bf16.msra.mxu0 %v5651
        %5711 = vmatpush.bf16.msra.mxu0 %v5649
        %5712 = vmatpush.bf16.msra.mxu0 %v5647
        %5713 = vmatpush.bf16.msra.mxu0 %v5645
        %5714 = vmatpush.bf16.msra.mxu0 %v5643
        %5715 = vmatmul.bf16.gmra.mxu0 %v5489
        %v5716 = vpop.f32.mrf.mxu0
        %v5717 = vadd.f32 0.0, %v5716
        %v5718 = vpop.f32.mrf.mxu0
        %v5719 = vadd.f32 0.0, %v5718
        %5720 = vmatmul.bf16.gmra.mxu0 %v5491
        %v5721 = vpop.f32.mrf.mxu0
        %v5722 = vadd.f32 0.0, %v5721
        %v5723 = vpop.f32.mrf.mxu0
        %v5724 = vadd.f32 0.0, %v5723
        %5725 = vmatmul.bf16.gmra.mxu0 %v5493
        %v5726 = vpop.f32.mrf.mxu0
        %v5727 = vadd.f32 0.0, %v5726
        %v5728 = vpop.f32.mrf.mxu0
        %v5729 = vadd.f32 0.0, %v5728
        %5730 = vmatmul.bf16.gmra.mxu0 %v5495
        %v5731 = vpop.f32.mrf.mxu0
        %v5732 = vadd.f32 0.0, %v5731
        %v5733 = vpop.f32.mrf.mxu0
        %v5734 = vadd.f32 0.0, %v5733
        %5735 = vmatmul.bf16.gmra.mxu0 %v5497
        %v5736 = vpop.f32.mrf.mxu0
        %v5737 = vadd.f32 0.0, %v5736
        %v5738 = vpop.f32.mrf.mxu0
        %v5739 = vadd.f32 0.0, %v5738
        %5740 = vmatmul.bf16.gmra.mxu0 %v5499
        %v5741 = vpop.f32.mrf.mxu0
        %v5742 = vadd.f32 0.0, %v5741
        %v5743 = vpop.f32.mrf.mxu0
        %v5744 = vadd.f32 0.0, %v5743
        %5745 = vmatmul.bf16.gmra.mxu0 %v5501
        %v5746 = vpop.f32.mrf.mxu0
        %v5747 = vadd.f32 0.0, %v5746
        %v5748 = vpop.f32.mrf.mxu0
        %v5749 = vadd.f32 0.0, %v5748
        %5750 = vmatmul.bf16.gmra.mxu0 %v5503
        %v5751 = vpop.f32.mrf.mxu0
        %v5752 = vadd.f32 0.0, %v5751
        %v5753 = vpop.f32.mrf.mxu0
        %v5754 = vadd.f32 0.0, %v5753
        %5755 = vmatmul.bf16.gmra.mxu0 %v5505
        %v5756 = vpop.f32.mrf.mxu0
        %v5757 = vadd.f32 0.0, %v5756
        %v5758 = vpop.f32.mrf.mxu0
        %v5759 = vadd.f32 0.0, %v5758
        %5760 = vmatmul.bf16.gmra.mxu0 %v5507
        %v5761 = vpop.f32.mrf.mxu0
        %v5762 = vadd.f32 0.0, %v5761
        %v5763 = vpop.f32.mrf.mxu0
        %v5764 = vadd.f32 0.0, %v5763
        %5765 = vmatmul.bf16.gmra.mxu0 %v5509
        %v5766 = vpop.f32.mrf.mxu0
        %v5767 = vadd.f32 0.0, %v5766
        %v5768 = vpop.f32.mrf.mxu0
        %v5769 = vadd.f32 0.0, %v5768
        %5770 = vmatmul.bf16.gmra.mxu0 %v5511
        %v5771 = vpop.f32.mrf.mxu0
        %v5772 = vadd.f32 0.0, %v5771
        %v5773 = vpop.f32.mrf.mxu0
        %v5774 = vadd.f32 0.0, %v5773
        %5775 = vmatmul.bf16.gmra.mxu0 %v5513
        %v5776 = vpop.f32.mrf.mxu0
        %v5777 = vadd.f32 0.0, %v5776
        %v5778 = vpop.f32.mrf.mxu0
        %5779 = vdwg.mxu0
        %5780 = vmatpush.bf16.msra.mxu0 %v5673
        %5781 = vmatpush.bf16.msra.mxu0 %v5671
        %5782 = vmatpush.bf16.msra.mxu0 %v5669
        %5783 = vmatpush.bf16.msra.mxu0 %v5667
        %5784 = vmatpush.bf16.msra.mxu0 %v5665
        %5785 = vmatpush.bf16.msra.mxu0 %v5663
        %5786 = vmatpush.bf16.msra.mxu0 %v5661
        %5787 = vmatpush.bf16.msra.mxu0 %v5659
        %5788 = vmatmul.bf16.gmra.mxu0 %v5490
        %v5789 = vpop.f32.mrf.mxu0
        %v5790 = vadd.f32 %v5717, %v5789
        %v5791 = vpop.f32.mrf.mxu0
        %v5792 = vadd.f32 %v5719, %v5791
        %5793 = vmatmul.bf16.gmra.mxu0 %v5492
        %v5794 = vpop.f32.mrf.mxu0
        %v5795 = vadd.f32 %v5722, %v5794
        %v5796 = vpop.f32.mrf.mxu0
        %v5797 = vadd.f32 %v5724, %v5796
        %5798 = vmatmul.bf16.gmra.mxu0 %v5494
        %v5799 = vpop.f32.mrf.mxu0
        %v5800 = vadd.f32 %v5727, %v5799
        %v5801 = vpop.f32.mrf.mxu0
        %v5802 = vadd.f32 %v5729, %v5801
        %5803 = vmatmul.bf16.gmra.mxu0 %v5496
        %v5804 = vpop.f32.mrf.mxu0
        %v5805 = vadd.f32 %v5732, %v5804
        %v5806 = vpop.f32.mrf.mxu0
        %v5807 = vadd.f32 %v5734, %v5806
        %5808 = vmatmul.bf16.gmra.mxu0 %v5498
        %v5809 = vpop.f32.mrf.mxu0
        %v5810 = vadd.f32 %v5737, %v5809
        %v5811 = vpop.f32.mrf.mxu0
        %v5812 = vadd.f32 %v5739, %v5811
        %5813 = vmatmul.bf16.gmra.mxu0 %v5500
        %v5814 = vpop.f32.mrf.mxu0
        %v5815 = vadd.f32 %v5742, %v5814
        %v5816 = vpop.f32.mrf.mxu0
        %v5817 = vadd.f32 %v5744, %v5816
        %5818 = vmatmul.bf16.gmra.mxu0 %v5502
        %v5819 = vpop.f32.mrf.mxu0
        %v5820 = vadd.f32 %v5747, %v5819
        %v5821 = vpop.f32.mrf.mxu0
        %v5822 = vadd.f32 %v5749, %v5821
        %5823 = vmatmul.bf16.gmra.mxu0 %v5504
        %v5824 = vpop.f32.mrf.mxu0
        %v5825 = vadd.f32 %v5752, %v5824
        %v5826 = vpop.f32.mrf.mxu0
        %v5827 = vadd.f32 %v5754, %v5826
        %5828 = vmatmul.bf16.gmra.mxu0 %v5506
        %v5829 = vpop.f32.mrf.mxu0
        %v5830 = vadd.f32 %v5757, %v5829
        %v5831 = vpop.f32.mrf.mxu0
        %v5832 = vadd.f32 %v5759, %v5831
        %5833 = vmatmul.bf16.gmra.mxu0 %v5508
        %v5834 = vpop.f32.mrf.mxu0
        %v5835 = vadd.f32 %v5762, %v5834
        %v5836 = vpop.f32.mrf.mxu0
        %v5837 = vadd.f32 %v5764, %v5836
        %5838 = vmatmul.bf16.gmra.mxu0 %v5510
        %v5839 = vpop.f32.mrf.mxu0
        %v5840 = vadd.f32 %v5767, %v5839
        %v5841 = vpop.f32.mrf.mxu0
        %v5842 = vadd.f32 %v5769, %v5841
        %5843 = vmatmul.bf16.gmra.mxu0 %v5512
        %v5844 = vpop.f32.mrf.mxu0
        %v5845 = vadd.f32 %v5772, %v5844
        %v5846 = vpop.f32.mrf.mxu0
        %v5847 = vadd.f32 %v5774, %v5846
        %5848 = vmatmul.bf16.gmra.mxu0 %v5514
        %v5849 = vpop.f32.mrf.mxu0
        %v5850 = vadd.f32 %v5777, %v5849
        %v5851 = vpop.f32.mrf.mxu0
        %5852 = vdwg.mxu0
        %5853 = vmatpush.bf16.msra.mxu0 %v5658
        %5854 = vmatpush.bf16.msra.mxu0 %v5656
        %5855 = vmatpush.bf16.msra.mxu0 %v5654
        %5856 = vmatpush.bf16.msra.mxu0 %v5652
        %5857 = vmatpush.bf16.msra.mxu0 %v5650
        %5858 = vmatpush.bf16.msra.mxu0 %v5648
        %5859 = vmatpush.bf16.msra.mxu0 %v5646
        %5860 = vmatpush.bf16.msra.mxu0 %v5644
        %5861 = vmatmul.bf16.gmra.mxu0 %v5489
        %v5862 = vpop.f32.mrf.mxu0
        %v5863 = vadd.f32 0.0, %v5862
        %v5864 = vpop.f32.mrf.mxu0
        %v5865 = vadd.f32 0.0, %v5864
        %5866 = vmatmul.bf16.gmra.mxu0 %v5491
        %v5867 = vpop.f32.mrf.mxu0
        %v5868 = vadd.f32 0.0, %v5867
        %v5869 = vpop.f32.mrf.mxu0
        %v5870 = vadd.f32 0.0, %v5869
        %5871 = vmatmul.bf16.gmra.mxu0 %v5493
        %v5872 = vpop.f32.mrf.mxu0
        %v5873 = vadd.f32 0.0, %v5872
        %v5874 = vpop.f32.mrf.mxu0
        %v5875 = vadd.f32 0.0, %v5874
        %5876 = vmatmul.bf16.gmra.mxu0 %v5495
        %v5877 = vpop.f32.mrf.mxu0
        %v5878 = vadd.f32 0.0, %v5877
        %v5879 = vpop.f32.mrf.mxu0
        %v5880 = vadd.f32 0.0, %v5879
        %5881 = vmatmul.bf16.gmra.mxu0 %v5497
        %v5882 = vpop.f32.mrf.mxu0
        %v5883 = vadd.f32 0.0, %v5882
        %v5884 = vpop.f32.mrf.mxu0
        %v5885 = vadd.f32 0.0, %v5884
        %5886 = vmatmul.bf16.gmra.mxu0 %v5499
        %v5887 = vpop.f32.mrf.mxu0
        %v5888 = vadd.f32 0.0, %v5887
        %v5889 = vpop.f32.mrf.mxu0
        %v5890 = vadd.f32 0.0, %v5889
        %5891 = vmatmul.bf16.gmra.mxu0 %v5501
        %v5892 = vpop.f32.mrf.mxu0
        %v5893 = vadd.f32 0.0, %v5892
        %v5894 = vpop.f32.mrf.mxu0
        %v5895 = vadd.f32 0.0, %v5894
        %5896 = vmatmul.bf16.gmra.mxu0 %v5503
        %v5897 = vpop.f32.mrf.mxu0
        %v5898 = vadd.f32 0.0, %v5897
        %v5899 = vpop.f32.mrf.mxu0
        %v5900 = vadd.f32 0.0, %v5899
        %5901 = vmatmul.bf16.gmra.mxu0 %v5505
        %v5902 = vpop.f32.mrf.mxu0
        %v5903 = vadd.f32 0.0, %v5902
        %v5904 = vpop.f32.mrf.mxu0
        %v5905 = vadd.f32 0.0, %v5904
        %5906 = vmatmul.bf16.gmra.mxu0 %v5507
        %v5907 = vpop.f32.mrf.mxu0
        %v5908 = vadd.f32 0.0, %v5907
        %v5909 = vpop.f32.mrf.mxu0
        %v5910 = vadd.f32 0.0, %v5909
        %5911 = vmatmul.bf16.gmra.mxu0 %v5509
        %v5912 = vpop.f32.mrf.mxu0
        %v5913 = vadd.f32 0.0, %v5912
        %v5914 = vpop.f32.mrf.mxu0
        %v5915 = vadd.f32 0.0, %v5914
        %5916 = vmatmul.bf16.gmra.mxu0 %v5511
        %v5917 = vpop.f32.mrf.mxu0
        %v5918 = vadd.f32 0.0, %v5917
        %v5919 = vpop.f32.mrf.mxu0
        %v5920 = vadd.f32 0.0, %v5919
        %5921 = vmatmul.bf16.gmra.mxu0 %v5513
        %v5922 = vpop.f32.mrf.mxu0
        %v5923 = vadd.f32 0.0, %v5922
        %v5924 = vpop.f32.mrf.mxu0
        %5925 = vdwg.mxu0
        %5926 = vmatpush.bf16.msra.mxu0 %v5674
        %5927 = vmatpush.bf16.msra.mxu0 %v5672
        %5928 = vmatpush.bf16.msra.mxu0 %v5670
        %5929 = vmatpush.bf16.msra.mxu0 %v5668
        %5930 = vmatpush.bf16.msra.mxu0 %v5666
        %5931 = vmatpush.bf16.msra.mxu0 %v5664
        %5932 = vmatpush.bf16.msra.mxu0 %v5662
        %5933 = vmatpush.bf16.msra.mxu0 %v5660
        %5934 = vmatmul.bf16.gmra.mxu0 %v5490
        %v5935 = vpop.f32.mrf.mxu0
        %v5936 = vadd.f32 %v5863, %v5935
        %v5937 = vpop.f32.mrf.mxu0
        %v5938 = vadd.f32 %v5865, %v5937
        %5939 = vmatmul.bf16.gmra.mxu0 %v5492
        %v5940 = vpop.f32.mrf.mxu0
        %v5941 = vadd.f32 %v5868, %v5940
        %v5942 = vpop.f32.mrf.mxu0
        %v5943 = vadd.f32 %v5870, %v5942
        %5944 = vmatmul.bf16.gmra.mxu0 %v5494
        %v5945 = vpop.f32.mrf.mxu0
        %v5946 = vadd.f32 %v5873, %v5945
        %v5947 = vpop.f32.mrf.mxu0
        %v5948 = vadd.f32 %v5875, %v5947
        %5949 = vmatmul.bf16.gmra.mxu0 %v5496
        %v5950 = vpop.f32.mrf.mxu0
        %v5951 = vadd.f32 %v5878, %v5950
        %v5952 = vpop.f32.mrf.mxu0
        %v5953 = vadd.f32 %v5880, %v5952
        %5954 = vmatmul.bf16.gmra.mxu0 %v5498
        %v5955 = vpop.f32.mrf.mxu0
        %v5956 = vadd.f32 %v5883, %v5955
        %v5957 = vpop.f32.mrf.mxu0
        %v5958 = vadd.f32 %v5885, %v5957
        %5959 = vmatmul.bf16.gmra.mxu0 %v5500
        %v5960 = vpop.f32.mrf.mxu0
        %v5961 = vadd.f32 %v5888, %v5960
        %v5962 = vpop.f32.mrf.mxu0
        %v5963 = vadd.f32 %v5890, %v5962
        %5964 = vmatmul.bf16.gmra.mxu0 %v5502
        %v5965 = vpop.f32.mrf.mxu0
        %v5966 = vadd.f32 %v5893, %v5965
        %v5967 = vpop.f32.mrf.mxu0
        %v5968 = vadd.f32 %v5895, %v5967
        %5969 = vmatmul.bf16.gmra.mxu0 %v5504
        %v5970 = vpop.f32.mrf.mxu0
        %v5971 = vadd.f32 %v5898, %v5970
        %v5972 = vpop.f32.mrf.mxu0
        %v5973 = vadd.f32 %v5900, %v5972
        %5974 = vmatmul.bf16.gmra.mxu0 %v5506
        %v5975 = vpop.f32.mrf.mxu0
        %v5976 = vadd.f32 %v5903, %v5975
        %v5977 = vpop.f32.mrf.mxu0
        %v5978 = vadd.f32 %v5905, %v5977
        %5979 = vmatmul.bf16.gmra.mxu0 %v5508
        %v5980 = vpop.f32.mrf.mxu0
        %v5981 = vadd.f32 %v5908, %v5980
        %v5982 = vpop.f32.mrf.mxu0
        %v5983 = vadd.f32 %v5910, %v5982
        %5984 = vmatmul.bf16.gmra.mxu0 %v5510
        %v5985 = vpop.f32.mrf.mxu0
        %v5986 = vadd.f32 %v5913, %v5985
        %v5987 = vpop.f32.mrf.mxu0
        %v5988 = vadd.f32 %v5915, %v5987
        %5989 = vmatmul.bf16.gmra.mxu0 %v5512
        %v5990 = vpop.f32.mrf.mxu0
        %v5991 = vadd.f32 %v5918, %v5990
        %v5992 = vpop.f32.mrf.mxu0
        %v5993 = vadd.f32 %v5920, %v5992
        %5994 = vmatmul.bf16.gmra.mxu0 %v5514
        %v5995 = vpop.f32.mrf.mxu0
        %v5996 = vadd.f32 %v5923, %v5995
        %v5997 = vpop.f32.mrf.mxu0
        %5998 = vdwg.mxu0
        %v5999 = vadd.f32 %v5439, %v5790
        %v6000 = vadd.f32 %v5440, %v5936
        %v6001 = vadd.f32 %v5441, %v5792
        %v6002 = vadd.f32 %v5442, %v5938
        %v6003 = vadd.f32 %v5443, %v5795
        %v6004 = vadd.f32 %v5444, %v5941
        %v6005 = vadd.f32 %v5445, %v5797
        %v6006 = vadd.f32 %v5446, %v5943
        %v6007 = vadd.f32 %v5447, %v5800
        %v6008 = vadd.f32 %v5448, %v5946
        %v6009 = vadd.f32 %v5449, %v5802
        %v6010 = vadd.f32 %v5450, %v5948
        %v6011 = vadd.f32 %v5451, %v5805
        %v6012 = vadd.f32 %v5452, %v5951
        %v6013 = vadd.f32 %v5453, %v5807
        %v6014 = vadd.f32 %v5454, %v5953
        %v6015 = vadd.f32 %v5455, %v5810
        %v6016 = vadd.f32 %v5456, %v5956
        %v6017 = vadd.f32 %v5457, %v5812
        %v6018 = vadd.f32 %v5458, %v5958
        %v6019 = vadd.f32 %v5459, %v5815
        %v6020 = vadd.f32 %v5460, %v5961
        %v6021 = vadd.f32 %v5461, %v5817
        %v6022 = vadd.f32 %v5462, %v5963
        %v6023 = vadd.f32 %v5463, %v5820
        %v6024 = vadd.f32 %v5464, %v5966
        %v6025 = vadd.f32 %v5465, %v5822
        %v6026 = vadd.f32 %v5466, %v5968
        %v6027 = vadd.f32 %v5467, %v5825
        %v6028 = vadd.f32 %v5468, %v5971
        %v6029 = vadd.f32 %v5469, %v5827
        %v6030 = vadd.f32 %v5470, %v5973
        %v6031 = vadd.f32 %v5471, %v5830
        %v6032 = vadd.f32 %v5472, %v5976
        %v6033 = vadd.f32 %v5473, %v5832
        %v6034 = vadd.f32 %v5474, %v5978
        %v6035 = vadd.f32 %v5475, %v5835
        %v6036 = vadd.f32 %v5476, %v5981
        %v6037 = vadd.f32 %v5477, %v5837
        %v6038 = vadd.f32 %v5478, %v5983
        %v6039 = vadd.f32 %v5479, %v5840
        %v6040 = vadd.f32 %v5480, %v5986
        %v6041 = vadd.f32 %v5481, %v5842
        %v6042 = vadd.f32 %v5482, %v5988
        %v6043 = vadd.f32 %v5483, %v5845
        %v6044 = vadd.f32 %v5484, %v5991
        %v6045 = vadd.f32 %v5485, %v5847
        %v6046 = vadd.f32 %v5486, %v5993
        %v6047 = vadd.f32 %v5487, %v5850
        %v6048 = vadd.f32 %v5488, %v5996
        %6049 = vst [vmem:[#allocation2] sm:$0xff] %v5999
        %6050 = vst [vmem:[#allocation2 + $0x8] sm:$0xff] %v6000
        %6051 = vst [vmem:[#allocation2 + $0x10] sm:$0xff] %v6001
        %6052 = vst [vmem:[#allocation2 + $0x18] sm:$0xff] %v6002
        %6053 = vst [vmem:[#allocation2 + $0x20] sm:$0xff] %v6003
        %6054 = vst [vmem:[#allocation2 + $0x28] sm:$0xff] %v6004
        %6055 = vst [vmem:[#allocation2 + $0x30] sm:$0xff] %v6005
        %6056 = vst [vmem:[#allocation2 + $0x38] sm:$0xff] %v6006
        %6057 = vst [vmem:[#allocation2 + $0x40] sm:$0xff] %v6007
        %6058 = vst [vmem:[#allocation2 + $0x48] sm:$0xff] %v6008
        %6059 = vst [vmem:[#allocation2 + $0x50] sm:$0xff] %v6009
        %6060 = vst [vmem:[#allocation2 + $0x58] sm:$0xff] %v6010
        %6061 = vst [vmem:[#allocation2 + $0x60] sm:$0xff] %v6011
        %6062 = vst [vmem:[#allocation2 + $0x68] sm:$0xff] %v6012
        %6063 = vst [vmem:[#allocation2 + $0x70] sm:$0xff] %v6013
        %6064 = vst [vmem:[#allocation2 + $0x78] sm:$0xff] %v6014
        %6065 = vst [vmem:[#allocation2 + $0x80] sm:$0xff] %v6015
        %6066 = vst [vmem:[#allocation2 + $0x88] sm:$0xff] %v6016
        %6067 = vst [vmem:[#allocation2 + $0x90] sm:$0xff] %v6017
        %6068 = vst [vmem:[#allocation2 + $0x98] sm:$0xff] %v6018
        %6069 = vst [vmem:[#allocation2 + $0xa0] sm:$0xff] %v6019
        %6070 = vst [vmem:[#allocation2 + $0xa8] sm:$0xff] %v6020
        %6071 = vst [vmem:[#allocation2 + $0xb0] sm:$0xff] %v6021
        %6072 = vst [vmem:[#allocation2 + $0xb8] sm:$0xff] %v6022
        %6073 = vst [vmem:[#allocation2 + $0xc0] sm:$0xff] %v6023
        %6074 = vst [vmem:[#allocation2 + $0xc8] sm:$0xff] %v6024
        %6075 = vst [vmem:[#allocation2 + $0xd0] sm:$0xff] %v6025
        %6076 = vst [vmem:[#allocation2 + $0xd8] sm:$0xff] %v6026
        %6077 = vst [vmem:[#allocation2 + $0xe0] sm:$0xff] %v6027
        %6078 = vst [vmem:[#allocation2 + $0xe8] sm:$0xff] %v6028
        %6079 = vst [vmem:[#allocation2 + $0xf0] sm:$0xff] %v6029
        %6080 = vst [vmem:[#allocation2 + $0xf8] sm:$0xff] %v6030
        %6081 = vst [vmem:[#allocation2 + $0x100] sm:$0xff] %v6031
        %6082 = vst [vmem:[#allocation2 + $0x108] sm:$0xff] %v6032
        %6083 = vst [vmem:[#allocation2 + $0x110] sm:$0xff] %v6033
        %6084 = vst [vmem:[#allocation2 + $0x118] sm:$0xff] %v6034
        %6085 = vst [vmem:[#allocation2 + $0x120] sm:$0xff] %v6035
        %6086 = vst [vmem:[#allocation2 + $0x128] sm:$0xff] %v6036
        %6087 = vst [vmem:[#allocation2 + $0x130] sm:$0xff] %v6037
        %6088 = vst [vmem:[#allocation2 + $0x138] sm:$0xff] %v6038
        %6089 = vst [vmem:[#allocation2 + $0x140] sm:$0xff] %v6039
        %6090 = vst [vmem:[#allocation2 + $0x148] sm:$0xff] %v6040
        %6091 = vst [vmem:[#allocation2 + $0x150] sm:$0xff] %v6041
        %6092 = vst [vmem:[#allocation2 + $0x158] sm:$0xff] %v6042
        %6093 = vst [vmem:[#allocation2 + $0x160] sm:$0xff] %v6043
        %6094 = vst [vmem:[#allocation2 + $0x168] sm:$0xff] %v6044
        %6095 = vst [vmem:[#allocation2 + $0x170] sm:$0xff] %v6045
        %6096 = vst [vmem:[#allocation2 + $0x178] sm:$0xff] %v6046
        %6097 = vst [vmem:[#allocation2 + $0x180] sm:$0xff] %v6047
        %6098 = vst [vmem:[#allocation2 + $0x188] sm:$0xff] %v6048
        %v6099 = vld [vmem:[#allocation2] sm:$0xff]
        %v6100 = vld [vmem:[#allocation2 + $0x8] sm:$0xff]
        %v6101 = vld [vmem:[#allocation2 + $0x10] sm:$0xff]
        %v6102 = vld [vmem:[#allocation2 + $0x18] sm:$0xff]
        %v6103 = vld [vmem:[#allocation2 + $0x20] sm:$0xff]
        %v6104 = vld [vmem:[#allocation2 + $0x28] sm:$0xff]
        %v6105 = vld [vmem:[#allocation2 + $0x30] sm:$0xff]
        %v6106 = vld [vmem:[#allocation2 + $0x38] sm:$0xff]
        %v6107 = vld [vmem:[#allocation2 + $0x40] sm:$0xff]
        %v6108 = vld [vmem:[#allocation2 + $0x48] sm:$0xff]
        %v6109 = vld [vmem:[#allocation2 + $0x50] sm:$0xff]
        %v6110 = vld [vmem:[#allocation2 + $0x58] sm:$0xff]
        %v6111 = vld [vmem:[#allocation2 + $0x60] sm:$0xff]
        %v6112 = vld [vmem:[#allocation2 + $0x68] sm:$0xff]
        %v6113 = vld [vmem:[#allocation2 + $0x70] sm:$0xff]
        %v6114 = vld [vmem:[#allocation2 + $0x78] sm:$0xff]
        %v6115 = vld [vmem:[#allocation2 + $0x80] sm:$0xff]
        %v6116 = vld [vmem:[#allocation2 + $0x88] sm:$0xff]
        %v6117 = vld [vmem:[#allocation2 + $0x90] sm:$0xff]
        %v6118 = vld [vmem:[#allocation2 + $0x98] sm:$0xff]
        %v6119 = vld [vmem:[#allocation2 + $0xa0] sm:$0xff]
        %v6120 = vld [vmem:[#allocation2 + $0xa8] sm:$0xff]
        %v6121 = vld [vmem:[#allocation2 + $0xb0] sm:$0xff]
        %v6122 = vld [vmem:[#allocation2 + $0xb8] sm:$0xff]
        %v6123 = vld [vmem:[#allocation2 + $0xc0] sm:$0xff]
        %v6124 = vld [vmem:[#allocation2 + $0xc8] sm:$0xff]
        %v6125 = vld [vmem:[#allocation2 + $0xd0] sm:$0xff]
        %v6126 = vld [vmem:[#allocation2 + $0xd8] sm:$0xff]
        %v6127 = vld [vmem:[#allocation2 + $0xe0] sm:$0xff]
        %v6128 = vld [vmem:[#allocation2 + $0xe8] sm:$0xff]
        %v6129 = vld [vmem:[#allocation2 + $0xf0] sm:$0xff]
        %v6130 = vld [vmem:[#allocation2 + $0xf8] sm:$0xff]
        %v6131 = vld [vmem:[#allocation2 + $0x100] sm:$0xff]
        %v6132 = vld [vmem:[#allocation2 + $0x108] sm:$0xff]
        %v6133 = vld [vmem:[#allocation2 + $0x110] sm:$0xff]
        %v6134 = vld [vmem:[#allocation2 + $0x118] sm:$0xff]
        %v6135 = vld [vmem:[#allocation2 + $0x120] sm:$0xff]
        %v6136 = vld [vmem:[#allocation2 + $0x128] sm:$0xff]
        %v6137 = vld [vmem:[#allocation2 + $0x130] sm:$0xff]
        %v6138 = vld [vmem:[#allocation2 + $0x138] sm:$0xff]
        %v6139 = vld [vmem:[#allocation2 + $0x140] sm:$0xff]
        %v6140 = vld [vmem:[#allocation2 + $0x148] sm:$0xff]
        %v6141 = vld [vmem:[#allocation2 + $0x150] sm:$0xff]
        %v6142 = vld [vmem:[#allocation2 + $0x158] sm:$0xff]
        %v6143 = vld [vmem:[#allocation2 + $0x160] sm:$0xff]
        %v6144 = vld [vmem:[#allocation2 + $0x168] sm:$0xff]
        %v6145 = vld [vmem:[#allocation2 + $0x170] sm:$0xff]
        %v6146 = vld [vmem:[#allocation2 + $0x178] sm:$0xff]
        %v6147 = vld [vmem:[#allocation2 + $0x180] sm:$0xff]
        %v6148 = vld [vmem:[#allocation2 + $0x188] sm:$0xff]
        %v6149 = vld [vmem:[%s6] sm:$0x3]
        %v6151 = vperm.slane %v6149, 0
        %v6152 = vperm.slane %v6149, 1
        %v6155 = vadd.f32 %v6099, %v6151
        %v6156 = vadd.f32 %v6100, %v6152
        %v6157 = vadd.f32 %v6101, %v6151
        %v6158 = vadd.f32 %v6102, %v6152
        %v6159 = vadd.f32 %v6103, %v6151
        %v6160 = vadd.f32 %v6104, %v6152
        %v6161 = vadd.f32 %v6105, %v6151
        %v6162 = vadd.f32 %v6106, %v6152
        %v6163 = vadd.f32 %v6107, %v6151
        %v6164 = vadd.f32 %v6108, %v6152
        %v6165 = vadd.f32 %v6109, %v6151
        %v6166 = vadd.f32 %v6110, %v6152
        %v6167 = vadd.f32 %v6111, %v6151
        %v6168 = vadd.f32 %v6112, %v6152
        %v6169 = vadd.f32 %v6113, %v6151
        %v6170 = vadd.f32 %v6114, %v6152
        %v6171 = vadd.f32 %v6115, %v6151
        %v6172 = vadd.f32 %v6116, %v6152
        %v6173 = vadd.f32 %v6117, %v6151
        %v6174 = vadd.f32 %v6118, %v6152
        %v6175 = vadd.f32 %v6119, %v6151
        %v6176 = vadd.f32 %v6120, %v6152
        %v6177 = vadd.f32 %v6121, %v6151
        %v6178 = vadd.f32 %v6122, %v6152
        %v6179 = vadd.f32 %v6123, %v6151
        %v6180 = vadd.f32 %v6124, %v6152
        %v6181 = vadd.f32 %v6125, %v6151
        %v6182 = vadd.f32 %v6126, %v6152
        %v6183 = vadd.f32 %v6127, %v6151
        %v6184 = vadd.f32 %v6128, %v6152
        %v6185 = vadd.f32 %v6129, %v6151
        %v6186 = vadd.f32 %v6130, %v6152
        %v6187 = vadd.f32 %v6131, %v6151
        %v6188 = vadd.f32 %v6132, %v6152
        %v6189 = vadd.f32 %v6133, %v6151
        %v6190 = vadd.f32 %v6134, %v6152
        %v6191 = vadd.f32 %v6135, %v6151
        %v6192 = vadd.f32 %v6136, %v6152
        %v6193 = vadd.f32 %v6137, %v6151
        %v6194 = vadd.f32 %v6138, %v6152
        %v6195 = vadd.f32 %v6139, %v6151
        %v6196 = vadd.f32 %v6140, %v6152
        %v6197 = vadd.f32 %v6141, %v6151
        %v6198 = vadd.f32 %v6142, %v6152
        %v6199 = vadd.f32 %v6143, %v6151
        %v6200 = vadd.f32 %v6144, %v6152
        %v6201 = vadd.f32 %v6145, %v6151
        %v6202 = vadd.f32 %v6146, %v6152
        %v6203 = vadd.f32 %v6147, %v6151
        %v6204 = vadd.f32 %v6148, %v6152
        %6205 = vst [vmem:[%s376] sm:$0xff] %v6155
        %6206 = vst [vmem:[%s376 + $0x8] sm:$0xff] %v6156
        %6207 = vst [vmem:[%s376 + $0x10] sm:$0xff] %v6157
        %6208 = vst [vmem:[%s376 + $0x18] sm:$0xff] %v6158
        %6209 = vst [vmem:[%s376 + $0x20] sm:$0xff] %v6159
        %6210 = vst [vmem:[%s376 + $0x28] sm:$0xff] %v6160
        %6211 = vst [vmem:[%s376 + $0x30] sm:$0xff] %v6161
        %6212 = vst [vmem:[%s376 + $0x38] sm:$0xff] %v6162
        %6213 = vst [vmem:[%s376 + $0x40] sm:$0xff] %v6163
        %6214 = vst [vmem:[%s376 + $0x48] sm:$0xff] %v6164
        %6215 = vst [vmem:[%s376 + $0x50] sm:$0xff] %v6165
        %6216 = vst [vmem:[%s376 + $0x58] sm:$0xff] %v6166
        %6217 = vst [vmem:[%s376 + $0x60] sm:$0xff] %v6167
        %6218 = vst [vmem:[%s376 + $0x68] sm:$0xff] %v6168
        %6219 = vst [vmem:[%s376 + $0x70] sm:$0xff] %v6169
        %6220 = vst [vmem:[%s376 + $0x78] sm:$0xff] %v6170
        %6221 = vst [vmem:[%s376 + $0x80] sm:$0xff] %v6171
        %6222 = vst [vmem:[%s376 + $0x88] sm:$0xff] %v6172
        %6223 = vst [vmem:[%s376 + $0x90] sm:$0xff] %v6173
        %6224 = vst [vmem:[%s376 + $0x98] sm:$0xff] %v6174
        %6225 = vst [vmem:[%s376 + $0xa0] sm:$0xff] %v6175
        %6226 = vst [vmem:[%s376 + $0xa8] sm:$0xff] %v6176
        %6227 = vst [vmem:[%s376 + $0xb0] sm:$0xff] %v6177
        %6228 = vst [vmem:[%s376 + $0xb8] sm:$0xff] %v6178
        %6229 = vst [vmem:[%s376 + $0xc0] sm:$0xff] %v6179
        %6230 = vst [vmem:[%s376 + $0xc8] sm:$0xff] %v6180
        %6231 = vst [vmem:[%s376 + $0xd0] sm:$0xff] %v6181
        %6232 = vst [vmem:[%s376 + $0xd8] sm:$0xff] %v6182
        %6233 = vst [vmem:[%s376 + $0xe0] sm:$0xff] %v6183
        %6234 = vst [vmem:[%s376 + $0xe8] sm:$0xff] %v6184
        %6235 = vst [vmem:[%s376 + $0xf0] sm:$0xff] %v6185
        %6236 = vst [vmem:[%s376 + $0xf8] sm:$0xff] %v6186
        %6237 = vst [vmem:[%s376 + $0x100] sm:$0xff] %v6187
        %6238 = vst [vmem:[%s376 + $0x108] sm:$0xff] %v6188
        %6239 = vst [vmem:[%s376 + $0x110] sm:$0xff] %v6189
        %6240 = vst [vmem:[%s376 + $0x118] sm:$0xff] %v6190
        %6241 = vst [vmem:[%s376 + $0x120] sm:$0xff] %v6191
        %6242 = vst [vmem:[%s376 + $0x128] sm:$0xff] %v6192
        %6243 = vst [vmem:[%s376 + $0x130] sm:$0xff] %v6193
        %6244 = vst [vmem:[%s376 + $0x138] sm:$0xff] %v6194
        %6245 = vst [vmem:[%s376 + $0x140] sm:$0xff] %v6195
        %6246 = vst [vmem:[%s376 + $0x148] sm:$0xff] %v6196
        %6247 = vst [vmem:[%s376 + $0x150] sm:$0xff] %v6197
        %6248 = vst [vmem:[%s376 + $0x158] sm:$0xff] %v6198
        %6249 = vst [vmem:[%s376 + $0x160] sm:$0xff] %v6199
        %6250 = vst [vmem:[%s376 + $0x168] sm:$0xff] %v6200
        %6251 = vst [vmem:[%s376 + $0x170] sm:$0xff] %v6201
        %6252 = vst [vmem:[%s376 + $0x178] sm:$0xff] %v6202
        %6253 = vst [vmem:[%s376 + $0x180] sm:$0xff] %v6203
        %6254 = vst [vmem:[%s376 + $0x188] sm:$0xff] %v6204
        %s6255 = sand.u32 %s187, 1
        %s6256 = scalar_lea.sflag [#allocation5], %s6255
        %s6257 = sand.u32 %s187, 1
        %s6258 = smul.addr %s6257, 400
        %s6259 = scalar_lea.vmem [#allocation14], %s6258
        // Predicated region
        $region73: #{tpu_custom_call.1} parent=47 // pred_check
          %p6260 = pneg %p197
        $region74: #{tpu_custom_call.1} parent=47 // pred_check_branch
          %6262 = sbr.rel (%p6260) target = $region76
        $region75: #{tpu_custom_call.1} parent=47 // pred_region
          %s6263 = smul.u32 25, %s27
          %6265 = vsyncadd %s6256, 0
          %s6266 = smul.addr %s6263, 2
          %s6267 = smul.addr %s6266, 8
          %s6268 = scalar_lea.hbm %s7, %s6267
          %s6269 = sshll.u32 %s6259, 4
          %s6270 = int_to_ptr.vmem [resolvable:$true] %s6269
          %s6271 = sshll.u32 %s6268, 4
          %s6272 = int_to_ptr.hbm [resolvable:$true] %s6271
          %6277 = dma.vmem_to_hbm [thread:$0]  %s6270, 6400, %s6272, %s6256, 256, 256, 16
        $region76: #{tpu_custom_call.1} parent=47 // pred_fallthru
          _
      $region48: #{tpu_custom_call.1} parent=5 // pred_fallthru
        _
      %p6278 = scmp.le.s32.totalorder 2, %s22
      // Predicated region
      $region77: #{tpu_custom_call.1} parent=5 // pred_check
        %p6279 = pneg %p6278
      $region78: #{tpu_custom_call.1} parent=5 // pred_check_branch
        %6281 = sbr.rel (%p6279) target = $region80
      $region79: #{tpu_custom_call.1} parent=5 // pred_region
        %s6282 = ssub.s32 %s22, 2
        // Predicated region
        $region81: #{tpu_custom_call.1} parent=79 // pred_check
          %p6283 = pneg %p203
        $region82: #{tpu_custom_call.1} parent=79 // pred_check_branch
          %6285 = sbr.rel (%p6283) target = $region84
        $region83: #{tpu_custom_call.1} parent=79 // pred_region
          %s6286 = sand.u32 %s188, 1
          %s6287 = scalar_lea.sflag [#allocation5], %s6286
          %s6288 = sand.u32 %s188, 1
          %s6289 = smul.addr %s6288, 400
          %s6290 = scalar_lea.vmem [#allocation14], %s6289
          %6292 = dma.done %s6287, 6400
        $region84: #{tpu_custom_call.1} parent=79 // pred_fallthru
          _
      $region80: #{tpu_custom_call.1} parent=5 // pred_fallthru
        _
    $region6: #{tpu_custom_call.1} parent=1 // loop_footer
      %s26 = sadd.s32 1, %s22
    $region7: #{tpu_custom_call.1} parent=1 // loop_footer_branch
      %21 = sbr.rel target = $region3
    $region8: #{tpu_custom_call.1} parent=1 // loop_exit
      _
    %6293 = vsyncpa [#allocation4], 1
    %s6294 = scalar_lea.sflag [#allocation4], 1
    %6295 = vsyncpa %s6294, 1
    %6296 = vsyncpa [#allocation7], 1
    %6297 = vsyncpa [#allocation10], 1
    %6298 = vsyncpa [#allocation13], 1
    %6299 = vsyncpa [#allocation5], 1
    %s6300 = scalar_lea.sflag [#allocation5], 1
    %6301 = vsyncpa %s6300, 1

</llo_original>
